<compile_context>
chip_gen: v6e
topology: v6e:2x2x1
jax: 0.10.0
libtpu: 0.0.40
codegen_flags: <defaults>
</compile_context>

<pallas_src>
import functools

import jax
import jax.numpy as jnp
import numpy as np
from jax import lax
from jax.experimental import pallas as pl
from jax.experimental.pallas import tpu as pltpu

N_ANGLES = 512
ACTION_DIM = 5
CONV_CH = 32           # conv1/conv2 out channels
CONV_OUT = 128         # conv2 output length
FC1_OUT = 256
FC2_OUT = 128
OA_PAD = 16            # other(4) + action(5) padded to 16
CH_PER_STEP = 8        # conv channels folded into fc1 per grid step
KC = CONV_CH // CH_PER_STEP   # fc1 reduction grid (4 steps of 1024 columns)
assert CONV_CH % CH_PER_STEP == 0


# ----------------------------------------------------------------------------
# Plain-JAX glue: observation preprocessing (mirrors high_level_preprocess_obs)
# ----------------------------------------------------------------------------
def preprocess_obs(obs):
    observation = obs[:, :-2]
    goal = obs[:, -2:]
    scan = observation[:, :-7]
    other = observation[:, -7:]
    pose = other[:, 2:4]
    vel = other[:, 4:6]
    yaw = other[:, 6]
    goal_distance = jnp.sqrt(jnp.sum((pose - goal) ** 2, axis=-1))
    goal_angle = jnp.arctan2(goal[:, 1] - pose[:, 1], goal[:, 0] - pose[:, 0])
    goal_angle = jnp.arctan2(jnp.sin(goal_angle), jnp.cos(goal_angle))
    heading = jnp.arctan2(jnp.sin(goal_angle - yaw), jnp.cos(goal_angle - yaw))
    polar = jnp.stack([goal_distance, heading], axis=1)
    return jnp.concatenate([scan, polar, vel], axis=1)


# ----------------------------------------------------------------------------
# Plain-JAX glue: im2col tap inputs for the fused conv kernel.
# Tap k (k=0: conv1 pos 2l-1, k=1: conv1 pos 2l, k=2: conv1 pos 2l+1) as
# [F_pad, B*128] with feature = s*5 + t and lane = b*128 + l.
# Out-of-range windows (tap0 @ l=0, tap2 @ l=127) are clipped here; the
# corresponding conv1 columns are conv2 zero-padding and are masked in-kernel.
# ----------------------------------------------------------------------------
def build_tap_patches(scan):
    B, S, L = scan.shape
    F = S * 5
    F_pad = ((F + 7) // 8) * 8
    scan_pad = jnp.pad(scan, ((0, 0), (0, 0), (1, 1)))            # [B, S, 514]
    l = jnp.arange(CONV_OUT)
    taps = []
    for k in (0, 1, 2):
        start = 4 * l + 2 * (k - 1)                               # = 2*(2l + k - 1)
        idx = start[:, None] + jnp.arange(5)[None, :]             # [128, 5]
        idxc = jnp.clip(idx, 0, L + 1)
        w = scan_pad[:, :, idxc]                                  # [B, S, 128, 5]
        p = w.transpose(1, 3, 0, 2).reshape(F, B * CONV_OUT)      # [F, B*128]
        taps.append(jnp.pad(p, ((0, F_pad - F), (0, 0))))         # pad feature dim to x8
    return taps                                                   # p0, p1, p2


# ----------------------------------------------------------------------------
# One-time parameter packing (hoisted out of the forward path).
# ----------------------------------------------------------------------------
def pack_params(params, num_scan_stack):
    F = num_scan_stack * 5
    F_pad = ((F + 7) // 8) * 8
    wfc2t = params["Wfc2"].T                                      # [265, 128]
    # fc1 weight: transposed, bf16, pre-reshaped per conv channel: [32, 128, 256]
    # TODO(synk): int8/fp8 quantization with per-column scales (see header).
    wfc1p = params["Wfc1"].T.reshape(CONV_CH, CONV_OUT, FC1_OUT).astype(jnp.bfloat16)
    return {
        "w1": jnp.pad(params["W1"].reshape(CONV_CH, F), ((0, 0), (0, F_pad - F))),
        "b1": params["b1"].reshape(CONV_CH, 1),
        "w20": params["W2"][:, :, 0],
        "w21": params["W2"][:, :, 1],
        "w22": params["W2"][:, :, 2],
        "b2": params["b2"].reshape(CONV_CH, 1),
        "wfc1": wfc1p,                                            # [32, 128, 256] bf16
        "bfc1": params["bfc1"].reshape(1, FC1_OUT),
        "w2a": wfc2t[:FC1_OUT],                                   # [256, 128]
        "w2oa": jnp.pad(wfc2t[FC1_OUT:], ((0, OA_PAD - 9), (0, 0))),  # [16, 128]
        "bfc2": params["bfc2"].reshape(1, FC2_OUT),
        "wfc3": params["Wfc3"].T,                                 # [128, 1]
        "bfc3": params["bfc3"].reshape(1, 1),
    }


# ----------------------------------------------------------------------------
# Fused Pallas kernel: conv1 -> conv2 -> (flatten folded into) fc1 -> fc2 -> fc3
# grid axis k = fc1 reduction chunk (8 conv channels / 1024 fc1 columns each).
# ----------------------------------------------------------------------------
def fused_qf_kernel(p0_ref, p1_ref, p2_ref, oa_ref,
                    w1_ref, b1_ref, w20_ref, w21_ref, w22_ref, b2_ref,
                    wfc1_ref, bfc1_ref, w2a_ref, w2oa_ref, bfc2_ref,
                    wfc3_ref, bfc3_ref,
                    q_ref, cm_ref, acc_ref):
    k = pl.program_id(0)
    nk = pl.num_programs(0)
    B = cm_ref.shape[1]
    npos = cm_ref.shape[3]                    # 128

    # ---- stage 1 (first grid step only): conv1+ReLU -> conv2+ReLU ----
    @pl.when(k == 0)
    def _conv_stage():
        acc_ref[...] = jnp.zeros_like(acc_ref)
        w1 = w1_ref[...]
        b1 = b1_ref[...]
        w20 = w20_ref[...]
        w21 = w21_ref[...]
        w22 = w22_ref[...]
        b2 = b2_ref[...]
        sph = 2 if (B % 2 == 0) else 1        # samples per chunk (256 lanes)
        width = sph * npos
        # hoisted lane masks: conv2 left/right zero padding (computed once)
        pos = lax.broadcasted_iota(jnp.int32, (CONV_CH, width), 1) % npos
        mask0 = pos >= 1                      # conv1 position 2l-1 invalid at l == 0
        mask2 = pos <= npos - 2               # conv1 position 2l+1 invalid at l == 127
        for h in range(B // sph):
            lo = h * width
            h0 = jnp.maximum(jnp.dot(w1, p0_ref[:, lo:lo + width],
                                     preferred_element_type=jnp.float32) + b1, 0.0)
            h0 = jnp.where(mask0, h0, 0.0)    # conv1 @ positions 2l-1
            h1 = jnp.maximum(jnp.dot(w1, p1_ref[:, lo:lo + width],
                                     preferred_element_type=jnp.float32) + b1, 0.0)
            h2 = jnp.maximum(jnp.dot(w1, p2_ref[:, lo:lo + width],
                                     preferred_element_type=jnp.float32) + b1, 0.0)
            h2 = jnp.where(mask2, h2, 0.0)    # conv1 @ positions 2l+1
            z = (jnp.dot(w20, h0, preferred_element_type=jnp.float32)
                 + jnp.dot(w21, h1, preferred_element_type=jnp.float32)
                 + jnp.dot(w22, h2, preferred_element_type=jnp.float32)
                 + b2)
            xh = jnp.maximum(z, 0.0)          # [32, sph*128] channel-major
            # clean, fully tile-aligned [8,128] f32 stores per (chunk, sample)
            for s in range(sph):
                b_idx = h * sph + s
                for kc in range(cm_ref.shape[0]):
                    cm_ref[kc, b_idx] = xh[kc * CH_PER_STEP:(kc + 1) * CH_PER_STEP,
                                           s * npos:(s + 1) * npos]

    # ---- stage 2 (every step): fc1 partial for 8 channels (flatten folded in) ----
    xk = cm_ref[k]                            # [B, 8, 128] f32
    partial = jnp.zeros((B, FC1_OUT), jnp.float32)
    for j in range(CH_PER_STEP):
        partial += jnp.dot(xk[:, j, :].astype(jnp.bfloat16), wfc1_ref[j],
                           preferred_element_type=jnp.float32)
    acc_ref[...] += partial

    # ---- stage 3 (last step): fc1 bias/ReLU -> fc2 (+concat folded) -> fc3 ----
    @pl.when(k == nk - 1)
    def _head_stage():
        h1v = jnp.maximum(acc_ref[...] + bfc1_ref[...], 0.0)            # [B, 256]
        z2 = (jnp.dot(h1v, w2a_ref[...], preferred_element_type=jnp.float32)
              + jnp.dot(oa_ref[...], w2oa_ref[...], preferred_element_type=jnp.float32)
              + bfc2_ref[...])
        h2v = jnp.maximum(z2, 0.0)                                       # [B, 128]
        q_ref[...] = (jnp.dot(h2v, wfc3_ref[...], preferred_element_type=jnp.float32)
                      + bfc3_ref[...])


def fused_qf_pallas(p0, p1, p2, oa, pk):
    B = oa.shape[0]
    F_pad = p0.shape[0]

    def full_spec(a):
        nd = a.ndim
        return pl.BlockSpec(a.shape, lambda k, nd=nd: (0,) * nd)

    wfc1 = pk["wfc1"]
    in_arrays = (p0, p1, p2, oa,
                 pk["w1"], pk["b1"], pk["w20"], pk["w21"], pk["w22"], pk["b2"],
                 wfc1, pk["bfc1"], pk["w2a"], pk["w2oa"], pk["bfc2"],
                 pk["wfc3"], pk["bfc3"])
    in_specs = []
    for a in in_arrays:
        if a is wfc1:
            # wfc1 is gridded over the fc1 reduction -> pipelined 512 KB chunks
            in_specs.append(pl.BlockSpec((CH_PER_STEP, CONV_OUT, FC1_OUT),
                                         lambda k: (k, 0, 0)))
        else:
            in_specs.append(full_spec(a))

    flops = (2 * B * CONV_CH * CONV_OUT * FC1_OUT                    # fc1
             + 3 * 2 * F_pad * CONV_CH * B * CONV_OUT                # conv1 (3 taps)
             + 3 * 2 * CONV_CH * CONV_CH * B * CONV_OUT              # conv2 (3 taps)
             + 2 * B * (FC1_OUT + OA_PAD) * FC2_OUT                  # fc2
             + 2 * B * FC2_OUT)                                      # fc3
    bytes_accessed = int(sum(a.size * a.dtype.itemsize for a in in_arrays) + B * 4)

    return pl.pallas_call(
        fused_qf_kernel,
        out_shape=jax.ShapeDtypeStruct((B, 1), jnp.float32),
        grid=(KC,),
        in_specs=in_specs,
        out_specs=pl.BlockSpec((B, 1), lambda k: (0, 0)),
        scratch_shapes=[
            pltpu.VMEM((KC, B, CH_PER_STEP, CONV_OUT), jnp.float32),  # conv output
            pltpu.VMEM((B, FC1_OUT), jnp.float32),                    # fc1 accumulator
        ],
        compiler_params=pltpu.CompilerParams(
            dimension_semantics=("arbitrary",),
            vmem_limit_bytes=32 * 1024 * 1024),
        cost_estimate=pl.CostEstimate(flops=flops, transcendentals=0,
                                      bytes_accessed=bytes_accessed),
    )(*in_arrays)


# ----------------------------------------------------------------------------
# Full forward (glue + one fused Pallas kernel).  `packed` comes from
# pack_params() and is prepared once, not per call.
# ----------------------------------------------------------------------------
def high_level_conv_qf_forward(obs, action, packed, num_scan_stack):
    B = obs.shape[0]
    pre = preprocess_obs(obs)
    scan = pre[:, :-4].reshape(B, num_scan_stack, N_ANGLES)
    other = pre[:, -4:]

    p0, p1, p2 = build_tap_patches(scan)                          # each [F_pad, B*128]
    oa = jnp.concatenate([other, action], axis=1)                 # [B, 9]
    oa = jnp.pad(oa, ((0, 0), (0, OA_PAD - oa.shape[1])))         # [B, 16]
    return fused_qf_pallas(p0, p1, p2, oa, packed)


# ----------------------------------------------------------------------------
# Deterministic parameter init (PyTorch-style U(-1/sqrt(fan_in), 1/sqrt(fan_in)))
# ----------------------------------------------------------------------------
def init_params(key, num_scan_stack):
    ks = jax.random.split(key, 10)

    def u(k, shape, fan_in):
        b = 1.0 / float(np.sqrt(fan_in))
        return jax.random.uniform(k, shape, jnp.float32, -b, b)

    fc2_in = 256 + 2 + 2 + ACTION_DIM
    return {
        "W1": u(ks[0], (32, num_scan_stack, 5), num_scan_stack * 5),
        "b1": u(ks[1], (32,), num_scan_stack * 5),
        "W2": u(ks[2], (32, 32, 3), 32 * 3),
        "b2": u(ks[3], (32,), 32 * 3),
        "Wfc1": u(ks[4], (256, 128 * 32), 128 * 32),
        "bfc1": u(ks[5], (256,), 128 * 32),
        "Wfc2": u(ks[6], (128, fc2_in), fc2_in),
        "bfc2": u(ks[7], (128,), fc2_in),
        "Wfc3": u(ks[8], (1, 128), 128),
        "bfc3": u(ks[9], (1,), 128),
    }


# ----------------------------------------------------------------------------
# Pure-JAX reference (independent of the im2col path) for a sanity check.
# ----------------------------------------------------------------------------
def reference_forward(obs, action, params, num_scan_stack):
    B = obs.shape[0]
    pre = preprocess_obs(obs)
    scan = pre[:, :-4].reshape(B, num_scan_stack, N_ANGLES)
    other = pre[:, -4:]
    dn = ("NCH", "OIH", "NCH")
    hp = lax.Precision.HIGHEST
    x = lax.conv_general_dilated(scan, params["W1"], window_strides=(2,),
                                 padding=[(1, 1)], dimension_numbers=dn, precision=hp)
    x = jax.nn.relu(x + params["b1"][None, :, None])
    x = lax.conv_general_dilated(x, params["W2"], window_strides=(2,),
                                 padding=[(1, 1)], dimension_numbers=dn, precision=hp)
    x = jax.nn.relu(x + params["b2"][None, :, None])
    x = x.reshape(B, -1)
    x = jax.nn.relu(jnp.dot(x, params["Wfc1"].T, precision=hp) + params["bfc1"])
    x = jnp.concatenate([x, other, action], axis=-1)
    x = jax.nn.relu(jnp.dot(x, params["Wfc2"].T, precision=hp) + params["bfc2"])
    return jnp.dot(x, params["Wfc3"].T, precision=hp) + params["bfc3"]


if __name__ == "__main__":
    B = 4
    NUM_SCAN_STACK = 3
    obs_dim = NUM_SCAN_STACK * N_ANGLES + 7 + 2   # scan + other(7) + goal(2)

    key = jax.random.PRNGKey(0)
    k_obs, k_act, k_param = jax.random.split(key, 3)
    obs = jax.random.normal(k_obs, (B, obs_dim), jnp.float32)
    action = jax.random.normal(k_act, (B, ACTION_DIM), jnp.float32)
    params = init_params(k_param, NUM_SCAN_STACK)

    # one-time weight packing (transposes / tap split / pads / bf16 cast)
    packed = pack_params(params, NUM_SCAN_STACK)

    fwd = jax.jit(functools.partial(high_level_conv_qf_forward,
                                    num_scan_stack=NUM_SCAN_STACK))
    q = jax.block_until_ready(fwd(obs, action, packed))

    q_ref = jax.block_until_ready(reference_forward(obs, action, params, NUM_SCAN_STACK))
    # fc1 runs bf16 x bf16 with f32 accumulation: tolerance loosened vs pure-f32.
    np.testing.assert_allclose(np.asarray(q), np.asarray(q_ref), rtol=5e-2, atol=2e-2)

    print("KERNEL_OK")
</pallas_src>

<mosaic_0001>
module attributes {stable_mosaic.version = 11 : i64} {
  func.func @fused_qf_kernel(%arg0: i32, %arg1: memref<16x512xf32, #tpu.memory_space<vmem>>, %arg2: memref<16x512xf32, #tpu.memory_space<vmem>>, %arg3: memref<16x512xf32, #tpu.memory_space<vmem>>, %arg4: memref<4x16xf32, #tpu.memory_space<vmem>>, %arg5: memref<32x16xf32, #tpu.memory_space<vmem>>, %arg6: memref<32x1xf32, #tpu.memory_space<vmem>>, %arg7: memref<32x32xf32, #tpu.memory_space<vmem>>, %arg8: memref<32x32xf32, #tpu.memory_space<vmem>>, %arg9: memref<32x32xf32, #tpu.memory_space<vmem>>, %arg10: memref<32x1xf32, #tpu.memory_space<vmem>>, %arg11: memref<8x128x256xbf16, #tpu.memory_space<vmem>>, %arg12: memref<1x256xf32, #tpu.memory_space<vmem>>, %arg13: memref<256x128xf32, #tpu.memory_space<vmem>>, %arg14: memref<16x128xf32, #tpu.memory_space<vmem>>, %arg15: memref<1x128xf32, #tpu.memory_space<vmem>>, %arg16: memref<128x1xf32, #tpu.memory_space<vmem>>, %arg17: memref<1x1xf32, #tpu.memory_space<vmem>>, %arg18: memref<4x1xf32, #tpu.memory_space<vmem>>, %arg19: memref<4x4x8x128xf32, #tpu.memory_space<vmem>>, %arg20: memref<4x256xf32, #tpu.memory_space<vmem>>) attributes {dimension_semantics = [#tpu.dimension_semantics<arbitrary>], iteration_bounds = array<i64: 4>, scalar_prefetch = 0 : i64, scratch_operands = 2 : i64, tpu.core_type = #tpu.core_type<tc>, window_params = [{pipeline_mode = #tpu.pipeline_mode<synchronous>, transform_indices = @transform_0, window_bounds = array<i64: 16, 512>}, {pipeline_mode = #tpu.pipeline_mode<synchronous>, transform_indices = @transform_1, window_bounds = array<i64: 16, 512>}, {pipeline_mode = #tpu.pipeline_mode<synchronous>, transform_indices = @transform_2, window_bounds = array<i64: 16, 512>}, {pipeline_mode = #tpu.pipeline_mode<synchronous>, transform_indices = @transform_3, window_bounds = array<i64: 4, 16>}, {pipeline_mode = #tpu.pipeline_mode<synchronous>, transform_indices = @transform_4, window_bounds = array<i64: 32, 16>}, {pipeline_mode = #tpu.pipeline_mode<synchronous>, transform_indices = @transform_5, window_bounds = array<i64: 32, 1>}, {pipeline_mode = #tpu.pipeline_mode<synchronous>, transform_indices = @transform_6, window_bounds = array<i64: 32, 32>}, {pipeline_mode = #tpu.pipeline_mode<synchronous>, transform_indices = @transform_7, window_bounds = array<i64: 32, 32>}, {pipeline_mode = #tpu.pipeline_mode<synchronous>, transform_indices = @transform_8, window_bounds = array<i64: 32, 32>}, {pipeline_mode = #tpu.pipeline_mode<synchronous>, transform_indices = @transform_9, window_bounds = array<i64: 32, 1>}, {transform_indices = @transform_10, window_bounds = array<i64: 8, 128, 256>}, {pipeline_mode = #tpu.pipeline_mode<synchronous>, transform_indices = @transform_11, window_bounds = array<i64: 1, 256>}, {pipeline_mode = #tpu.pipeline_mode<synchronous>, transform_indices = @transform_12, window_bounds = array<i64: 256, 128>}, {pipeline_mode = #tpu.pipeline_mode<synchronous>, transform_indices = @transform_13, window_bounds = array<i64: 16, 128>}, {pipeline_mode = #tpu.pipeline_mode<synchronous>, transform_indices = @transform_14, window_bounds = array<i64: 1, 128>}, {pipeline_mode = #tpu.pipeline_mode<synchronous>, transform_indices = @transform_15, window_bounds = array<i64: 128, 1>}, {pipeline_mode = #tpu.pipeline_mode<synchronous>, transform_indices = @transform_16, window_bounds = array<i64: 1, 1>}, {pipeline_mode = #tpu.pipeline_mode<synchronous>, transform_indices = @transform_17, window_bounds = array<i64: 4, 1>}]} {
    %c0_i32 = arith.constant 0 : i32
    %0 = arith.cmpi eq, %arg0, %c0_i32 : i32
    %1 = arith.extui %0 : i1 to i32
    %c0_i32_0 = arith.constant 0 : i32
    %2 = arith.cmpi ne, %1, %c0_i32_0 : i32
    scf.if %2 {
      %cst_33 = arith.constant 0.000000e+00 : f32
      %69 = vector.broadcast %cst_33 : f32 to vector<4x256xf32>
      %c0_34 = arith.constant 0 : index
      %c0_35 = arith.constant 0 : index
      %70 = vector.load %arg20[%c0_34, %c0_35] : memref<4x256xf32, #tpu.memory_space<vmem>>, vector<4x256xf32>
      tpu.vector_store %arg20[%c0_34, %c0_35], %69 {strides = array<i32>} : memref<4x256xf32, #tpu.memory_space<vmem>>, vector<4x256xf32>,
      %c0_36 = arith.constant 0 : index
      %c0_37 = arith.constant 0 : index
      %71 = vector.load %arg5[%c0_36, %c0_37] : memref<32x16xf32, #tpu.memory_space<vmem>>, vector<32x16xf32>
      %c0_38 = arith.constant 0 : index
      %c0_39 = arith.constant 0 : index
      %72 = vector.load %arg6[%c0_38, %c0_39] : memref<32x1xf32, #tpu.memory_space<vmem>>, vector<32x1xf32>
      %c0_40 = arith.constant 0 : index
      %c0_41 = arith.constant 0 : index
      %73 = vector.load %arg7[%c0_40, %c0_41] : memref<32x32xf32, #tpu.memory_space<vmem>>, vector<32x32xf32>
      %c0_42 = arith.constant 0 : index
      %c0_43 = arith.constant 0 : index
      %74 = vector.load %arg8[%c0_42, %c0_43] : memref<32x32xf32, #tpu.memory_space<vmem>>, vector<32x32xf32>
      %c0_44 = arith.constant 0 : index
      %c0_45 = arith.constant 0 : index
      %75 = vector.load %arg9[%c0_44, %c0_45] : memref<32x32xf32, #tpu.memory_space<vmem>>, vector<32x32xf32>
      %c0_46 = arith.constant 0 : index
      %c0_47 = arith.constant 0 : index
      %76 = vector.load %arg10[%c0_46, %c0_47] : memref<32x1xf32, #tpu.memory_space<vmem>>, vector<32x1xf32>
      %77 = tpu.iota {dimensions = array<i32: 1>} : vector<32x256xi32>
      %c128_i32 = arith.constant 128 : i32
      %c0_i32_48 = arith.constant 0 : i32
      %78 = arith.cmpi eq, %c128_i32, %c0_i32_48 : i32
      %c1_i32 = arith.constant 1 : i32
      %79 = arith.select %78, %c1_i32, %c128_i32 : i32
      %80 = vector.broadcast %79 : i32 to vector<32x256xi32>
      %81 = arith.remsi %77, %80 : vector<32x256xi32>
      %c0_i32_49 = arith.constant 0 : i32
      %82 = vector.broadcast %c0_i32_49 : i32 to vector<32x256xi32>
      %83 = arith.cmpi ne, %81, %82 : vector<32x256xi32>
      %c0_i32_50 = arith.constant 0 : i32
      %84 = vector.broadcast %c0_i32_50 : i32 to vector<32x256xi32>
      %85 = arith.cmpi slt, %81, %84 : vector<32x256xi32>
      %c0_i32_51 = arith.constant 0 : i32
      %86 = arith.cmpi slt, %79, %c0_i32_51 : i32
      %87 = vector.broadcast %86 : i1 to vector<32x256xi1>
      %88 = vector.broadcast %87 : vector<32x256xi1> to vector<32x256xi1>
      %89 = arith.xori %85, %88 : vector<32x256xi1>
      %90 = arith.andi %89, %83 : vector<32x256xi1>
      %91 = vector.broadcast %79 : i32 to vector<32x256xi32>
      %92 = arith.addi %81, %91 : vector<32x256xi32>
      %93 = arith.select %90, %92, %81 : vector<32x256xi1>, vector<32x256xi32>
      %c1_i32_52 = arith.constant 1 : i32
      %94 = vector.broadcast %c1_i32_52 : i32 to vector<32x256xi32>
      %95 = arith.cmpi sge, %93, %94 : vector<32x256xi32>
      %c126_i32 = arith.constant 126 : i32
      %96 = vector.broadcast %c126_i32 : i32 to vector<32x256xi32>
      %97 = arith.cmpi sle, %93, %96 : vector<32x256xi32>
      %c0_53 = arith.constant 0 : index
      %c0_54 = arith.constant 0 : index
      %98 = vector.load %arg1[%c0_53, %c0_54] : memref<16x512xf32, #tpu.memory_space<vmem>>, vector<16x256xf32>
      %cst_55 = arith.constant dense<0.000000e+00> : vector<32x256xf32>
      %99 = tpu.matmul %71, %98, %cst_55 {dimension_numbers = #tpu.dot_dimension_numbers<[1], [0], [0], [1], [0, 0, 1, 1], [], []>} : vector<32x16xf32>, vector<16x256xf32>, vector<32x256xf32> -> vector<32x256xf32>
      %100 = vector.broadcast %72 : vector<32x1xf32> to vector<32x256xf32>
      %101 = arith.addf %99, %100 : vector<32x256xf32>
      %cst_56 = arith.constant 0.000000e+00 : f32
      %102 = vector.broadcast %cst_56 : f32 to vector<32x256xf32>
      %103 = arith.maximumf %101, %102 : vector<32x256xf32>
      %cst_57 = arith.constant 0.000000e+00 : f32
      %104 = vector.broadcast %cst_57 : f32 to vector<32x256xf32>
      %105 = arith.select %95, %103, %104 : vector<32x256xi1>, vector<32x256xf32>
      %c0_58 = arith.constant 0 : index
      %c0_59 = arith.constant 0 : index
      %106 = vector.load %arg2[%c0_58, %c0_59] : memref<16x512xf32, #tpu.memory_space<vmem>>, vector<16x256xf32>
      %cst_60 = arith.constant dense<0.000000e+00> : vector<32x256xf32>
      %107 = tpu.matmul %71, %106, %cst_60 {dimension_numbers = #tpu.dot_dimension_numbers<[1], [0], [0], [1], [0, 0, 1, 1], [], []>} : vector<32x16xf32>, vector<16x256xf32>, vector<32x256xf32> -> vector<32x256xf32>
      %108 = vector.broadcast %72 : vector<32x1xf32> to vector<32x256xf32>
      %109 = arith.addf %107, %108 : vector<32x256xf32>
      %cst_61 = arith.constant 0.000000e+00 : f32
      %110 = vector.broadcast %cst_61 : f32 to vector<32x256xf32>
      %111 = arith.maximumf %109, %110 : vector<32x256xf32>
      %c0_62 = arith.constant 0 : index
      %c0_63 = arith.constant 0 : index
      %112 = vector.load %arg3[%c0_62, %c0_63] : memref<16x512xf32, #tpu.memory_space<vmem>>, vector<16x256xf32>
      %cst_64 = arith.constant dense<0.000000e+00> : vector<32x256xf32>
      %113 = tpu.matmul %71, %112, %cst_64 {dimension_numbers = #tpu.dot_dimension_numbers<[1], [0], [0], [1], [0, 0, 1, 1], [], []>} : vector<32x16xf32>, vector<16x256xf32>, vector<32x256xf32> -> vector<32x256xf32>
      %114 = vector.broadcast %72 : vector<32x1xf32> to vector<32x256xf32>
      %115 = arith.addf %113, %114 : vector<32x256xf32>
      %cst_65 = arith.constant 0.000000e+00 : f32
      %116 = vector.broadcast %cst_65 : f32 to vector<32x256xf32>
      %117 = arith.maximumf %115, %116 : vector<32x256xf32>
      %cst_66 = arith.constant 0.000000e+00 : f32
      %118 = vector.broadcast %cst_66 : f32 to vector<32x256xf32>
      %119 = arith.select %97, %117, %118 : vector<32x256xi1>, vector<32x256xf32>
      %cst_67 = arith.constant dense<0.000000e+00> : vector<32x256xf32>
      %120 = tpu.matmul %73, %105, %cst_67 {dimension_numbers = #tpu.dot_dimension_numbers<[1], [0], [0], [1], [0, 0, 1, 1], [], []>} : vector<32x32xf32>, vector<32x256xf32>, vector<32x256xf32> -> vector<32x256xf32>
      %cst_68 = arith.constant dense<0.000000e+00> : vector<32x256xf32>
      %121 = tpu.matmul %74, %111, %cst_68 {dimension_numbers = #tpu.dot_dimension_numbers<[1], [0], [0], [1], [0, 0, 1, 1], [], []>} : vector<32x32xf32>, vector<32x256xf32>, vector<32x256xf32> -> vector<32x256xf32>
      %122 = arith.addf %120, %121 : vector<32x256xf32>
      %cst_69 = arith.constant dense<0.000000e+00> : vector<32x256xf32>
      %123 = tpu.matmul %75, %119, %cst_69 {dimension_numbers = #tpu.dot_dimension_numbers<[1], [0], [0], [1], [0, 0, 1, 1], [], []>} : vector<32x32xf32>, vector<32x256xf32>, vector<32x256xf32> -> vector<32x256xf32>
      %124 = arith.addf %122, %123 : vector<32x256xf32>
      %125 = vector.broadcast %76 : vector<32x1xf32> to vector<32x256xf32>
      %126 = arith.addf %124, %125 : vector<32x256xf32>
      %cst_70 = arith.constant 0.000000e+00 : f32
      %127 = vector.broadcast %cst_70 : f32 to vector<32x256xf32>
      %128 = arith.maximumf %126, %127 : vector<32x256xf32>
      %129 = vector.extract_strided_slice %128 {offsets = [0, 0], sizes = [8, 128], strides = [1, 1]} : vector<32x256xf32> to vector<8x128xf32>
      %c0_71 = arith.constant 0 : index
      %c0_72 = arith.constant 0 : index
      %c0_73 = arith.constant 0 : index
      %c0_74 = arith.constant 0 : index
      %130 = vector.load %arg19[%c0_71, %c0_72, %c0_73, %c0_74] : memref<4x4x8x128xf32, #tpu.memory_space<vmem>>, vector<1x1x8x128xf32>
      %131 = vector.shape_cast %130 : vector<1x1x8x128xf32> to vector<8x128xf32>
      %132 = vector.shape_cast %129 : vector<8x128xf32> to vector<1x1x8x128xf32>
      tpu.vector_store %arg19[%c0_71, %c0_72, %c0_73, %c0_74], %132 {strides = array<i32>} : memref<4x4x8x128xf32, #tpu.memory_space<vmem>>, vector<1x1x8x128xf32>,
      %133 = vector.extract_strided_slice %128 {offsets = [8, 0], sizes = [8, 128], strides = [1, 1]} : vector<32x256xf32> to vector<8x128xf32>
      %c1_75 = arith.constant 1 : index
      %c0_76 = arith.constant 0 : index
      %c0_77 = arith.constant 0 : index
      %c0_78 = arith.constant 0 : index
      %134 = vector.load %arg19[%c1_75, %c0_76, %c0_77, %c0_78] : memref<4x4x8x128xf32, #tpu.memory_space<vmem>>, vector<1x1x8x128xf32>
      %135 = vector.shape_cast %134 : vector<1x1x8x128xf32> to vector<8x128xf32>
      %136 = vector.shape_cast %133 : vector<8x128xf32> to vector<1x1x8x128xf32>
      tpu.vector_store %arg19[%c1_75, %c0_76, %c0_77, %c0_78], %136 {strides = array<i32>} : memref<4x4x8x128xf32, #tpu.memory_space<vmem>>, vector<1x1x8x128xf32>,
      %137 = vector.extract_strided_slice %128 {offsets = [16, 0], sizes = [8, 128], strides = [1, 1]} : vector<32x256xf32> to vector<8x128xf32>
      %c2_79 = arith.constant 2 : index
      %c0_80 = arith.constant 0 : index
      %c0_81 = arith.constant 0 : index
      %c0_82 = arith.constant 0 : index
      %138 = vector.load %arg19[%c2_79, %c0_80, %c0_81, %c0_82] : memref<4x4x8x128xf32, #tpu.memory_space<vmem>>, vector<1x1x8x128xf32>
      %139 = vector.shape_cast %138 : vector<1x1x8x128xf32> to vector<8x128xf32>
      %140 = vector.shape_cast %137 : vector<8x128xf32> to vector<1x1x8x128xf32>
      tpu.vector_store %arg19[%c2_79, %c0_80, %c0_81, %c0_82], %140 {strides = array<i32>} : memref<4x4x8x128xf32, #tpu.memory_space<vmem>>, vector<1x1x8x128xf32>,
      %141 = vector.extract_strided_slice %128 {offsets = [24, 0], sizes = [8, 128], strides = [1, 1]} : vector<32x256xf32> to vector<8x128xf32>
      %c3_83 = arith.constant 3 : index
      %c0_84 = arith.constant 0 : index
      %c0_85 = arith.constant 0 : index
      %c0_86 = arith.constant 0 : index
      %142 = vector.load %arg19[%c3_83, %c0_84, %c0_85, %c0_86] : memref<4x4x8x128xf32, #tpu.memory_space<vmem>>, vector<1x1x8x128xf32>
      %143 = vector.shape_cast %142 : vector<1x1x8x128xf32> to vector<8x128xf32>
      %144 = vector.shape_cast %141 : vector<8x128xf32> to vector<1x1x8x128xf32>
      tpu.vector_store %arg19[%c3_83, %c0_84, %c0_85, %c0_86], %144 {strides = array<i32>} : memref<4x4x8x128xf32, #tpu.memory_space<vmem>>, vector<1x1x8x128xf32>,
      %145 = vector.extract_strided_slice %128 {offsets = [0, 128], sizes = [8, 128], strides = [1, 1]} : vector<32x256xf32> to vector<8x128xf32>
      %c0_87 = arith.constant 0 : index
      %c1_88 = arith.constant 1 : index
      %c0_89 = arith.constant 0 : index
      %c0_90 = arith.constant 0 : index
      %146 = vector.load %arg19[%c0_87, %c1_88, %c0_89, %c0_90] : memref<4x4x8x128xf32, #tpu.memory_space<vmem>>, vector<1x1x8x128xf32>
      %147 = vector.shape_cast %146 : vector<1x1x8x128xf32> to vector<8x128xf32>
      %148 = vector.shape_cast %145 : vector<8x128xf32> to vector<1x1x8x128xf32>
      tpu.vector_store %arg19[%c0_87, %c1_88, %c0_89, %c0_90], %148 {strides = array<i32>} : memref<4x4x8x128xf32, #tpu.memory_space<vmem>>, vector<1x1x8x128xf32>,
      %149 = vector.extract_strided_slice %128 {offsets = [8, 128], sizes = [8, 128], strides = [1, 1]} : vector<32x256xf32> to vector<8x128xf32>
      %c1_91 = arith.constant 1 : index
      %c1_92 = arith.constant 1 : index
      %c0_93 = arith.constant 0 : index
      %c0_94 = arith.constant 0 : index
      %150 = vector.load %arg19[%c1_91, %c1_92, %c0_93, %c0_94] : memref<4x4x8x128xf32, #tpu.memory_space<vmem>>, vector<1x1x8x128xf32>
      %151 = vector.shape_cast %150 : vector<1x1x8x128xf32> to vector<8x128xf32>
      %152 = vector.shape_cast %149 : vector<8x128xf32> to vector<1x1x8x128xf32>
      tpu.vector_store %arg19[%c1_91, %c1_92, %c0_93, %c0_94], %152 {strides = array<i32>} : memref<4x4x8x128xf32, #tpu.memory_space<vmem>>, vector<1x1x8x128xf32>,
      %153 = vector.extract_strided_slice %128 {offsets = [16, 128], sizes = [8, 128], strides = [1, 1]} : vector<32x256xf32> to vector<8x128xf32>
      %c2_95 = arith.constant 2 : index
      %c1_96 = arith.constant 1 : index
      %c0_97 = arith.constant 0 : index
      %c0_98 = arith.constant 0 : index
      %154 = vector.load %arg19[%c2_95, %c1_96, %c0_97, %c0_98] : memref<4x4x8x128xf32, #tpu.memory_space<vmem>>, vector<1x1x8x128xf32>
      %155 = vector.shape_cast %154 : vector<1x1x8x128xf32> to vector<8x128xf32>
      %156 = vector.shape_cast %153 : vector<8x128xf32> to vector<1x1x8x128xf32>
      tpu.vector_store %arg19[%c2_95, %c1_96, %c0_97, %c0_98], %156 {strides = array<i32>} : memref<4x4x8x128xf32, #tpu.memory_space<vmem>>, vector<1x1x8x128xf32>,
      %157 = vector.extract_strided_slice %128 {offsets = [24, 128], sizes = [8, 128], strides = [1, 1]} : vector<32x256xf32> to vector<8x128xf32>
      %c3_99 = arith.constant 3 : index
      %c1_100 = arith.constant 1 : index
      %c0_101 = arith.constant 0 : index
      %c0_102 = arith.constant 0 : index
      %158 = vector.load %arg19[%c3_99, %c1_100, %c0_101, %c0_102] : memref<4x4x8x128xf32, #tpu.memory_space<vmem>>, vector<1x1x8x128xf32>
      %159 = vector.shape_cast %158 : vector<1x1x8x128xf32> to vector<8x128xf32>
      %160 = vector.shape_cast %157 : vector<8x128xf32> to vector<1x1x8x128xf32>
      tpu.vector_store %arg19[%c3_99, %c1_100, %c0_101, %c0_102], %160 {strides = array<i32>} : memref<4x4x8x128xf32, #tpu.memory_space<vmem>>, vector<1x1x8x128xf32>,
      %c0_103 = arith.constant 0 : index
      %c256 = arith.constant 256 : index
      %161 = vector.load %arg1[%c0_103, %c256] : memref<16x512xf32, #tpu.memory_space<vmem>>, vector<16x256xf32>
      %cst_104 = arith.constant dense<0.000000e+00> : vector<32x256xf32>
      %162 = tpu.matmul %71, %161, %cst_104 {dimension_numbers = #tpu.dot_dimension_numbers<[1], [0], [0], [1], [0, 0, 1, 1], [], []>} : vector<32x16xf32>, vector<16x256xf32>, vector<32x256xf32> -> vector<32x256xf32>
      %163 = vector.broadcast %72 : vector<32x1xf32> to vector<32x256xf32>
      %164 = arith.addf %162, %163 : vector<32x256xf32>
      %cst_105 = arith.constant 0.000000e+00 : f32
      %165 = vector.broadcast %cst_105 : f32 to vector<32x256xf32>
      %166 = arith.maximumf %164, %165 : vector<32x256xf32>
      %cst_106 = arith.constant 0.000000e+00 : f32
      %167 = vector.broadcast %cst_106 : f32 to vector<32x256xf32>
      %168 = arith.select %95, %166, %167 : vector<32x256xi1>, vector<32x256xf32>
      %c0_107 = arith.constant 0 : index
      %c256_108 = arith.constant 256 : index
      %169 = vector.load %arg2[%c0_107, %c256_108] : memref<16x512xf32, #tpu.memory_space<vmem>>, vector<16x256xf32>
      %cst_109 = arith.constant dense<0.000000e+00> : vector<32x256xf32>
      %170 = tpu.matmul %71, %169, %cst_109 {dimension_numbers = #tpu.dot_dimension_numbers<[1], [0], [0], [1], [0, 0, 1, 1], [], []>} : vector<32x16xf32>, vector<16x256xf32>, vector<32x256xf32> -> vector<32x256xf32>
      %171 = vector.broadcast %72 : vector<32x1xf32> to vector<32x256xf32>
      %172 = arith.addf %170, %171 : vector<32x256xf32>
      %cst_110 = arith.constant 0.000000e+00 : f32
      %173 = vector.broadcast %cst_110 : f32 to vector<32x256xf32>
      %174 = arith.maximumf %172, %173 : vector<32x256xf32>
      %c0_111 = arith.constant 0 : index
      %c256_112 = arith.constant 256 : index
      %175 = vector.load %arg3[%c0_111, %c256_112] : memref<16x512xf32, #tpu.memory_space<vmem>>, vector<16x256xf32>
      %cst_113 = arith.constant dense<0.000000e+00> : vector<32x256xf32>
      %176 = tpu.matmul %71, %175, %cst_113 {dimension_numbers = #tpu.dot_dimension_numbers<[1], [0], [0], [1], [0, 0, 1, 1], [], []>} : vector<32x16xf32>, vector<16x256xf32>, vector<32x256xf32> -> vector<32x256xf32>
      %177 = vector.broadcast %72 : vector<32x1xf32> to vector<32x256xf32>
      %178 = arith.addf %176, %177 : vector<32x256xf32>
      %cst_114 = arith.constant 0.000000e+00 : f32
      %179 = vector.broadcast %cst_114 : f32 to vector<32x256xf32>
      %180 = arith.maximumf %178, %179 : vector<32x256xf32>
      %cst_115 = arith.constant 0.000000e+00 : f32
      %181 = vector.broadcast %cst_115 : f32 to vector<32x256xf32>
      %182 = arith.select %97, %180, %181 : vector<32x256xi1>, vector<32x256xf32>
      %cst_116 = arith.constant dense<0.000000e+00> : vector<32x256xf32>
      %183 = tpu.matmul %73, %168, %cst_116 {dimension_numbers = #tpu.dot_dimension_numbers<[1], [0], [0], [1], [0, 0, 1, 1], [], []>} : vector<32x32xf32>, vector<32x256xf32>, vector<32x256xf32> -> vector<32x256xf32>
      %cst_117 = arith.constant dense<0.000000e+00> : vector<32x256xf32>
      %184 = tpu.matmul %74, %174, %cst_117 {dimension_numbers = #tpu.dot_dimension_numbers<[1], [0], [0], [1], [0, 0, 1, 1], [], []>} : vector<32x32xf32>, vector<32x256xf32>, vector<32x256xf32> -> vector<32x256xf32>
      %185 = arith.addf %183, %184 : vector<32x256xf32>
      %cst_118 = arith.constant dense<0.000000e+00> : vector<32x256xf32>
      %186 = tpu.matmul %75, %182, %cst_118 {dimension_numbers = #tpu.dot_dimension_numbers<[1], [0], [0], [1], [0, 0, 1, 1], [], []>} : vector<32x32xf32>, vector<32x256xf32>, vector<32x256xf32> -> vector<32x256xf32>
      %187 = arith.addf %185, %186 : vector<32x256xf32>
      %188 = vector.broadcast %76 : vector<32x1xf32> to vector<32x256xf32>
      %189 = arith.addf %187, %188 : vector<32x256xf32>
      %cst_119 = arith.constant 0.000000e+00 : f32
      %190 = vector.broadcast %cst_119 : f32 to vector<32x256xf32>
      %191 = arith.maximumf %189, %190 : vector<32x256xf32>
      %192 = vector.extract_strided_slice %191 {offsets = [0, 0], sizes = [8, 128], strides = [1, 1]} : vector<32x256xf32> to vector<8x128xf32>
      %c0_120 = arith.constant 0 : index
      %c2_121 = arith.constant 2 : index
      %c0_122 = arith.constant 0 : index
      %c0_123 = arith.constant 0 : index
      %193 = vector.load %arg19[%c0_120, %c2_121, %c0_122, %c0_123] : memref<4x4x8x128xf32, #tpu.memory_space<vmem>>, vector<1x1x8x128xf32>
      %194 = vector.shape_cast %193 : vector<1x1x8x128xf32> to vector<8x128xf32>
      %195 = vector.shape_cast %192 : vector<8x128xf32> to vector<1x1x8x128xf32>
      tpu.vector_store %arg19[%c0_120, %c2_121, %c0_122, %c0_123], %195 {strides = array<i32>} : memref<4x4x8x128xf32, #tpu.memory_space<vmem>>, vector<1x1x8x128xf32>,
      %196 = vector.extract_strided_slice %191 {offsets = [8, 0], sizes = [8, 128], strides = [1, 1]} : vector<32x256xf32> to vector<8x128xf32>
      %c1_124 = arith.constant 1 : index
      %c2_125 = arith.constant 2 : index
      %c0_126 = arith.constant 0 : index
      %c0_127 = arith.constant 0 : index
      %197 = vector.load %arg19[%c1_124, %c2_125, %c0_126, %c0_127] : memref<4x4x8x128xf32, #tpu.memory_space<vmem>>, vector<1x1x8x128xf32>
      %198 = vector.shape_cast %197 : vector<1x1x8x128xf32> to vector<8x128xf32>
      %199 = vector.shape_cast %196 : vector<8x128xf32> to vector<1x1x8x128xf32>
      tpu.vector_store %arg19[%c1_124, %c2_125, %c0_126, %c0_127], %199 {strides = array<i32>} : memref<4x4x8x128xf32, #tpu.memory_space<vmem>>, vector<1x1x8x128xf32>,
      %200 = vector.extract_strided_slice %191 {offsets = [16, 0], sizes = [8, 128], strides = [1, 1]} : vector<32x256xf32> to vector<8x128xf32>
      %c2_128 = arith.constant 2 : index
      %c2_129 = arith.constant 2 : index
      %c0_130 = arith.constant 0 : index
      %c0_131 = arith.constant 0 : index
      %201 = vector.load %arg19[%c2_128, %c2_129, %c0_130, %c0_131] : memref<4x4x8x128xf32, #tpu.memory_space<vmem>>, vector<1x1x8x128xf32>
      %202 = vector.shape_cast %201 : vector<1x1x8x128xf32> to vector<8x128xf32>
      %203 = vector.shape_cast %200 : vector<8x128xf32> to vector<1x1x8x128xf32>
      tpu.vector_store %arg19[%c2_128, %c2_129, %c0_130, %c0_131], %203 {strides = array<i32>} : memref<4x4x8x128xf32, #tpu.memory_space<vmem>>, vector<1x1x8x128xf32>,
      %204 = vector.extract_strided_slice %191 {offsets = [24, 0], sizes = [8, 128], strides = [1, 1]} : vector<32x256xf32> to vector<8x128xf32>
      %c3_132 = arith.constant 3 : index
      %c2_133 = arith.constant 2 : index
      %c0_134 = arith.constant 0 : index
      %c0_135 = arith.constant 0 : index
      %205 = vector.load %arg19[%c3_132, %c2_133, %c0_134, %c0_135] : memref<4x4x8x128xf32, #tpu.memory_space<vmem>>, vector<1x1x8x128xf32>
      %206 = vector.shape_cast %205 : vector<1x1x8x128xf32> to vector<8x128xf32>
      %207 = vector.shape_cast %204 : vector<8x128xf32> to vector<1x1x8x128xf32>
      tpu.vector_store %arg19[%c3_132, %c2_133, %c0_134, %c0_135], %207 {strides = array<i32>} : memref<4x4x8x128xf32, #tpu.memory_space<vmem>>, vector<1x1x8x128xf32>,
      %208 = vector.extract_strided_slice %191 {offsets = [0, 128], sizes = [8, 128], strides = [1, 1]} : vector<32x256xf32> to vector<8x128xf32>
      %c0_136 = arith.constant 0 : index
      %c3_137 = arith.constant 3 : index
      %c0_138 = arith.constant 0 : index
      %c0_139 = arith.constant 0 : index
      %209 = vector.load %arg19[%c0_136, %c3_137, %c0_138, %c0_139] : memref<4x4x8x128xf32, #tpu.memory_space<vmem>>, vector<1x1x8x128xf32>
      %210 = vector.shape_cast %209 : vector<1x1x8x128xf32> to vector<8x128xf32>
      %211 = vector.shape_cast %208 : vector<8x128xf32> to vector<1x1x8x128xf32>
      tpu.vector_store %arg19[%c0_136, %c3_137, %c0_138, %c0_139], %211 {strides = array<i32>} : memref<4x4x8x128xf32, #tpu.memory_space<vmem>>, vector<1x1x8x128xf32>,
      %212 = vector.extract_strided_slice %191 {offsets = [8, 128], sizes = [8, 128], strides = [1, 1]} : vector<32x256xf32> to vector<8x128xf32>
      %c1_140 = arith.constant 1 : index
      %c3_141 = arith.constant 3 : index
      %c0_142 = arith.constant 0 : index
      %c0_143 = arith.constant 0 : index
      %213 = vector.load %arg19[%c1_140, %c3_141, %c0_142, %c0_143] : memref<4x4x8x128xf32, #tpu.memory_space<vmem>>, vector<1x1x8x128xf32>
      %214 = vector.shape_cast %213 : vector<1x1x8x128xf32> to vector<8x128xf32>
      %215 = vector.shape_cast %212 : vector<8x128xf32> to vector<1x1x8x128xf32>
      tpu.vector_store %arg19[%c1_140, %c3_141, %c0_142, %c0_143], %215 {strides = array<i32>} : memref<4x4x8x128xf32, #tpu.memory_space<vmem>>, vector<1x1x8x128xf32>,
      %216 = vector.extract_strided_slice %191 {offsets = [16, 128], sizes = [8, 128], strides = [1, 1]} : vector<32x256xf32> to vector<8x128xf32>
      %c2_144 = arith.constant 2 : index
      %c3_145 = arith.constant 3 : index
      %c0_146 = arith.constant 0 : index
      %c0_147 = arith.constant 0 : index
      %217 = vector.load %arg19[%c2_144, %c3_145, %c0_146, %c0_147] : memref<4x4x8x128xf32, #tpu.memory_space<vmem>>, vector<1x1x8x128xf32>
      %218 = vector.shape_cast %217 : vector<1x1x8x128xf32> to vector<8x128xf32>
      %219 = vector.shape_cast %216 : vector<8x128xf32> to vector<1x1x8x128xf32>
      tpu.vector_store %arg19[%c2_144, %c3_145, %c0_146, %c0_147], %219 {strides = array<i32>} : memref<4x4x8x128xf32, #tpu.memory_space<vmem>>, vector<1x1x8x128xf32>,
      %220 = vector.extract_strided_slice %191 {offsets = [24, 128], sizes = [8, 128], strides = [1, 1]} : vector<32x256xf32> to vector<8x128xf32>
      %c3_148 = arith.constant 3 : index
      %c3_149 = arith.constant 3 : index
      %c0_150 = arith.constant 0 : index
      %c0_151 = arith.constant 0 : index
      %221 = vector.load %arg19[%c3_148, %c3_149, %c0_150, %c0_151] : memref<4x4x8x128xf32, #tpu.memory_space<vmem>>, vector<1x1x8x128xf32>
      %222 = vector.shape_cast %221 : vector<1x1x8x128xf32> to vector<8x128xf32>
      %223 = vector.shape_cast %220 : vector<8x128xf32> to vector<1x1x8x128xf32>
      tpu.vector_store %arg19[%c3_148, %c3_149, %c0_150, %c0_151], %223 {strides = array<i32>} : memref<4x4x8x128xf32, #tpu.memory_space<vmem>>, vector<1x1x8x128xf32>,
    } else {
    }
    %3 = arith.index_cast %arg0 : i32 to index
    %c0 = arith.constant 0 : index
    %c0_1 = arith.constant 0 : index
    %c0_2 = arith.constant 0 : index
    %4 = vector.load %arg19[%3, %c0, %c0_1, %c0_2] : memref<4x4x8x128xf32, #tpu.memory_space<vmem>>, vector<1x4x8x128xf32>
    %5 = vector.shape_cast %4 : vector<1x4x8x128xf32> to vector<4x8x128xf32>
    %cst = arith.constant 0.000000e+00 : f32
    %6 = vector.broadcast %cst : f32 to vector<4x256xf32>
    %7 = vector.extract_strided_slice %5 {offsets = [0, 0, 0], sizes = [4, 1, 128], strides = [1, 1, 1]} : vector<4x8x128xf32> to vector<4x1x128xf32>
    %8 = vector.shape_cast %7 : vector<4x1x128xf32> to vector<4x128xf32>
    %9 = arith.truncf %8 : vector<4x128xf32> to vector<4x128xbf16>
    %c0_3 = arith.constant 0 : index
    %c0_4 = arith.constant 0 : index
    %c0_5 = arith.constant 0 : index
    %10 = vector.load %arg11[%c0_3, %c0_4, %c0_5] : memref<8x128x256xbf16, #tpu.memory_space<vmem>>, vector<1x128x256xbf16>
    %11 = vector.shape_cast %10 : vector<1x128x256xbf16> to vector<128x256xbf16>
    %cst_6 = arith.constant dense<0.000000e+00> : vector<4x256xf32>
    %12 = tpu.matmul %9, %11, %cst_6 {dimension_numbers = #tpu.dot_dimension_numbers<[1], [0], [0], [1], [0, 0, 1, 1], [], []>} : vector<4x128xbf16>, vector<128x256xbf16>, vector<4x256xf32> -> vector<4x256xf32>
    %13 = arith.addf %6, %12 : vector<4x256xf32>
    %14 = vector.extract_strided_slice %5 {offsets = [0, 1, 0], sizes = [4, 1, 128], strides = [1, 1, 1]} : vector<4x8x128xf32> to vector<4x1x128xf32>
    %15 = vector.shape_cast %14 : vector<4x1x128xf32> to vector<4x128xf32>
    %16 = arith.truncf %15 : vector<4x128xf32> to vector<4x128xbf16>
    %c1 = arith.constant 1 : index
    %c0_7 = arith.constant 0 : index
    %c0_8 = arith.constant 0 : index
    %17 = vector.load %arg11[%c1, %c0_7, %c0_8] : memref<8x128x256xbf16, #tpu.memory_space<vmem>>, vector<1x128x256xbf16>
    %18 = vector.shape_cast %17 : vector<1x128x256xbf16> to vector<128x256xbf16>
    %cst_9 = arith.constant dense<0.000000e+00> : vector<4x256xf32>
    %19 = tpu.matmul %16, %18, %cst_9 {dimension_numbers = #tpu.dot_dimension_numbers<[1], [0], [0], [1], [0, 0, 1, 1], [], []>} : vector<4x128xbf16>, vector<128x256xbf16>, vector<4x256xf32> -> vector<4x256xf32>
    %20 = arith.addf %13, %19 : vector<4x256xf32>
    %21 = vector.extract_strided_slice %5 {offsets = [0, 2, 0], sizes = [4, 1, 128], strides = [1, 1, 1]} : vector<4x8x128xf32> to vector<4x1x128xf32>
    %22 = vector.shape_cast %21 : vector<4x1x128xf32> to vector<4x128xf32>
    %23 = arith.truncf %22 : vector<4x128xf32> to vector<4x128xbf16>
    %c2 = arith.constant 2 : index
    %c0_10 = arith.constant 0 : index
    %c0_11 = arith.constant 0 : index
    %24 = vector.load %arg11[%c2, %c0_10, %c0_11] : memref<8x128x256xbf16, #tpu.memory_space<vmem>>, vector<1x128x256xbf16>
    %25 = vector.shape_cast %24 : vector<1x128x256xbf16> to vector<128x256xbf16>
    %cst_12 = arith.constant dense<0.000000e+00> : vector<4x256xf32>
    %26 = tpu.matmul %23, %25, %cst_12 {dimension_numbers = #tpu.dot_dimension_numbers<[1], [0], [0], [1], [0, 0, 1, 1], [], []>} : vector<4x128xbf16>, vector<128x256xbf16>, vector<4x256xf32> -> vector<4x256xf32>
    %27 = arith.addf %20, %26 : vector<4x256xf32>
    %28 = vector.extract_strided_slice %5 {offsets = [0, 3, 0], sizes = [4, 1, 128], strides = [1, 1, 1]} : vector<4x8x128xf32> to vector<4x1x128xf32>
    %29 = vector.shape_cast %28 : vector<4x1x128xf32> to vector<4x128xf32>
    %30 = arith.truncf %29 : vector<4x128xf32> to vector<4x128xbf16>
    %c3 = arith.constant 3 : index
    %c0_13 = arith.constant 0 : index
    %c0_14 = arith.constant 0 : index
    %31 = vector.load %arg11[%c3, %c0_13, %c0_14] : memref<8x128x256xbf16, #tpu.memory_space<vmem>>, vector<1x128x256xbf16>
    %32 = vector.shape_cast %31 : vector<1x128x256xbf16> to vector<128x256xbf16>
    %cst_15 = arith.constant dense<0.000000e+00> : vector<4x256xf32>
    %33 = tpu.matmul %30, %32, %cst_15 {dimension_numbers = #tpu.dot_dimension_numbers<[1], [0], [0], [1], [0, 0, 1, 1], [], []>} : vector<4x128xbf16>, vector<128x256xbf16>, vector<4x256xf32> -> vector<4x256xf32>
    %34 = arith.addf %27, %33 : vector<4x256xf32>
    %35 = vector.extract_strided_slice %5 {offsets = [0, 4, 0], sizes = [4, 1, 128], strides = [1, 1, 1]} : vector<4x8x128xf32> to vector<4x1x128xf32>
    %36 = vector.shape_cast %35 : vector<4x1x128xf32> to vector<4x128xf32>
    %37 = arith.truncf %36 : vector<4x128xf32> to vector<4x128xbf16>
    %c4 = arith.constant 4 : index
    %c0_16 = arith.constant 0 : index
    %c0_17 = arith.constant 0 : index
    %38 = vector.load %arg11[%c4, %c0_16, %c0_17] : memref<8x128x256xbf16, #tpu.memory_space<vmem>>, vector<1x128x256xbf16>
    %39 = vector.shape_cast %38 : vector<1x128x256xbf16> to vector<128x256xbf16>
    %cst_18 = arith.constant dense<0.000000e+00> : vector<4x256xf32>
    %40 = tpu.matmul %37, %39, %cst_18 {dimension_numbers = #tpu.dot_dimension_numbers<[1], [0], [0], [1], [0, 0, 1, 1], [], []>} : vector<4x128xbf16>, vector<128x256xbf16>, vector<4x256xf32> -> vector<4x256xf32>
    %41 = arith.addf %34, %40 : vector<4x256xf32>
    %42 = vector.extract_strided_slice %5 {offsets = [0, 5, 0], sizes = [4, 1, 128], strides = [1, 1, 1]} : vector<4x8x128xf32> to vector<4x1x128xf32>
    %43 = vector.shape_cast %42 : vector<4x1x128xf32> to vector<4x128xf32>
    %44 = arith.truncf %43 : vector<4x128xf32> to vector<4x128xbf16>
    %c5 = arith.constant 5 : index
    %c0_19 = arith.constant 0 : index
    %c0_20 = arith.constant 0 : index
    %45 = vector.load %arg11[%c5, %c0_19, %c0_20] : memref<8x128x256xbf16, #tpu.memory_space<vmem>>, vector<1x128x256xbf16>
    %46 = vector.shape_cast %45 : vector<1x128x256xbf16> to vector<128x256xbf16>
    %cst_21 = arith.constant dense<0.000000e+00> : vector<4x256xf32>
    %47 = tpu.matmul %44, %46, %cst_21 {dimension_numbers = #tpu.dot_dimension_numbers<[1], [0], [0], [1], [0, 0, 1, 1], [], []>} : vector<4x128xbf16>, vector<128x256xbf16>, vector<4x256xf32> -> vector<4x256xf32>
    %48 = arith.addf %41, %47 : vector<4x256xf32>
    %49 = vector.extract_strided_slice %5 {offsets = [0, 6, 0], sizes = [4, 1, 128], strides = [1, 1, 1]} : vector<4x8x128xf32> to vector<4x1x128xf32>
    %50 = vector.shape_cast %49 : vector<4x1x128xf32> to vector<4x128xf32>
    %51 = arith.truncf %50 : vector<4x128xf32> to vector<4x128xbf16>
    %c6 = arith.constant 6 : index
    %c0_22 = arith.constant 0 : index
    %c0_23 = arith.constant 0 : index
    %52 = vector.load %arg11[%c6, %c0_22, %c0_23] : memref<8x128x256xbf16, #tpu.memory_space<vmem>>, vector<1x128x256xbf16>
    %53 = vector.shape_cast %52 : vector<1x128x256xbf16> to vector<128x256xbf16>
    %cst_24 = arith.constant dense<0.000000e+00> : vector<4x256xf32>
    %54 = tpu.matmul %51, %53, %cst_24 {dimension_numbers = #tpu.dot_dimension_numbers<[1], [0], [0], [1], [0, 0, 1, 1], [], []>} : vector<4x128xbf16>, vector<128x256xbf16>, vector<4x256xf32> -> vector<4x256xf32>
    %55 = arith.addf %48, %54 : vector<4x256xf32>
    %56 = vector.extract_strided_slice %5 {offsets = [0, 7, 0], sizes = [4, 1, 128], strides = [1, 1, 1]} : vector<4x8x128xf32> to vector<4x1x128xf32>
    %57 = vector.shape_cast %56 : vector<4x1x128xf32> to vector<4x128xf32>
    %58 = arith.truncf %57 : vector<4x128xf32> to vector<4x128xbf16>
    %c7 = arith.constant 7 : index
    %c0_25 = arith.constant 0 : index
    %c0_26 = arith.constant 0 : index
    %59 = vector.load %arg11[%c7, %c0_25, %c0_26] : memref<8x128x256xbf16, #tpu.memory_space<vmem>>, vector<1x128x256xbf16>
    %60 = vector.shape_cast %59 : vector<1x128x256xbf16> to vector<128x256xbf16>
    %cst_27 = arith.constant dense<0.000000e+00> : vector<4x256xf32>
    %61 = tpu.matmul %58, %60, %cst_27 {dimension_numbers = #tpu.dot_dimension_numbers<[1], [0], [0], [1], [0, 0, 1, 1], [], []>} : vector<4x128xbf16>, vector<128x256xbf16>, vector<4x256xf32> -> vector<4x256xf32>
    %62 = arith.addf %55, %61 : vector<4x256xf32>
    %c0_28 = arith.constant 0 : index
    %c0_29 = arith.constant 0 : index
    %63 = vector.load %arg20[%c0_28, %c0_29] : memref<4x256xf32, #tpu.memory_space<vmem>>, vector<4x256xf32>
    %64 = arith.addf %63, %62 : vector<4x256xf32>
    %c0_30 = arith.constant 0 : index
    %c0_31 = arith.constant 0 : index
    %65 = vector.load %arg20[%c0_30, %c0_31] : memref<4x256xf32, #tpu.memory_space<vmem>>, vector<4x256xf32>
    tpu.vector_store %arg20[%c0_30, %c0_31], %64 {strides = array<i32>} : memref<4x256xf32, #tpu.memory_space<vmem>>, vector<4x256xf32>,
    %c3_i32 = arith.constant 3 : i32
    %66 = arith.cmpi eq, %arg0, %c3_i32 : i32
    %67 = arith.extui %66 : i1 to i32
    %c0_i32_32 = arith.constant 0 : i32
    %68 = arith.cmpi ne, %67, %c0_i32_32 : i32
    scf.if %68 {
      %c0_33 = arith.constant 0 : index
      %c0_34 = arith.constant 0 : index
      %69 = vector.load %arg20[%c0_33, %c0_34] : memref<4x256xf32, #tpu.memory_space<vmem>>, vector<4x256xf32>
      %c0_35 = arith.constant 0 : index
      %c0_36 = arith.constant 0 : index
      %70 = vector.load %arg12[%c0_35, %c0_36] : memref<1x256xf32, #tpu.memory_space<vmem>>, vector<1x256xf32>
      %71 = vector.broadcast %70 : vector<1x256xf32> to vector<4x256xf32>
      %72 = arith.addf %69, %71 : vector<4x256xf32>
      %cst_37 = arith.constant 0.000000e+00 : f32
      %73 = vector.broadcast %cst_37 : f32 to vector<4x256xf32>
      %74 = arith.maximumf %72, %73 : vector<4x256xf32>
      %c0_38 = arith.constant 0 : index
      %c0_39 = arith.constant 0 : index
      %75 = vector.load %arg13[%c0_38, %c0_39] : memref<256x128xf32, #tpu.memory_space<vmem>>, vector<256x128xf32>
      %cst_40 = arith.constant dense<0.000000e+00> : vector<4x128xf32>
      %76 = tpu.matmul %74, %75, %cst_40 {dimension_numbers = #tpu.dot_dimension_numbers<[1], [0], [0], [1], [0, 0, 1, 1], [], []>} : vector<4x256xf32>, vector<256x128xf32>, vector<4x128xf32> -> vector<4x128xf32>
      %c0_41 = arith.constant 0 : index
      %c0_42 = arith.constant 0 : index
      %77 = vector.load %arg4[%c0_41, %c0_42] : memref<4x16xf32, #tpu.memory_space<vmem>>, vector<4x16xf32>
      %c0_43 = arith.constant 0 : index
      %c0_44 = arith.constant 0 : index
      %78 = vector.load %arg14[%c0_43, %c0_44] : memref<16x128xf32, #tpu.memory_space<vmem>>, vector<16x128xf32>
      %cst_45 = arith.constant dense<0.000000e+00> : vector<4x128xf32>
      %79 = tpu.matmul %77, %78, %cst_45 {dimension_numbers = #tpu.dot_dimension_numbers<[1], [0], [0], [1], [0, 0, 1, 1], [], []>} : vector<4x16xf32>, vector<16x128xf32>, vector<4x128xf32> -> vector<4x128xf32>
      %80 = arith.addf %76, %79 : vector<4x128xf32>
      %c0_46 = arith.constant 0 : index
      %c0_47 = arith.constant 0 : index
      %81 = vector.load %arg15[%c0_46, %c0_47] : memref<1x128xf32, #tpu.memory_space<vmem>>, vector<1x128xf32>
      %82 = vector.broadcast %81 : vector<1x128xf32> to vector<4x128xf32>
      %83 = arith.addf %80, %82 : vector<4x128xf32>
      %cst_48 = arith.constant 0.000000e+00 : f32
      %84 = vector.broadcast %cst_48 : f32 to vector<4x128xf32>
      %85 = arith.maximumf %83, %84 : vector<4x128xf32>
      %c0_49 = arith.constant 0 : index
      %c0_50 = arith.constant 0 : index
      %86 = vector.load %arg16[%c0_49, %c0_50] : memref<128x1xf32, #tpu.memory_space<vmem>>, vector<128x1xf32>
      %cst_51 = arith.constant dense<0.000000e+00> : vector<4x1xf32>
      %87 = tpu.matmul %85, %86, %cst_51 {dimension_numbers = #tpu.dot_dimension_numbers<[1], [0], [0], [1], [0, 0, 1, 1], [], []>} : vector<4x128xf32>, vector<128x1xf32>, vector<4x1xf32> -> vector<4x1xf32>
      %c0_52 = arith.constant 0 : index
      %c0_53 = arith.constant 0 : index
      %88 = vector.load %arg17[%c0_52, %c0_53] : memref<1x1xf32, #tpu.memory_space<vmem>>, vector<1x1xf32>
      %89 = vector.broadcast %88 : vector<1x1xf32> to vector<4x1xf32>
      %90 = arith.addf %87, %89 : vector<4x1xf32>
      %c0_54 = arith.constant 0 : index
      %c0_55 = arith.constant 0 : index
      %91 = vector.load %arg18[%c0_54, %c0_55] : memref<4x1xf32, #tpu.memory_space<vmem>>, vector<4x1xf32>
      tpu.vector_store %arg18[%c0_54, %c0_55], %90 {strides = array<i32>} : memref<4x1xf32, #tpu.memory_space<vmem>>, vector<4x1xf32>,
    } else {
    }
    return
  }
  func.func @transform_0(%arg0: i32) -> (i32, i32) {
    %c0_i32 = arith.constant 0 : i32
    %c0_i32_0 = arith.constant 0 : i32
    %c0_i32_1 = arith.constant 0 : i32
    return %c0_i32, %c0_i32_0 : i32, i32
  }
  func.func @transform_1(%arg0: i32) -> (i32, i32) {
    %c0_i32 = arith.constant 0 : i32
    %c0_i32_0 = arith.constant 0 : i32
    %c0_i32_1 = arith.constant 0 : i32
    return %c0_i32, %c0_i32_0 : i32, i32
  }
  func.func @transform_2(%arg0: i32) -> (i32, i32) {
    %c0_i32 = arith.constant 0 : i32
    %c0_i32_0 = arith.constant 0 : i32
    %c0_i32_1 = arith.constant 0 : i32
    return %c0_i32, %c0_i32_0 : i32, i32
  }
  func.func @transform_3(%arg0: i32) -> (i32, i32) {
    %c0_i32 = arith.constant 0 : i32
    %c0_i32_0 = arith.constant 0 : i32
    %c0_i32_1 = arith.constant 0 : i32
    return %c0_i32, %c0_i32_0 : i32, i32
  }
  func.func @transform_4(%arg0: i32) -> (i32, i32) {
    %c0_i32 = arith.constant 0 : i32
    %c0_i32_0 = arith.constant 0 : i32
    %c0_i32_1 = arith.constant 0 : i32
    return %c0_i32, %c0_i32_0 : i32, i32
  }
  func.func @transform_5(%arg0: i32) -> (i32, i32) {
    %c0_i32 = arith.constant 0 : i32
    %c0_i32_0 = arith.constant 0 : i32
    %c0_i32_1 = arith.constant 0 : i32
    return %c0_i32, %c0_i32_0 : i32, i32
  }
  func.func @transform_6(%arg0: i32) -> (i32, i32) {
    %c0_i32 = arith.constant 0 : i32
    %c0_i32_0 = arith.constant 0 : i32
    %c0_i32_1 = arith.constant 0 : i32
    return %c0_i32, %c0_i32_0 : i32, i32
  }
  func.func @transform_7(%arg0: i32) -> (i32, i32) {
    %c0_i32 = arith.constant 0 : i32
    %c0_i32_0 = arith.constant 0 : i32
    %c0_i32_1 = arith.constant 0 : i32
    return %c0_i32, %c0_i32_0 : i32, i32
  }
  func.func @transform_8(%arg0: i32) -> (i32, i32) {
    %c0_i32 = arith.constant 0 : i32
    %c0_i32_0 = arith.constant 0 : i32
    %c0_i32_1 = arith.constant 0 : i32
    return %c0_i32, %c0_i32_0 : i32, i32
  }
  func.func @transform_9(%arg0: i32) -> (i32, i32) {
    %c0_i32 = arith.constant 0 : i32
    %c0_i32_0 = arith.constant 0 : i32
    %c0_i32_1 = arith.constant 0 : i32
    return %c0_i32, %c0_i32_0 : i32, i32
  }
  func.func @transform_10(%arg0: i32) -> (i32, i32, i32) {
    %c0_i32 = arith.constant 0 : i32
    %c0_i32_0 = arith.constant 0 : i32
    %c0_i32_1 = arith.constant 0 : i32
    return %arg0, %c0_i32, %c0_i32_0 : i32, i32, i32
  }
  func.func @transform_11(%arg0: i32) -> (i32, i32) {
    %c0_i32 = arith.constant 0 : i32
    %c0_i32_0 = arith.constant 0 : i32
    %c0_i32_1 = arith.constant 0 : i32
    return %c0_i32, %c0_i32_0 : i32, i32
  }
  func.func @transform_12(%arg0: i32) -> (i32, i32) {
    %c0_i32 = arith.constant 0 : i32
    %c0_i32_0 = arith.constant 0 : i32
    %c0_i32_1 = arith.constant 0 : i32
    return %c0_i32, %c0_i32_0 : i32, i32
  }
  func.func @transform_13(%arg0: i32) -> (i32, i32) {
    %c0_i32 = arith.constant 0 : i32
    %c0_i32_0 = arith.constant 0 : i32
    %c0_i32_1 = arith.constant 0 : i32
    return %c0_i32, %c0_i32_0 : i32, i32
  }
  func.func @transform_14(%arg0: i32) -> (i32, i32) {
    %c0_i32 = arith.constant 0 : i32
    %c0_i32_0 = arith.constant 0 : i32
    %c0_i32_1 = arith.constant 0 : i32
    return %c0_i32, %c0_i32_0 : i32, i32
  }
  func.func @transform_15(%arg0: i32) -> (i32, i32) {
    %c0_i32 = arith.constant 0 : i32
    %c0_i32_0 = arith.constant 0 : i32
    %c0_i32_1 = arith.constant 0 : i32
    return %c0_i32, %c0_i32_0 : i32, i32
  }
  func.func @transform_16(%arg0: i32) -> (i32, i32) {
    %c0_i32 = arith.constant 0 : i32
    %c0_i32_0 = arith.constant 0 : i32
    %c0_i32_1 = arith.constant 0 : i32
    return %c0_i32, %c0_i32_0 : i32, i32
  }
  func.func @transform_17(%arg0: i32) -> (i32, i32) {
    %c0_i32 = arith.constant 0 : i32
    %c0_i32_0 = arith.constant 0 : i32
    %c0_i32_1 = arith.constant 0 : i32
    return %c0_i32, %c0_i32_0 : i32, i32
  }
}

</mosaic_0001>

<llo_original>
// kernel: high_level_conv_qf_forward.1
$region0: #{high_level_conv_qf_forward.1}
  #allocation0 [shape = 'u32[]', space=smem, size = 0x4, offset = 0x4, fixed_abs, tag = 'smem constant byte address 0x4 - core index']
  #allocation1 [shape = 'u32[144,128]{1,0:T(1,128)}', space=vmem, size = 0x12000, scoped, tag = 'internal scratch']
  #allocation2 [shape = 'f32[4,4,8,128]{3,2,1,0:T(8,128)}', space=vmem, size = 0x10000, scoped, tag = 'scratch operand']
  #allocation3 [shape = 'f32[4,256]{1,0:T(4,128)}', space=vmem, size = 0x1000, scoped, tag = 'scratch operand']
  #allocation4 [shape = 'f32[1,1]{1,0:T(1,128)S(1)}', space=vmem, size = 0x200, scoped, tag = 'scoped memory for high_level_conv_qf_forward.1']
  %s0 = inlined_call_operand.vmem [shape: f32[16,512], index: 0, kind: input, shape index: {}]
  %s1 = inlined_call_operand.vmem [shape: f32[16,512], index: 1, kind: input, shape index: {}]
  %s2 = inlined_call_operand.vmem [shape: f32[16,512], index: 2, kind: input, shape index: {}]
  %s3 = inlined_call_operand.vmem [shape: f32[4,16], index: 3, kind: input, shape index: {}]
  %s4 = inlined_call_operand.vmem [shape: f32[32,16], index: 4, kind: input, shape index: {}]
  %s5 = inlined_call_operand.vmem [shape: f32[32,1], index: 5, kind: input, shape index: {}]
  %s6 = inlined_call_operand.vmem [shape: f32[32,32], index: 6, kind: input, shape index: {}]
  %s7 = inlined_call_operand.vmem [shape: f32[32,32], index: 7, kind: input, shape index: {}]
  %s8 = inlined_call_operand.vmem [shape: f32[32,32], index: 8, kind: input, shape index: {}]
  %s9 = inlined_call_operand.vmem [shape: f32[32,1], index: 9, kind: input, shape index: {}]
  %s10 = inlined_call_operand.vmem [shape: bf16[32,128,256], index: 10, kind: input, shape index: {}]
  %s11 = inlined_call_operand.vmem [shape: f32[1,256], index: 11, kind: input, shape index: {}]
  %s12 = inlined_call_operand.vmem [shape: f32[256,128], index: 12, kind: input, shape index: {}]
  %s13 = inlined_call_operand.vmem [shape: f32[16,128], index: 13, kind: input, shape index: {}]
  %s14 = inlined_call_operand.vmem [shape: f32[1,128], index: 14, kind: input, shape index: {}]
  %s15 = inlined_call_operand.vmem [shape: f32[128,1], index: 15, kind: input, shape index: {}]
  %s16 = inlined_call_operand.<no memory space> [shape: f32[1,1], index: 16, kind: input, shape index: {}]
  %s17 = inlined_call_operand.vmem [shape: f32[4,1], index: 17, kind: output, shape index: {}]
  %s18 = sld [smem:[#allocation0]]
  $region109: #{high_level_conv_qf_forward.1} parent=0
    _
  %s20 = ssub.s32 1, %s18
  %s21 = scalar_select 0, %s20, %s18
  %v22 = vstv %s16
  %23 = vst [vmem:[#allocation4] sm:$0x1] %v22
  loop: start=0, step=1, limit=6
  $region2: #{high_level_conv_qf_forward.1} parent=0 // loop_pre_header
    _
  $region3: #{high_level_conv_qf_forward.1} parent=0 // loop_header
    %s25 = sphi 0, %s29
    %p26 = scmp.ge.s32.totalorder %s25, 6
    %s33 = sphi 0, %s33
    %s35 = sphi 0, %s33
    %s36 = sphi 0, %s35
    %s50 = sphi 0, %s36
    %s54 = sphi 0, %s54
    %s56 = sphi 0, %s54
    %s57 = sphi 0, %s56
    %s71 = sphi 0, %s57
    %s75 = sphi 0, %s75
    %s77 = sphi 0, %s75
    %s78 = sphi 0, %s77
    %s92 = sphi 0, %s78
    %s96 = sphi 0, %s96
    %s98 = sphi 0, %s96
    %s99 = sphi 0, %s98
    %s113 = sphi 0, %s99
    %s117 = sphi 0, %s117
    %s119 = sphi 0, %s117
    %s120 = sphi 0, %s119
    %s134 = sphi 0, %s120
    %s138 = sphi 0, %s138
    %s140 = sphi 0, %s138
    %s141 = sphi 0, %s140
    %s155 = sphi 0, %s141
    %s159 = sphi 0, %s159
    %s161 = sphi 0, %s159
    %s162 = sphi 0, %s161
    %s176 = sphi 0, %s162
    %s180 = sphi 0, %s180
    %s182 = sphi 0, %s180
    %s183 = sphi 0, %s182
    %s197 = sphi 0, %s183
    %s201 = sphi 0, %s201
    %s203 = sphi 0, %s201
    %s204 = sphi 0, %s203
    %s218 = sphi 0, %s204
    %s222 = sphi 0, %s222
    %s224 = sphi 0, %s222
    %s225 = sphi 0, %s224
    %s239 = sphi 0, %s225
    %s245 = sphi 0, %s247
    %s248 = sphi 0, %s245
    %s249 = sphi 0, %s248
    %s265 = sphi 0, %s249
    %s269 = sphi 0, %s269
    %s271 = sphi 0, %s269
    %s272 = sphi 0, %s271
    %s286 = sphi 0, %s272
    %s290 = sphi 0, %s290
    %s292 = sphi 0, %s290
    %s293 = sphi 0, %s292
    %s307 = sphi 0, %s293
    %s311 = sphi 0, %s311
    %s313 = sphi 0, %s311
    %s314 = sphi 0, %s313
    %s328 = sphi 0, %s314
    %s332 = sphi 0, %s332
    %s334 = sphi 0, %s332
    %s335 = sphi 0, %s334
    %s349 = sphi 0, %s335
    %s353 = sphi 0, %s353
    %s355 = sphi 0, %s353
    %s356 = sphi 0, %s355
    %s370 = sphi 0, %s356
    %s374 = sphi 0, %s374
    %s376 = sphi 0, %s374
    %s377 = sphi 0, %s376
    %s391 = sphi 0, %s377
    %s395 = sphi 0, %s395
    %s397 = sphi 0, %s395
    %s398 = sphi 0, %s397
    %s412 = sphi 0, %s398
  $region4: #{high_level_conv_qf_forward.1} parent=0 // loop_header_branch
    %28 = sbr.rel (%p26) target = $region8
  $region5: #{high_level_conv_qf_forward.1} parent=0 // loop_body
    %s30 = ssub.s32 %s25, 1
    %s31 = ssub.s32 %s25, 2
    %s32 = sadd.s32 %s25, 1
    %s34 = sadd.s32 %s33, 1
    %p37 = scmp.eq.s32.totalorder %s25, 3
    %p38 = scmp.ne.s32.totalorder %s33, %s35
    %p39 = scmp.eq.s32.totalorder %s25, 0
    %p40 = por %p38, %p39
    %p41 = scmp.ne.s32.totalorder %s33, %s35
    %p42 = scmp.eq.s32.totalorder %s30, 3
    %p43 = por %p41, %p42
    %p44 = scmp.ne.s32.totalorder %s35, %s36
    %p45 = scmp.eq.s32.totalorder %s30, 0
    %p46 = por %p44, %p45
    %p47 = scmp.ne.s32.totalorder %s35, %s36
    %p48 = scmp.eq.s32.totalorder %s31, 3
    %p49 = por %p47, %p48
    %p51 = scmp.ne.s32.totalorder %s36, %s50
    %p52 = scmp.eq.s32.totalorder %s31, 0
    %p53 = por %p51, %p52
    %s55 = sadd.s32 %s54, 1
    %p58 = scmp.eq.s32.totalorder %s25, 3
    %p59 = scmp.ne.s32.totalorder %s54, %s56
    %p60 = scmp.eq.s32.totalorder %s25, 0
    %p61 = por %p59, %p60
    %p62 = scmp.ne.s32.totalorder %s54, %s56
    %p63 = scmp.eq.s32.totalorder %s30, 3
    %p64 = por %p62, %p63
    %p65 = scmp.ne.s32.totalorder %s56, %s57
    %p66 = scmp.eq.s32.totalorder %s30, 0
    %p67 = por %p65, %p66
    %p68 = scmp.ne.s32.totalorder %s56, %s57
    %p69 = scmp.eq.s32.totalorder %s31, 3
    %p70 = por %p68, %p69
    %p72 = scmp.ne.s32.totalorder %s57, %s71
    %p73 = scmp.eq.s32.totalorder %s31, 0
    %p74 = por %p72, %p73
    %s76 = sadd.s32 %s75, 1
    %p79 = scmp.eq.s32.totalorder %s25, 3
    %p80 = scmp.ne.s32.totalorder %s75, %s77
    %p81 = scmp.eq.s32.totalorder %s25, 0
    %p82 = por %p80, %p81
    %p83 = scmp.ne.s32.totalorder %s75, %s77
    %p84 = scmp.eq.s32.totalorder %s30, 3
    %p85 = por %p83, %p84
    %p86 = scmp.ne.s32.totalorder %s77, %s78
    %p87 = scmp.eq.s32.totalorder %s30, 0
    %p88 = por %p86, %p87
    %p89 = scmp.ne.s32.totalorder %s77, %s78
    %p90 = scmp.eq.s32.totalorder %s31, 3
    %p91 = por %p89, %p90
    %p93 = scmp.ne.s32.totalorder %s78, %s92
    %p94 = scmp.eq.s32.totalorder %s31, 0
    %p95 = por %p93, %p94
    %s97 = sadd.s32 %s96, 1
    %p100 = scmp.eq.s32.totalorder %s25, 3
    %p101 = scmp.ne.s32.totalorder %s96, %s98
    %p102 = scmp.eq.s32.totalorder %s25, 0
    %p103 = por %p101, %p102
    %p104 = scmp.ne.s32.totalorder %s96, %s98
    %p105 = scmp.eq.s32.totalorder %s30, 3
    %p106 = por %p104, %p105
    %p107 = scmp.ne.s32.totalorder %s98, %s99
    %p108 = scmp.eq.s32.totalorder %s30, 0
    %p109 = por %p107, %p108
    %p110 = scmp.ne.s32.totalorder %s98, %s99
    %p111 = scmp.eq.s32.totalorder %s31, 3
    %p112 = por %p110, %p111
    %p114 = scmp.ne.s32.totalorder %s99, %s113
    %p115 = scmp.eq.s32.totalorder %s31, 0
    %p116 = por %p114, %p115
    %s118 = sadd.s32 %s117, 1
    %p121 = scmp.eq.s32.totalorder %s25, 3
    %p122 = scmp.ne.s32.totalorder %s117, %s119
    %p123 = scmp.eq.s32.totalorder %s25, 0
    %p124 = por %p122, %p123
    %p125 = scmp.ne.s32.totalorder %s117, %s119
    %p126 = scmp.eq.s32.totalorder %s30, 3
    %p127 = por %p125, %p126
    %p128 = scmp.ne.s32.totalorder %s119, %s120
    %p129 = scmp.eq.s32.totalorder %s30, 0
    %p130 = por %p128, %p129
    %p131 = scmp.ne.s32.totalorder %s119, %s120
    %p132 = scmp.eq.s32.totalorder %s31, 3
    %p133 = por %p131, %p132
    %p135 = scmp.ne.s32.totalorder %s120, %s134
    %p136 = scmp.eq.s32.totalorder %s31, 0
    %p137 = por %p135, %p136
    %s139 = sadd.s32 %s138, 1
    %p142 = scmp.eq.s32.totalorder %s25, 3
    %p143 = scmp.ne.s32.totalorder %s138, %s140
    %p144 = scmp.eq.s32.totalorder %s25, 0
    %p145 = por %p143, %p144
    %p146 = scmp.ne.s32.totalorder %s138, %s140
    %p147 = scmp.eq.s32.totalorder %s30, 3
    %p148 = por %p146, %p147
    %p149 = scmp.ne.s32.totalorder %s140, %s141
    %p150 = scmp.eq.s32.totalorder %s30, 0
    %p151 = por %p149, %p150
    %p152 = scmp.ne.s32.totalorder %s140, %s141
    %p153 = scmp.eq.s32.totalorder %s31, 3
    %p154 = por %p152, %p153
    %p156 = scmp.ne.s32.totalorder %s141, %s155
    %p157 = scmp.eq.s32.totalorder %s31, 0
    %p158 = por %p156, %p157
    %s160 = sadd.s32 %s159, 1
    %p163 = scmp.eq.s32.totalorder %s25, 3
    %p164 = scmp.ne.s32.totalorder %s159, %s161
    %p165 = scmp.eq.s32.totalorder %s25, 0
    %p166 = por %p164, %p165
    %p167 = scmp.ne.s32.totalorder %s159, %s161
    %p168 = scmp.eq.s32.totalorder %s30, 3
    %p169 = por %p167, %p168
    %p170 = scmp.ne.s32.totalorder %s161, %s162
    %p171 = scmp.eq.s32.totalorder %s30, 0
    %p172 = por %p170, %p171
    %p173 = scmp.ne.s32.totalorder %s161, %s162
    %p174 = scmp.eq.s32.totalorder %s31, 3
    %p175 = por %p173, %p174
    %p177 = scmp.ne.s32.totalorder %s162, %s176
    %p178 = scmp.eq.s32.totalorder %s31, 0
    %p179 = por %p177, %p178
    %s181 = sadd.s32 %s180, 1
    %p184 = scmp.eq.s32.totalorder %s25, 3
    %p185 = scmp.ne.s32.totalorder %s180, %s182
    %p186 = scmp.eq.s32.totalorder %s25, 0
    %p187 = por %p185, %p186
    %p188 = scmp.ne.s32.totalorder %s180, %s182
    %p189 = scmp.eq.s32.totalorder %s30, 3
    %p190 = por %p188, %p189
    %p191 = scmp.ne.s32.totalorder %s182, %s183
    %p192 = scmp.eq.s32.totalorder %s30, 0
    %p193 = por %p191, %p192
    %p194 = scmp.ne.s32.totalorder %s182, %s183
    %p195 = scmp.eq.s32.totalorder %s31, 3
    %p196 = por %p194, %p195
    %p198 = scmp.ne.s32.totalorder %s183, %s197
    %p199 = scmp.eq.s32.totalorder %s31, 0
    %p200 = por %p198, %p199
    %s202 = sadd.s32 %s201, 1
    %p205 = scmp.eq.s32.totalorder %s25, 3
    %p206 = scmp.ne.s32.totalorder %s201, %s203
    %p207 = scmp.eq.s32.totalorder %s25, 0
    %p208 = por %p206, %p207
    %p209 = scmp.ne.s32.totalorder %s201, %s203
    %p210 = scmp.eq.s32.totalorder %s30, 3
    %p211 = por %p209, %p210
    %p212 = scmp.ne.s32.totalorder %s203, %s204
    %p213 = scmp.eq.s32.totalorder %s30, 0
    %p214 = por %p212, %p213
    %p215 = scmp.ne.s32.totalorder %s203, %s204
    %p216 = scmp.eq.s32.totalorder %s31, 3
    %p217 = por %p215, %p216
    %p219 = scmp.ne.s32.totalorder %s204, %s218
    %p220 = scmp.eq.s32.totalorder %s31, 0
    %p221 = por %p219, %p220
    %s223 = sadd.s32 %s222, 1
    %p226 = scmp.eq.s32.totalorder %s25, 3
    %p227 = scmp.ne.s32.totalorder %s222, %s224
    %p228 = scmp.eq.s32.totalorder %s25, 0
    %p229 = por %p227, %p228
    %p230 = scmp.ne.s32.totalorder %s222, %s224
    %p231 = scmp.eq.s32.totalorder %s30, 3
    %p232 = por %p230, %p231
    %p233 = scmp.ne.s32.totalorder %s224, %s225
    %p234 = scmp.eq.s32.totalorder %s30, 0
    %p235 = por %p233, %p234
    %p236 = scmp.ne.s32.totalorder %s224, %s225
    %p237 = scmp.eq.s32.totalorder %s31, 3
    %p238 = por %p236, %p237
    %p240 = scmp.ne.s32.totalorder %s225, %s239
    %p241 = scmp.eq.s32.totalorder %s31, 0
    %p242 = por %p240, %p241
    %s243 = ssub.s32 %s25, %s32
    %p244 = scmp.eq.s32.totalorder %s243, 0
    %s246 = sadd.s32 %s245, 1
    %s247 = scalar_select %p244, %s245, %s246
    %p250 = pneg %p244
    %p251 = scmp.eq.s32.totalorder %s25, 3
    %p252 = por %p250, %p251
    %p253 = scmp.ne.s32.totalorder %s245, %s248
    %p254 = scmp.eq.s32.totalorder %s25, 0
    %p255 = por %p253, %p254
    %p256 = scmp.ne.s32.totalorder %s245, %s248
    %p257 = scmp.eq.s32.totalorder %s30, 3
    %p258 = por %p256, %p257
    %p259 = scmp.ne.s32.totalorder %s248, %s249
    %p260 = scmp.eq.s32.totalorder %s30, 0
    %p261 = por %p259, %p260
    %p262 = scmp.ne.s32.totalorder %s248, %s249
    %p263 = scmp.eq.s32.totalorder %s31, 3
    %p264 = por %p262, %p263
    %p266 = scmp.ne.s32.totalorder %s249, %s265
    %p267 = scmp.eq.s32.totalorder %s31, 0
    %p268 = por %p266, %p267
    %s270 = sadd.s32 %s269, 1
    %p273 = scmp.eq.s32.totalorder %s25, 3
    %p274 = scmp.ne.s32.totalorder %s269, %s271
    %p275 = scmp.eq.s32.totalorder %s25, 0
    %p276 = por %p274, %p275
    %p277 = scmp.ne.s32.totalorder %s269, %s271
    %p278 = scmp.eq.s32.totalorder %s30, 3
    %p279 = por %p277, %p278
    %p280 = scmp.ne.s32.totalorder %s271, %s272
    %p281 = scmp.eq.s32.totalorder %s30, 0
    %p282 = por %p280, %p281
    %p283 = scmp.ne.s32.totalorder %s271, %s272
    %p284 = scmp.eq.s32.totalorder %s31, 3
    %p285 = por %p283, %p284
    %p287 = scmp.ne.s32.totalorder %s272, %s286
    %p288 = scmp.eq.s32.totalorder %s31, 0
    %p289 = por %p287, %p288
    %s291 = sadd.s32 %s290, 1
    %p294 = scmp.eq.s32.totalorder %s25, 3
    %p295 = scmp.ne.s32.totalorder %s290, %s292
    %p296 = scmp.eq.s32.totalorder %s25, 0
    %p297 = por %p295, %p296
    %p298 = scmp.ne.s32.totalorder %s290, %s292
    %p299 = scmp.eq.s32.totalorder %s30, 3
    %p300 = por %p298, %p299
    %p301 = scmp.ne.s32.totalorder %s292, %s293
    %p302 = scmp.eq.s32.totalorder %s30, 0
    %p303 = por %p301, %p302
    %p304 = scmp.ne.s32.totalorder %s292, %s293
    %p305 = scmp.eq.s32.totalorder %s31, 3
    %p306 = por %p304, %p305
    %p308 = scmp.ne.s32.totalorder %s293, %s307
    %p309 = scmp.eq.s32.totalorder %s31, 0
    %p310 = por %p308, %p309
    %s312 = sadd.s32 %s311, 1
    %p315 = scmp.eq.s32.totalorder %s25, 3
    %p316 = scmp.ne.s32.totalorder %s311, %s313
    %p317 = scmp.eq.s32.totalorder %s25, 0
    %p318 = por %p316, %p317
    %p319 = scmp.ne.s32.totalorder %s311, %s313
    %p320 = scmp.eq.s32.totalorder %s30, 3
    %p321 = por %p319, %p320
    %p322 = scmp.ne.s32.totalorder %s313, %s314
    %p323 = scmp.eq.s32.totalorder %s30, 0
    %p324 = por %p322, %p323
    %p325 = scmp.ne.s32.totalorder %s313, %s314
    %p326 = scmp.eq.s32.totalorder %s31, 3
    %p327 = por %p325, %p326
    %p329 = scmp.ne.s32.totalorder %s314, %s328
    %p330 = scmp.eq.s32.totalorder %s31, 0
    %p331 = por %p329, %p330
    %s333 = sadd.s32 %s332, 1
    %p336 = scmp.eq.s32.totalorder %s25, 3
    %p337 = scmp.ne.s32.totalorder %s332, %s334
    %p338 = scmp.eq.s32.totalorder %s25, 0
    %p339 = por %p337, %p338
    %p340 = scmp.ne.s32.totalorder %s332, %s334
    %p341 = scmp.eq.s32.totalorder %s30, 3
    %p342 = por %p340, %p341
    %p343 = scmp.ne.s32.totalorder %s334, %s335
    %p344 = scmp.eq.s32.totalorder %s30, 0
    %p345 = por %p343, %p344
    %p346 = scmp.ne.s32.totalorder %s334, %s335
    %p347 = scmp.eq.s32.totalorder %s31, 3
    %p348 = por %p346, %p347
    %p350 = scmp.ne.s32.totalorder %s335, %s349
    %p351 = scmp.eq.s32.totalorder %s31, 0
    %p352 = por %p350, %p351
    %s354 = sadd.s32 %s353, 1
    %p357 = scmp.eq.s32.totalorder %s25, 3
    %p358 = scmp.ne.s32.totalorder %s353, %s355
    %p359 = scmp.eq.s32.totalorder %s25, 0
    %p360 = por %p358, %p359
    %p361 = scmp.ne.s32.totalorder %s353, %s355
    %p362 = scmp.eq.s32.totalorder %s30, 3
    %p363 = por %p361, %p362
    %p364 = scmp.ne.s32.totalorder %s355, %s356
    %p365 = scmp.eq.s32.totalorder %s30, 0
    %p366 = por %p364, %p365
    %p367 = scmp.ne.s32.totalorder %s355, %s356
    %p368 = scmp.eq.s32.totalorder %s31, 3
    %p369 = por %p367, %p368
    %p371 = scmp.ne.s32.totalorder %s356, %s370
    %p372 = scmp.eq.s32.totalorder %s31, 0
    %p373 = por %p371, %p372
    %s375 = sadd.s32 %s374, 1
    %p378 = scmp.eq.s32.totalorder %s25, 3
    %p379 = scmp.ne.s32.totalorder %s374, %s376
    %p380 = scmp.eq.s32.totalorder %s25, 0
    %p381 = por %p379, %p380
    %p382 = scmp.ne.s32.totalorder %s374, %s376
    %p383 = scmp.eq.s32.totalorder %s30, 3
    %p384 = por %p382, %p383
    %p385 = scmp.ne.s32.totalorder %s376, %s377
    %p386 = scmp.eq.s32.totalorder %s30, 0
    %p387 = por %p385, %p386
    %p388 = scmp.ne.s32.totalorder %s376, %s377
    %p389 = scmp.eq.s32.totalorder %s31, 3
    %p390 = por %p388, %p389
    %p392 = scmp.ne.s32.totalorder %s377, %s391
    %p393 = scmp.eq.s32.totalorder %s31, 0
    %p394 = por %p392, %p393
    %s396 = sadd.s32 %s395, 1
    %p399 = scmp.eq.s32.totalorder %s25, 3
    %p400 = scmp.ne.s32.totalorder %s395, %s397
    %p401 = scmp.eq.s32.totalorder %s25, 0
    %p402 = por %p400, %p401
    %p403 = scmp.ne.s32.totalorder %s395, %s397
    %p404 = scmp.eq.s32.totalorder %s30, 3
    %p405 = por %p403, %p404
    %p406 = scmp.ne.s32.totalorder %s397, %s398
    %p407 = scmp.eq.s32.totalorder %s30, 0
    %p408 = por %p406, %p407
    %p409 = scmp.ne.s32.totalorder %s397, %s398
    %p410 = scmp.eq.s32.totalorder %s31, 3
    %p411 = por %p409, %p410
    %p413 = scmp.ne.s32.totalorder %s398, %s412
    %p414 = scmp.eq.s32.totalorder %s31, 0
    %p415 = por %p413, %p414
    %p416 = scmp.le.s32.totalorder 1, %s25
    %p417 = scmp.lt.s32.totalorder %s25, 5
    %p418 = pnand %p416, %p417
    %p419 = pneg %p418
    // Predicated region
    $region9: #{high_level_conv_qf_forward.1} parent=5 // pred_check
      _
    $region10: #{high_level_conv_qf_forward.1} parent=5 // pred_check_branch
      %421 = sbr.rel (%p418) target = $region12
    $region11: #{high_level_conv_qf_forward.1} parent=5 // pred_region
      %s422 = ssub.s32 %s25, 1
      // Predicated region
      $region13: #{high_level_conv_qf_forward.1} parent=11 // pred_check
        %p423 = pneg %p46
      $region14: #{high_level_conv_qf_forward.1} parent=11 // pred_check_branch
        %425 = sbr.rel (%p423) target = $region16
      $region15: #{high_level_conv_qf_forward.1} parent=11 // pred_region
        _
      $region16: #{high_level_conv_qf_forward.1} parent=11 // pred_fallthru
        _
      // Predicated region
      $region17: #{high_level_conv_qf_forward.1} parent=11 // pred_check
        %p426 = pneg %p67
      $region18: #{high_level_conv_qf_forward.1} parent=11 // pred_check_branch
        %428 = sbr.rel (%p426) target = $region20
      $region19: #{high_level_conv_qf_forward.1} parent=11 // pred_region
        _
      $region20: #{high_level_conv_qf_forward.1} parent=11 // pred_fallthru
        _
      // Predicated region
      $region21: #{high_level_conv_qf_forward.1} parent=11 // pred_check
        %p429 = pneg %p88
      $region22: #{high_level_conv_qf_forward.1} parent=11 // pred_check_branch
        %431 = sbr.rel (%p429) target = $region24
      $region23: #{high_level_conv_qf_forward.1} parent=11 // pred_region
        _
      $region24: #{high_level_conv_qf_forward.1} parent=11 // pred_fallthru
        _
      // Predicated region
      $region25: #{high_level_conv_qf_forward.1} parent=11 // pred_check
        %p432 = pneg %p109
      $region26: #{high_level_conv_qf_forward.1} parent=11 // pred_check_branch
        %434 = sbr.rel (%p432) target = $region28
      $region27: #{high_level_conv_qf_forward.1} parent=11 // pred_region
        _
      $region28: #{high_level_conv_qf_forward.1} parent=11 // pred_fallthru
        _
      // Predicated region
      $region29: #{high_level_conv_qf_forward.1} parent=11 // pred_check
        %p435 = pneg %p130
      $region30: #{high_level_conv_qf_forward.1} parent=11 // pred_check_branch
        %437 = sbr.rel (%p435) target = $region32
      $region31: #{high_level_conv_qf_forward.1} parent=11 // pred_region
        _
      $region32: #{high_level_conv_qf_forward.1} parent=11 // pred_fallthru
        _
      // Predicated region
      $region33: #{high_level_conv_qf_forward.1} parent=11 // pred_check
        %p438 = pneg %p151
      $region34: #{high_level_conv_qf_forward.1} parent=11 // pred_check_branch
        %440 = sbr.rel (%p438) target = $region36
      $region35: #{high_level_conv_qf_forward.1} parent=11 // pred_region
        _
      $region36: #{high_level_conv_qf_forward.1} parent=11 // pred_fallthru
        _
      // Predicated region
      $region37: #{high_level_conv_qf_forward.1} parent=11 // pred_check
        %p441 = pneg %p172
      $region38: #{high_level_conv_qf_forward.1} parent=11 // pred_check_branch
        %443 = sbr.rel (%p441) target = $region40
      $region39: #{high_level_conv_qf_forward.1} parent=11 // pred_region
        _
      $region40: #{high_level_conv_qf_forward.1} parent=11 // pred_fallthru
        _
      // Predicated region
      $region41: #{high_level_conv_qf_forward.1} parent=11 // pred_check
        %p444 = pneg %p193
      $region42: #{high_level_conv_qf_forward.1} parent=11 // pred_check_branch
        %446 = sbr.rel (%p444) target = $region44
      $region43: #{high_level_conv_qf_forward.1} parent=11 // pred_region
        _
      $region44: #{high_level_conv_qf_forward.1} parent=11 // pred_fallthru
        _
      // Predicated region
      $region45: #{high_level_conv_qf_forward.1} parent=11 // pred_check
        %p447 = pneg %p214
      $region46: #{high_level_conv_qf_forward.1} parent=11 // pred_check_branch
        %449 = sbr.rel (%p447) target = $region48
      $region47: #{high_level_conv_qf_forward.1} parent=11 // pred_region
        _
      $region48: #{high_level_conv_qf_forward.1} parent=11 // pred_fallthru
        _
      // Predicated region
      $region49: #{high_level_conv_qf_forward.1} parent=11 // pred_check
        %p450 = pneg %p235
      $region50: #{high_level_conv_qf_forward.1} parent=11 // pred_check_branch
        %452 = sbr.rel (%p450) target = $region52
      $region51: #{high_level_conv_qf_forward.1} parent=11 // pred_region
        _
      $region52: #{high_level_conv_qf_forward.1} parent=11 // pred_fallthru
        _
      // Predicated region
      $region53: #{high_level_conv_qf_forward.1} parent=11 // pred_check
        %p453 = pneg %p282
      $region54: #{high_level_conv_qf_forward.1} parent=11 // pred_check_branch
        %455 = sbr.rel (%p453) target = $region56
      $region55: #{high_level_conv_qf_forward.1} parent=11 // pred_region
        _
      $region56: #{high_level_conv_qf_forward.1} parent=11 // pred_fallthru
        _
      // Predicated region
      $region57: #{high_level_conv_qf_forward.1} parent=11 // pred_check
        %p456 = pneg %p303
      $region58: #{high_level_conv_qf_forward.1} parent=11 // pred_check_branch
        %458 = sbr.rel (%p456) target = $region60
      $region59: #{high_level_conv_qf_forward.1} parent=11 // pred_region
        _
      $region60: #{high_level_conv_qf_forward.1} parent=11 // pred_fallthru
        _
      // Predicated region
      $region61: #{high_level_conv_qf_forward.1} parent=11 // pred_check
        %p459 = pneg %p324
      $region62: #{high_level_conv_qf_forward.1} parent=11 // pred_check_branch
        %461 = sbr.rel (%p459) target = $region64
      $region63: #{high_level_conv_qf_forward.1} parent=11 // pred_region
        _
      $region64: #{high_level_conv_qf_forward.1} parent=11 // pred_fallthru
        _
      // Predicated region
      $region65: #{high_level_conv_qf_forward.1} parent=11 // pred_check
        %p462 = pneg %p345
      $region66: #{high_level_conv_qf_forward.1} parent=11 // pred_check_branch
        %464 = sbr.rel (%p462) target = $region68
      $region67: #{high_level_conv_qf_forward.1} parent=11 // pred_region
        _
      $region68: #{high_level_conv_qf_forward.1} parent=11 // pred_fallthru
        _
      // Predicated region
      $region69: #{high_level_conv_qf_forward.1} parent=11 // pred_check
        %p465 = pneg %p366
      $region70: #{high_level_conv_qf_forward.1} parent=11 // pred_check_branch
        %467 = sbr.rel (%p465) target = $region72
      $region71: #{high_level_conv_qf_forward.1} parent=11 // pred_region
        _
      $region72: #{high_level_conv_qf_forward.1} parent=11 // pred_fallthru
        _
      // Predicated region
      $region73: #{high_level_conv_qf_forward.1} parent=11 // pred_check
        %p468 = pneg %p387
      $region74: #{high_level_conv_qf_forward.1} parent=11 // pred_check_branch
        %470 = sbr.rel (%p468) target = $region76
      $region75: #{high_level_conv_qf_forward.1} parent=11 // pred_region
        _
      $region76: #{high_level_conv_qf_forward.1} parent=11 // pred_fallthru
        _
    $region12: #{high_level_conv_qf_forward.1} parent=5 // pred_fallthru
      _
    %p471 = scmp.lt.s32.totalorder %s25, 4
    // Predicated region
    $region77: #{high_level_conv_qf_forward.1} parent=5 // pred_check
      %p472 = pneg %p471
    $region78: #{high_level_conv_qf_forward.1} parent=5 // pred_check_branch
      %474 = sbr.rel (%p472) target = $region80
    $region79: #{high_level_conv_qf_forward.1} parent=5 // pred_region
      // Predicated region
      $region81: #{high_level_conv_qf_forward.1} parent=79 // pred_check
        %p475 = pneg %p255
      $region82: #{high_level_conv_qf_forward.1} parent=79 // pred_check_branch
        %477 = sbr.rel (%p475) target = $region84
      $region83: #{high_level_conv_qf_forward.1} parent=79 // pred_region
        %s478 = smul.u32 8, %s25
        %p479 = scmp.lt.s32.totalorder %s478, 31
        %s480 = scalar_select %p479, %s478, 31
        %s481 = smul.addr %s480, 32
        %s482 = smul.addr %s481, 4
        %s483 = scalar_lea.vmem %s10, %s482
        %s484 = smul.u32 8, %s25
      $region84: #{high_level_conv_qf_forward.1} parent=79 // pred_fallthru
        _
    $region80: #{high_level_conv_qf_forward.1} parent=5 // pred_fallthru
      _
    %p485 = scmp.le.s32.totalorder 1, %s25
    %p486 = scmp.lt.s32.totalorder %s25, 5
    %p487 = pnand %p485, %p486
    %p488 = pneg %p487
    // Predicated region
    $region85: #{high_level_conv_qf_forward.1} parent=5 // pred_check
      _
    $region86: #{high_level_conv_qf_forward.1} parent=5 // pred_check_branch
      %490 = sbr.rel (%p487) target = $region88
    $region87: #{high_level_conv_qf_forward.1} parent=5 // pred_region
      %s491 = ssub.s32 %s25, 1
      %p492 = pneg %p46
      %p493 = pneg %p43
      %p494 = pneg %p67
      %p495 = pneg %p64
      %p496 = pneg %p88
      %p497 = pneg %p85
      %p498 = pneg %p109
      %p499 = pneg %p106
      %p500 = pneg %p130
      %p501 = pneg %p127
      %p502 = pneg %p151
      %p503 = pneg %p148
      %p504 = pneg %p172
      %p505 = pneg %p169
      %p506 = pneg %p193
      %p507 = pneg %p190
      %p508 = pneg %p214
      %p509 = pneg %p211
      %p510 = pneg %p235
      %p511 = pneg %p232
      %s512 = smul.u32 8, %s30
      %p513 = scmp.lt.s32.totalorder %s512, 31
      %s514 = scalar_select %p513, %s512, 31
      %s515 = smul.addr %s514, 32
      %s516 = smul.addr %s515, 4
      %s517 = scalar_lea.vmem %s10, %s516
      %p518 = pneg %p261
      %p519 = pneg %p258
      %p520 = pneg %p282
      %p521 = pneg %p279
      %p522 = pneg %p303
      %p523 = pneg %p300
      %p524 = pneg %p324
      %p525 = pneg %p321
      %p526 = pneg %p345
      %p527 = pneg %p342
      %p528 = pneg %p366
      %p529 = pneg %p363
      %p530 = pneg %p387
      %p531 = pneg %p384
      %p532 = pneg %p408
      %p533 = pneg %p405
      %s534 = smul.u32 8, %s30
      %p535 = scmp.lt.s32.totalorder %s534, 31
      %s536 = scalar_select %p535, %s534, 31
      %s537 = smul.addr %s536, 32
      %s538 = smul.addr %s537, 4
      %s539 = scalar_lea.vmem %s10, %s538
      %s540 = smul.u32 8, %s30
      %p542 = scmp.eq.s32.totalorder %s30, 0
      // Predicated region
      $region89: #{high_level_conv_qf_forward.1} parent=87 // pred_check
        %p543 = pneg %p542
      $region90: #{high_level_conv_qf_forward.1} parent=87 // pred_check_branch
        %545 = sbr.rel (%p543) target = $region92
      $region91: #{high_level_conv_qf_forward.1} parent=87 // pred_region
        %546 = vst [vmem:[#allocation3] sm:$0xff] 0.0
        %v547 = vld [vmem:[%s4] sm:$0xff]
        %v548 = vld [vmem:[%s4 + $0x8] sm:$0xff]
        %v549 = vld [vmem:[%s4 + $0x10] sm:$0xff]
        %v550 = vld [vmem:[%s4 + $0x18] sm:$0xff]
        %v551 = vld [vmem:[%s5] sm:$0xff]
        %v552 = vld [vmem:[%s5 + $0x8] sm:$0xff]
        %v553 = vld [vmem:[%s5 + $0x10] sm:$0xff]
        %v554 = vld [vmem:[%s5 + $0x18] sm:$0xff]
        %v555 = vld [vmem:[%s6] sm:$0xff]
        %v556 = vld [vmem:[%s6 + $0x8] sm:$0xff]
        %v557 = vld [vmem:[%s6 + $0x10] sm:$0xff]
        %v558 = vld [vmem:[%s6 + $0x18] sm:$0xff]
        %v559 = vld [vmem:[%s7] sm:$0xff]
        %v560 = vld [vmem:[%s7 + $0x8] sm:$0xff]
        %v561 = vld [vmem:[%s7 + $0x10] sm:$0xff]
        %v562 = vld [vmem:[%s7 + $0x18] sm:$0xff]
        %v563 = vld [vmem:[%s8] sm:$0xff]
        %v564 = vld [vmem:[%s8 + $0x8] sm:$0xff]
        %v565 = vld [vmem:[%s8 + $0x10] sm:$0xff]
        %v566 = vld [vmem:[%s8 + $0x18] sm:$0xff]
        %v567 = vld [vmem:[%s9] sm:$0xff]
        %v568 = vld [vmem:[%s9 + $0x8] sm:$0xff]
        %v569 = vld [vmem:[%s9 + $0x10] sm:$0xff]
        %v570 = vld [vmem:[%s9 + $0x18] sm:$0xff]
        %v571 = vlaneseq
        %v572 = vand.u32 %v571, 127
        %v573 = vadd.s32 %v572, 128
        %vm574 = vcmp.lt.s32.totalorder %v572, 0
        %v575 = vsub.s32 0, %v572
        %v576 = vsel %vm574, %v575, %v572
        %v577 = vshrl.u32 %v576, 7
        %v578 = vand.u32 %v576, 127
        %v579 = vsub.s32 0, %v578
        %v580 = vsel %vm574, %v579, %v578
        %vm581 = vcmp.lt.s32.totalorder %v573, 0
        %v582 = vsub.s32 0, %v573
        %v583 = vsel %vm581, %v582, %v573
        %v584 = vshrl.u32 %v583, 7
        %v585 = vand.u32 %v583, 127
        %v586 = vsub.s32 0, %v585
        %v587 = vsel %vm581, %v586, %v585
        %vm588 = vcmp.ne.s32.totalorder %v580, 0
        %vm589 = vcmp.ne.s32.totalorder %v587, 0
        %vm590 = vcmp.lt.s32.totalorder %v580, 0
        %vm591 = vcmp.lt.s32.totalorder %v587, 0
        %vm592 = vmand %vm590, %vm588
        %vm593 = vmand %vm591, %vm589
        %v594 = vadd.s32 %v580, 128
        %v595 = vadd.s32 %v587, 128
        %v596 = vsel %vm592, %v594, %v580
        %v597 = vsel %vm593, %v595, %v587
        %vm598 = vcmp.ge.s32.totalorder %v596, 1
        %vm599 = vcmp.ge.s32.totalorder %v597, 1
        %vm600 = vcmp.le.s32.totalorder %v596, 126
        %vm601 = vcmp.le.s32.totalorder %v597, 126
        %v602 = vld [vmem:[%s0] sm:$0xff]
        %v603 = vld [vmem:[%s0 + $0x8] sm:$0xff]
        %v604 = vld [vmem:[%s0 + $0x20] sm:$0xff]
        %v605 = vld [vmem:[%s0 + $0x28] sm:$0xff]
        %607 = vset.pattern.permute.xlu0 0
        %608 = vperm.xlu0 %607, %v551
        %v609 = vpop.permute.xlu0 %608
        %612 = vset.pattern.permute.xlu0 0
        %613 = vperm.xlu0 %612, %v552
        %v614 = vpop.permute.xlu0 %613
        %617 = vset.pattern.permute.xlu0 0
        %618 = vperm.xlu0 %617, %v553
        %v619 = vpop.permute.xlu0 %618
        %622 = vset.pattern.permute.xlu0 0
        %623 = vperm.xlu0 %622, %v554
        %v624 = vpop.permute.xlu0 %623
        %vm626 = vcmask 130048
        %v628 = vsel %vm626, %v547, 0
        %v631 = vsel %vm626, %v548, 0
        %v634 = vsel %vm626, %v549, 0
        %v637 = vsel %vm626, %v550, 0
        %639 = vmatprep.subr.mxu0 0.0
        %640 = vmatpush1.msra.mxu0 0.0
        %641 = vmatprep.subr.mxu0 0.0
        %642 = vmatpush1.msra.mxu0 0.0
        %643 = vmatprep.subr.mxu0 0.0
        %644 = vmatpush1.msra.mxu0 0.0
        %645 = vmatprep.subr.mxu0 0.0
        %646 = vmatpush1.msra.mxu0 0.0
        %647 = vmatprep.subr.mxu0 0.0
        %648 = vmatpush1.msra.mxu0 0.0
        %649 = vmatprep.subr.mxu0 0.0
        %650 = vmatpush1.msra.mxu0 0.0
        %651 = vmatprep.subr.mxu0 0.0
        %652 = vmatpush1.msra.mxu0 0.0
        %653 = vmatprep.subr.mxu0 0.0
        %654 = vmatpush1.msra.mxu0 0.0
        %655 = vmatprep.subr.mxu0 0.0
        %656 = vmatpush1.msra.mxu0 0.0
        %657 = vmatprep.subr.mxu0 0.0
        %658 = vmatpush1.msra.mxu0 0.0
        %659 = vmatprep.subr.mxu0 0.0
        %660 = vmatpush1.msra.mxu0 0.0
        %661 = vmatprep.subr.mxu0 0.0
        %662 = vmatpush1.msra.mxu0 0.0
        %663 = vmatprep.subr.mxu0 0.0
        %664 = vmatpush1.msra.mxu0 0.0
        %665 = vmatprep.subr.mxu0 0.0
        %666 = vmatpush1.msra.mxu0 0.0
        %667 = vmatprep.subr.mxu0 %v605
        %668 = vmatpush1.msra.mxu0 %v604
        %669 = vmatprep.subr.mxu0 %v603
        %670 = vmatpush1.msra.mxu0 %v602
        %671 = vmatprep.subr.mxu0 0.0
        %672 = vmatpush2.msra.mxu0 0.0
        %673 = vmatprep.subr.mxu0 0.0
        %674 = vmatpush2.msra.mxu0 0.0
        %675 = vmatprep.subr.mxu0 0.0
        %676 = vmatpush2.msra.mxu0 0.0
        %677 = vmatprep.subr.mxu0 0.0
        %678 = vmatpush2.msra.mxu0 0.0
        %679 = vmatprep.subr.mxu0 0.0
        %680 = vmatpush2.msra.mxu0 0.0
        %681 = vmatprep.subr.mxu0 0.0
        %682 = vmatpush2.msra.mxu0 0.0
        %683 = vmatprep.subr.mxu0 0.0
        %684 = vmatpush2.msra.mxu0 0.0
        %685 = vmatprep.subr.mxu0 0.0
        %686 = vmatpush2.msra.mxu0 0.0
        %687 = vmatprep.subr.mxu0 0.0
        %688 = vmatpush2.msra.mxu0 0.0
        %689 = vmatprep.subr.mxu0 0.0
        %690 = vmatpush2.msra.mxu0 0.0
        %691 = vmatprep.subr.mxu0 0.0
        %692 = vmatpush2.msra.mxu0 0.0
        %693 = vmatprep.subr.mxu0 0.0
        %694 = vmatpush2.msra.mxu0 0.0
        %695 = vmatprep.subr.mxu0 0.0
        %696 = vmatpush2.msra.mxu0 0.0
        %697 = vmatprep.subr.mxu0 0.0
        %698 = vmatpush2.msra.mxu0 0.0
        %699 = vmatprep.subr.mxu0 0.0
        %700 = vmatpush2.msra.mxu0 0.0
        %701 = vmatprep.subr.mxu0 0.0
        %702 = vmatpush2.msra.mxu0 0.0
        %703 = vmatprep.mubr.f32.mxu0 0.0
        %704 = vmatmul.mubr.f32.gmra.mxu0 %v628
        %v705 = vpop.f32.mrf.mxu0
        %v706 = vadd.f32 %v609, %v705
        %v707 = vpop.f32.mrf.mxu0
        %v708 = vadd.f32 %v609, %v707
        %709 = vmatprep.mubr.f32.mxu0 0.0
        %710 = vmatmul.mubr.f32.gmra.mxu0 %v631
        %v711 = vpop.f32.mrf.mxu0
        %v712 = vadd.f32 %v614, %v711
        %v713 = vpop.f32.mrf.mxu0
        %v714 = vadd.f32 %v614, %v713
        %715 = vmatprep.mubr.f32.mxu0 0.0
        %716 = vmatmul.mubr.f32.gmra.mxu0 %v634
        %v717 = vpop.f32.mrf.mxu0
        %v718 = vadd.f32 %v619, %v717
        %v719 = vpop.f32.mrf.mxu0
        %v720 = vadd.f32 %v619, %v719
        %721 = vmatprep.mubr.f32.mxu0 0.0
        %722 = vmatmul.mubr.f32.gmra.mxu0 %v637
        %v723 = vpop.f32.mrf.mxu0
        %v724 = vadd.f32 %v624, %v723
        %v725 = vpop.f32.mrf.mxu0
        %v726 = vadd.f32 %v624, %v725
        %727 = vdwg.mxu0
        %v728 = vmax.f32 %v706, 0.0
        %v729 = vmax.f32 %v708, 0.0
        %v730 = vmax.f32 %v712, 0.0
        %v731 = vmax.f32 %v714, 0.0
        %v732 = vmax.f32 %v718, 0.0
        %v733 = vmax.f32 %v720, 0.0
        %v734 = vmax.f32 %v724, 0.0
        %v735 = vmax.f32 %v726, 0.0
        %v736 = vsel %vm598, %v728, 0.0
        %v737 = vsel %vm599, %v729, 0.0
        %v738 = vsel %vm598, %v730, 0.0
        %v739 = vsel %vm599, %v731, 0.0
        %v740 = vsel %vm598, %v732, 0.0
        %v741 = vsel %vm599, %v733, 0.0
        %v742 = vsel %vm598, %v734, 0.0
        %v743 = vsel %vm599, %v735, 0.0
        %v744 = vld [vmem:[%s1] sm:$0xff]
        %v745 = vld [vmem:[%s1 + $0x8] sm:$0xff]
        %v746 = vld [vmem:[%s1 + $0x20] sm:$0xff]
        %v747 = vld [vmem:[%s1 + $0x28] sm:$0xff]
        %748 = vmatprep.subr.mxu0 0.0
        %749 = vmatpush1.msra.mxu0 0.0
        %750 = vmatprep.subr.mxu0 0.0
        %751 = vmatpush1.msra.mxu0 0.0
        %752 = vmatprep.subr.mxu0 0.0
        %753 = vmatpush1.msra.mxu0 0.0
        %754 = vmatprep.subr.mxu0 0.0
        %755 = vmatpush1.msra.mxu0 0.0
        %756 = vmatprep.subr.mxu0 0.0
        %757 = vmatpush1.msra.mxu0 0.0
        %758 = vmatprep.subr.mxu0 0.0
        %759 = vmatpush1.msra.mxu0 0.0
        %760 = vmatprep.subr.mxu0 0.0
        %761 = vmatpush1.msra.mxu0 0.0
        %762 = vmatprep.subr.mxu0 0.0
        %763 = vmatpush1.msra.mxu0 0.0
        %764 = vmatprep.subr.mxu0 0.0
        %765 = vmatpush1.msra.mxu0 0.0
        %766 = vmatprep.subr.mxu0 0.0
        %767 = vmatpush1.msra.mxu0 0.0
        %768 = vmatprep.subr.mxu0 0.0
        %769 = vmatpush1.msra.mxu0 0.0
        %770 = vmatprep.subr.mxu0 0.0
        %771 = vmatpush1.msra.mxu0 0.0
        %772 = vmatprep.subr.mxu0 0.0
        %773 = vmatpush1.msra.mxu0 0.0
        %774 = vmatprep.subr.mxu0 0.0
        %775 = vmatpush1.msra.mxu0 0.0
        %776 = vmatprep.subr.mxu0 %v747
        %777 = vmatpush1.msra.mxu0 %v746
        %778 = vmatprep.subr.mxu0 %v745
        %779 = vmatpush1.msra.mxu0 %v744
        %780 = vmatprep.subr.mxu0 0.0
        %781 = vmatpush2.msra.mxu0 0.0
        %782 = vmatprep.subr.mxu0 0.0
        %783 = vmatpush2.msra.mxu0 0.0
        %784 = vmatprep.subr.mxu0 0.0
        %785 = vmatpush2.msra.mxu0 0.0
        %786 = vmatprep.subr.mxu0 0.0
        %787 = vmatpush2.msra.mxu0 0.0
        %788 = vmatprep.subr.mxu0 0.0
        %789 = vmatpush2.msra.mxu0 0.0
        %790 = vmatprep.subr.mxu0 0.0
        %791 = vmatpush2.msra.mxu0 0.0
        %792 = vmatprep.subr.mxu0 0.0
        %793 = vmatpush2.msra.mxu0 0.0
        %794 = vmatprep.subr.mxu0 0.0
        %795 = vmatpush2.msra.mxu0 0.0
        %796 = vmatprep.subr.mxu0 0.0
        %797 = vmatpush2.msra.mxu0 0.0
        %798 = vmatprep.subr.mxu0 0.0
        %799 = vmatpush2.msra.mxu0 0.0
        %800 = vmatprep.subr.mxu0 0.0
        %801 = vmatpush2.msra.mxu0 0.0
        %802 = vmatprep.subr.mxu0 0.0
        %803 = vmatpush2.msra.mxu0 0.0
        %804 = vmatprep.subr.mxu0 0.0
        %805 = vmatpush2.msra.mxu0 0.0
        %806 = vmatprep.subr.mxu0 0.0
        %807 = vmatpush2.msra.mxu0 0.0
        %808 = vmatprep.subr.mxu0 0.0
        %809 = vmatpush2.msra.mxu0 0.0
        %810 = vmatprep.subr.mxu0 0.0
        %811 = vmatpush2.msra.mxu0 0.0
        %812 = vmatprep.mubr.f32.mxu0 0.0
        %813 = vmatmul.mubr.f32.gmra.mxu0 %v628
        %v814 = vpop.f32.mrf.mxu0
        %v815 = vadd.f32 %v609, %v814
        %v816 = vpop.f32.mrf.mxu0
        %v817 = vadd.f32 %v609, %v816
        %818 = vmatprep.mubr.f32.mxu0 0.0
        %819 = vmatmul.mubr.f32.gmra.mxu0 %v631
        %v820 = vpop.f32.mrf.mxu0
        %v821 = vadd.f32 %v614, %v820
        %v822 = vpop.f32.mrf.mxu0
        %v823 = vadd.f32 %v614, %v822
        %824 = vmatprep.mubr.f32.mxu0 0.0
        %825 = vmatmul.mubr.f32.gmra.mxu0 %v634
        %v826 = vpop.f32.mrf.mxu0
        %v827 = vadd.f32 %v619, %v826
        %v828 = vpop.f32.mrf.mxu0
        %v829 = vadd.f32 %v619, %v828
        %830 = vmatprep.mubr.f32.mxu0 0.0
        %831 = vmatmul.mubr.f32.gmra.mxu0 %v637
        %v832 = vpop.f32.mrf.mxu0
        %v833 = vadd.f32 %v624, %v832
        %v834 = vpop.f32.mrf.mxu0
        %v835 = vadd.f32 %v624, %v834
        %836 = vdwg.mxu0
        %v837 = vmax.f32 %v815, 0.0
        %v838 = vmax.f32 %v817, 0.0
        %v839 = vmax.f32 %v821, 0.0
        %v840 = vmax.f32 %v823, 0.0
        %v841 = vmax.f32 %v827, 0.0
        %v842 = vmax.f32 %v829, 0.0
        %v843 = vmax.f32 %v833, 0.0
        %v844 = vmax.f32 %v835, 0.0
        %v845 = vld [vmem:[%s2] sm:$0xff]
        %v846 = vld [vmem:[%s2 + $0x8] sm:$0xff]
        %v847 = vld [vmem:[%s2 + $0x20] sm:$0xff]
        %v848 = vld [vmem:[%s2 + $0x28] sm:$0xff]
        %849 = vmatprep.subr.mxu0 0.0
        %850 = vmatpush1.msra.mxu0 0.0
        %851 = vmatprep.subr.mxu0 0.0
        %852 = vmatpush1.msra.mxu0 0.0
        %853 = vmatprep.subr.mxu0 0.0
        %854 = vmatpush1.msra.mxu0 0.0
        %855 = vmatprep.subr.mxu0 0.0
        %856 = vmatpush1.msra.mxu0 0.0
        %857 = vmatprep.subr.mxu0 0.0
        %858 = vmatpush1.msra.mxu0 0.0
        %859 = vmatprep.subr.mxu0 0.0
        %860 = vmatpush1.msra.mxu0 0.0
        %861 = vmatprep.subr.mxu0 0.0
        %862 = vmatpush1.msra.mxu0 0.0
        %863 = vmatprep.subr.mxu0 0.0
        %864 = vmatpush1.msra.mxu0 0.0
        %865 = vmatprep.subr.mxu0 0.0
        %866 = vmatpush1.msra.mxu0 0.0
        %867 = vmatprep.subr.mxu0 0.0
        %868 = vmatpush1.msra.mxu0 0.0
        %869 = vmatprep.subr.mxu0 0.0
        %870 = vmatpush1.msra.mxu0 0.0
        %871 = vmatprep.subr.mxu0 0.0
        %872 = vmatpush1.msra.mxu0 0.0
        %873 = vmatprep.subr.mxu0 0.0
        %874 = vmatpush1.msra.mxu0 0.0
        %875 = vmatprep.subr.mxu0 0.0
        %876 = vmatpush1.msra.mxu0 0.0
        %877 = vmatprep.subr.mxu0 %v848
        %878 = vmatpush1.msra.mxu0 %v847
        %879 = vmatprep.subr.mxu0 %v846
        %880 = vmatpush1.msra.mxu0 %v845
        %881 = vmatprep.subr.mxu0 0.0
        %882 = vmatpush2.msra.mxu0 0.0
        %883 = vmatprep.subr.mxu0 0.0
        %884 = vmatpush2.msra.mxu0 0.0
        %885 = vmatprep.subr.mxu0 0.0
        %886 = vmatpush2.msra.mxu0 0.0
        %887 = vmatprep.subr.mxu0 0.0
        %888 = vmatpush2.msra.mxu0 0.0
        %889 = vmatprep.subr.mxu0 0.0
        %890 = vmatpush2.msra.mxu0 0.0
        %891 = vmatprep.subr.mxu0 0.0
        %892 = vmatpush2.msra.mxu0 0.0
        %893 = vmatprep.subr.mxu0 0.0
        %894 = vmatpush2.msra.mxu0 0.0
        %895 = vmatprep.subr.mxu0 0.0
        %896 = vmatpush2.msra.mxu0 0.0
        %897 = vmatprep.subr.mxu0 0.0
        %898 = vmatpush2.msra.mxu0 0.0
        %899 = vmatprep.subr.mxu0 0.0
        %900 = vmatpush2.msra.mxu0 0.0
        %901 = vmatprep.subr.mxu0 0.0
        %902 = vmatpush2.msra.mxu0 0.0
        %903 = vmatprep.subr.mxu0 0.0
        %904 = vmatpush2.msra.mxu0 0.0
        %905 = vmatprep.subr.mxu0 0.0
        %906 = vmatpush2.msra.mxu0 0.0
        %907 = vmatprep.subr.mxu0 0.0
        %908 = vmatpush2.msra.mxu0 0.0
        %909 = vmatprep.subr.mxu0 0.0
        %910 = vmatpush2.msra.mxu0 0.0
        %911 = vmatprep.subr.mxu0 0.0
        %912 = vmatpush2.msra.mxu0 0.0
        %913 = vmatprep.mubr.f32.mxu0 0.0
        %914 = vmatmul.mubr.f32.gmra.mxu0 %v628
        %v915 = vpop.f32.mrf.mxu0
        %v916 = vadd.f32 %v609, %v915
        %v917 = vpop.f32.mrf.mxu0
        %v918 = vadd.f32 %v609, %v917
        %919 = vmatprep.mubr.f32.mxu0 0.0
        %920 = vmatmul.mubr.f32.gmra.mxu0 %v631
        %v921 = vpop.f32.mrf.mxu0
        %v922 = vadd.f32 %v614, %v921
        %v923 = vpop.f32.mrf.mxu0
        %v924 = vadd.f32 %v614, %v923
        %925 = vmatprep.mubr.f32.mxu0 0.0
        %926 = vmatmul.mubr.f32.gmra.mxu0 %v634
        %v927 = vpop.f32.mrf.mxu0
        %v928 = vadd.f32 %v619, %v927
        %v929 = vpop.f32.mrf.mxu0
        %v930 = vadd.f32 %v619, %v929
        %931 = vmatprep.mubr.f32.mxu0 0.0
        %932 = vmatmul.mubr.f32.gmra.mxu0 %v637
        %v933 = vpop.f32.mrf.mxu0
        %v934 = vadd.f32 %v624, %v933
        %v935 = vpop.f32.mrf.mxu0
        %v936 = vadd.f32 %v624, %v935
        %937 = vdwg.mxu0
        %v938 = vmax.f32 %v916, 0.0
        %v939 = vmax.f32 %v918, 0.0
        %v940 = vmax.f32 %v922, 0.0
        %v941 = vmax.f32 %v924, 0.0
        %v942 = vmax.f32 %v928, 0.0
        %v943 = vmax.f32 %v930, 0.0
        %v944 = vmax.f32 %v934, 0.0
        %v945 = vmax.f32 %v936, 0.0
        %v946 = vsel %vm600, %v938, 0.0
        %v947 = vsel %vm601, %v939, 0.0
        %v948 = vsel %vm600, %v940, 0.0
        %v949 = vsel %vm601, %v941, 0.0
        %v950 = vsel %vm600, %v942, 0.0
        %v951 = vsel %vm601, %v943, 0.0
        %v952 = vsel %vm600, %v944, 0.0
        %v953 = vsel %vm601, %v945, 0.0
        %vm954 = vcmask 261120
        %v956 = vsel %vm954, %v559, 0
        %v959 = vsel %vm954, %v560, 0
        %v962 = vsel %vm954, %v561, 0
        %v965 = vsel %vm954, %v562, 0
        %967 = vmatprep.subr.mxu0 0.0
        %968 = vmatpush1.msra.mxu0 0.0
        %969 = vmatprep.subr.mxu0 0.0
        %970 = vmatpush1.msra.mxu0 0.0
        %971 = vmatprep.subr.mxu0 0.0
        %972 = vmatpush1.msra.mxu0 0.0
        %973 = vmatprep.subr.mxu0 0.0
        %974 = vmatpush1.msra.mxu0 0.0
        %975 = vmatprep.subr.mxu0 0.0
        %976 = vmatpush1.msra.mxu0 0.0
        %977 = vmatprep.subr.mxu0 0.0
        %978 = vmatpush1.msra.mxu0 0.0
        %979 = vmatprep.subr.mxu0 0.0
        %980 = vmatpush1.msra.mxu0 0.0
        %981 = vmatprep.subr.mxu0 0.0
        %982 = vmatpush1.msra.mxu0 0.0
        %983 = vmatprep.subr.mxu0 0.0
        %984 = vmatpush1.msra.mxu0 0.0
        %985 = vmatprep.subr.mxu0 0.0
        %986 = vmatpush1.msra.mxu0 0.0
        %987 = vmatprep.subr.mxu0 0.0
        %988 = vmatpush1.msra.mxu0 0.0
        %989 = vmatprep.subr.mxu0 0.0
        %990 = vmatpush1.msra.mxu0 0.0
        %991 = vmatprep.subr.mxu0 %v844
        %992 = vmatpush1.msra.mxu0 %v843
        %993 = vmatprep.subr.mxu0 %v842
        %994 = vmatpush1.msra.mxu0 %v841
        %995 = vmatprep.subr.mxu0 %v840
        %996 = vmatpush1.msra.mxu0 %v839
        %997 = vmatprep.subr.mxu0 %v838
        %998 = vmatpush1.msra.mxu0 %v837
        %999 = vmatprep.subr.mxu0 0.0
        %1000 = vmatpush2.msra.mxu0 0.0
        %1001 = vmatprep.subr.mxu0 0.0
        %1002 = vmatpush2.msra.mxu0 0.0
        %1003 = vmatprep.subr.mxu0 0.0
        %1004 = vmatpush2.msra.mxu0 0.0
        %1005 = vmatprep.subr.mxu0 0.0
        %1006 = vmatpush2.msra.mxu0 0.0
        %1007 = vmatprep.subr.mxu0 0.0
        %1008 = vmatpush2.msra.mxu0 0.0
        %1009 = vmatprep.subr.mxu0 0.0
        %1010 = vmatpush2.msra.mxu0 0.0
        %1011 = vmatprep.subr.mxu0 0.0
        %1012 = vmatpush2.msra.mxu0 0.0
        %1013 = vmatprep.subr.mxu0 0.0
        %1014 = vmatpush2.msra.mxu0 0.0
        %1015 = vmatprep.subr.mxu0 0.0
        %1016 = vmatpush2.msra.mxu0 0.0
        %1017 = vmatprep.subr.mxu0 0.0
        %1018 = vmatpush2.msra.mxu0 0.0
        %1019 = vmatprep.subr.mxu0 0.0
        %1020 = vmatpush2.msra.mxu0 0.0
        %1021 = vmatprep.subr.mxu0 0.0
        %1022 = vmatpush2.msra.mxu0 0.0
        %1023 = vmatprep.subr.mxu0 0.0
        %1024 = vmatpush2.msra.mxu0 0.0
        %1025 = vmatprep.subr.mxu0 0.0
        %1026 = vmatpush2.msra.mxu0 0.0
        %1027 = vmatprep.subr.mxu0 0.0
        %1028 = vmatpush2.msra.mxu0 0.0
        %1029 = vmatprep.subr.mxu0 0.0
        %1030 = vmatpush2.msra.mxu0 0.0
        %1031 = vmatprep.mubr.f32.mxu0 0.0
        %1032 = vmatmul.mubr.f32.gmra.mxu0 %v956
        %v1033 = vpop.f32.mrf.mxu0
        %v1034 = vadd.f32 0.0, %v1033
        %v1035 = vpop.f32.mrf.mxu0
        %v1036 = vadd.f32 0.0, %v1035
        %1037 = vmatprep.mubr.f32.mxu0 0.0
        %1038 = vmatmul.mubr.f32.gmra.mxu0 %v959
        %v1039 = vpop.f32.mrf.mxu0
        %v1040 = vadd.f32 0.0, %v1039
        %v1041 = vpop.f32.mrf.mxu0
        %v1042 = vadd.f32 0.0, %v1041
        %1043 = vmatprep.mubr.f32.mxu0 0.0
        %1044 = vmatmul.mubr.f32.gmra.mxu0 %v962
        %v1045 = vpop.f32.mrf.mxu0
        %v1046 = vadd.f32 0.0, %v1045
        %v1047 = vpop.f32.mrf.mxu0
        %v1048 = vadd.f32 0.0, %v1047
        %1049 = vmatprep.mubr.f32.mxu0 0.0
        %1050 = vmatmul.mubr.f32.gmra.mxu0 %v965
        %v1051 = vpop.f32.mrf.mxu0
        %v1052 = vadd.f32 0.0, %v1051
        %v1053 = vpop.f32.mrf.mxu0
        %v1054 = vadd.f32 0.0, %v1053
        %1055 = vdwg.mxu0
        %v1057 = vsel %vm954, %v555, 0
        %v1060 = vsel %vm954, %v556, 0
        %v1063 = vsel %vm954, %v557, 0
        %v1066 = vsel %vm954, %v558, 0
        %1068 = vmatprep.subr.mxu0 0.0
        %1069 = vmatpush1.msra.mxu0 0.0
        %1070 = vmatprep.subr.mxu0 0.0
        %1071 = vmatpush1.msra.mxu0 0.0
        %1072 = vmatprep.subr.mxu0 0.0
        %1073 = vmatpush1.msra.mxu0 0.0
        %1074 = vmatprep.subr.mxu0 0.0
        %1075 = vmatpush1.msra.mxu0 0.0
        %1076 = vmatprep.subr.mxu0 0.0
        %1077 = vmatpush1.msra.mxu0 0.0
        %1078 = vmatprep.subr.mxu0 0.0
        %1079 = vmatpush1.msra.mxu0 0.0
        %1080 = vmatprep.subr.mxu0 0.0
        %1081 = vmatpush1.msra.mxu0 0.0
        %1082 = vmatprep.subr.mxu0 0.0
        %1083 = vmatpush1.msra.mxu0 0.0
        %1084 = vmatprep.subr.mxu0 0.0
        %1085 = vmatpush1.msra.mxu0 0.0
        %1086 = vmatprep.subr.mxu0 0.0
        %1087 = vmatpush1.msra.mxu0 0.0
        %1088 = vmatprep.subr.mxu0 0.0
        %1089 = vmatpush1.msra.mxu0 0.0
        %1090 = vmatprep.subr.mxu0 0.0
        %1091 = vmatpush1.msra.mxu0 0.0
        %1092 = vmatprep.subr.mxu0 %v743
        %1093 = vmatpush1.msra.mxu0 %v742
        %1094 = vmatprep.subr.mxu0 %v741
        %1095 = vmatpush1.msra.mxu0 %v740
        %1096 = vmatprep.subr.mxu0 %v739
        %1097 = vmatpush1.msra.mxu0 %v738
        %1098 = vmatprep.subr.mxu0 %v737
        %1099 = vmatpush1.msra.mxu0 %v736
        %1100 = vmatprep.subr.mxu0 0.0
        %1101 = vmatpush2.msra.mxu0 0.0
        %1102 = vmatprep.subr.mxu0 0.0
        %1103 = vmatpush2.msra.mxu0 0.0
        %1104 = vmatprep.subr.mxu0 0.0
        %1105 = vmatpush2.msra.mxu0 0.0
        %1106 = vmatprep.subr.mxu0 0.0
        %1107 = vmatpush2.msra.mxu0 0.0
        %1108 = vmatprep.subr.mxu0 0.0
        %1109 = vmatpush2.msra.mxu0 0.0
        %1110 = vmatprep.subr.mxu0 0.0
        %1111 = vmatpush2.msra.mxu0 0.0
        %1112 = vmatprep.subr.mxu0 0.0
        %1113 = vmatpush2.msra.mxu0 0.0
        %1114 = vmatprep.subr.mxu0 0.0
        %1115 = vmatpush2.msra.mxu0 0.0
        %1116 = vmatprep.subr.mxu0 0.0
        %1117 = vmatpush2.msra.mxu0 0.0
        %1118 = vmatprep.subr.mxu0 0.0
        %1119 = vmatpush2.msra.mxu0 0.0
        %1120 = vmatprep.subr.mxu0 0.0
        %1121 = vmatpush2.msra.mxu0 0.0
        %1122 = vmatprep.subr.mxu0 0.0
        %1123 = vmatpush2.msra.mxu0 0.0
        %1124 = vmatprep.subr.mxu0 0.0
        %1125 = vmatpush2.msra.mxu0 0.0
        %1126 = vmatprep.subr.mxu0 0.0
        %1127 = vmatpush2.msra.mxu0 0.0
        %1128 = vmatprep.subr.mxu0 0.0
        %1129 = vmatpush2.msra.mxu0 0.0
        %1130 = vmatprep.subr.mxu0 0.0
        %1131 = vmatpush2.msra.mxu0 0.0
        %1132 = vmatprep.mubr.f32.mxu0 0.0
        %1133 = vmatmul.mubr.f32.gmra.mxu0 %v1057
        %v1134 = vpop.f32.mrf.mxu0
        %v1135 = vadd.f32 %v1034, %v1134
        %v1136 = vpop.f32.mrf.mxu0
        %v1137 = vadd.f32 %v1036, %v1136
        %1138 = vmatprep.mubr.f32.mxu0 0.0
        %1139 = vmatmul.mubr.f32.gmra.mxu0 %v1060
        %v1140 = vpop.f32.mrf.mxu0
        %v1141 = vadd.f32 %v1040, %v1140
        %v1142 = vpop.f32.mrf.mxu0
        %v1143 = vadd.f32 %v1042, %v1142
        %1144 = vmatprep.mubr.f32.mxu0 0.0
        %1145 = vmatmul.mubr.f32.gmra.mxu0 %v1063
        %v1146 = vpop.f32.mrf.mxu0
        %v1147 = vadd.f32 %v1046, %v1146
        %v1148 = vpop.f32.mrf.mxu0
        %v1149 = vadd.f32 %v1048, %v1148
        %1150 = vmatprep.mubr.f32.mxu0 0.0
        %1151 = vmatmul.mubr.f32.gmra.mxu0 %v1066
        %v1152 = vpop.f32.mrf.mxu0
        %v1153 = vadd.f32 %v1052, %v1152
        %v1154 = vpop.f32.mrf.mxu0
        %v1155 = vadd.f32 %v1054, %v1154
        %1156 = vdwg.mxu0
        %v1158 = vsel %vm954, %v563, 0
        %v1161 = vsel %vm954, %v564, 0
        %v1164 = vsel %vm954, %v565, 0
        %v1167 = vsel %vm954, %v566, 0
        %1169 = vmatprep.subr.mxu0 0.0
        %1170 = vmatpush1.msra.mxu0 0.0
        %1171 = vmatprep.subr.mxu0 0.0
        %1172 = vmatpush1.msra.mxu0 0.0
        %1173 = vmatprep.subr.mxu0 0.0
        %1174 = vmatpush1.msra.mxu0 0.0
        %1175 = vmatprep.subr.mxu0 0.0
        %1176 = vmatpush1.msra.mxu0 0.0
        %1177 = vmatprep.subr.mxu0 0.0
        %1178 = vmatpush1.msra.mxu0 0.0
        %1179 = vmatprep.subr.mxu0 0.0
        %1180 = vmatpush1.msra.mxu0 0.0
        %1181 = vmatprep.subr.mxu0 0.0
        %1182 = vmatpush1.msra.mxu0 0.0
        %1183 = vmatprep.subr.mxu0 0.0
        %1184 = vmatpush1.msra.mxu0 0.0
        %1185 = vmatprep.subr.mxu0 0.0
        %1186 = vmatpush1.msra.mxu0 0.0
        %1187 = vmatprep.subr.mxu0 0.0
        %1188 = vmatpush1.msra.mxu0 0.0
        %1189 = vmatprep.subr.mxu0 0.0
        %1190 = vmatpush1.msra.mxu0 0.0
        %1191 = vmatprep.subr.mxu0 0.0
        %1192 = vmatpush1.msra.mxu0 0.0
        %1193 = vmatprep.subr.mxu0 %v953
        %1194 = vmatpush1.msra.mxu0 %v952
        %1195 = vmatprep.subr.mxu0 %v951
        %1196 = vmatpush1.msra.mxu0 %v950
        %1197 = vmatprep.subr.mxu0 %v949
        %1198 = vmatpush1.msra.mxu0 %v948
        %1199 = vmatprep.subr.mxu0 %v947
        %1200 = vmatpush1.msra.mxu0 %v946
        %1201 = vmatprep.subr.mxu0 0.0
        %1202 = vmatpush2.msra.mxu0 0.0
        %1203 = vmatprep.subr.mxu0 0.0
        %1204 = vmatpush2.msra.mxu0 0.0
        %1205 = vmatprep.subr.mxu0 0.0
        %1206 = vmatpush2.msra.mxu0 0.0
        %1207 = vmatprep.subr.mxu0 0.0
        %1208 = vmatpush2.msra.mxu0 0.0
        %1209 = vmatprep.subr.mxu0 0.0
        %1210 = vmatpush2.msra.mxu0 0.0
        %1211 = vmatprep.subr.mxu0 0.0
        %1212 = vmatpush2.msra.mxu0 0.0
        %1213 = vmatprep.subr.mxu0 0.0
        %1214 = vmatpush2.msra.mxu0 0.0
        %1215 = vmatprep.subr.mxu0 0.0
        %1216 = vmatpush2.msra.mxu0 0.0
        %1217 = vmatprep.subr.mxu0 0.0
        %1218 = vmatpush2.msra.mxu0 0.0
        %1219 = vmatprep.subr.mxu0 0.0
        %1220 = vmatpush2.msra.mxu0 0.0
        %1221 = vmatprep.subr.mxu0 0.0
        %1222 = vmatpush2.msra.mxu0 0.0
        %1223 = vmatprep.subr.mxu0 0.0
        %1224 = vmatpush2.msra.mxu0 0.0
        %1225 = vmatprep.subr.mxu0 0.0
        %1226 = vmatpush2.msra.mxu0 0.0
        %1227 = vmatprep.subr.mxu0 0.0
        %1228 = vmatpush2.msra.mxu0 0.0
        %1229 = vmatprep.subr.mxu0 0.0
        %1230 = vmatpush2.msra.mxu0 0.0
        %1231 = vmatprep.subr.mxu0 0.0
        %1232 = vmatpush2.msra.mxu0 0.0
        %1233 = vmatprep.mubr.f32.mxu0 0.0
        %1234 = vmatmul.mubr.f32.gmra.mxu0 %v1158
        %v1235 = vpop.f32.mrf.mxu0
        %v1236 = vadd.f32 0.0, %v1235
        %v1237 = vpop.f32.mrf.mxu0
        %v1238 = vadd.f32 0.0, %v1237
        %1239 = vmatprep.mubr.f32.mxu0 0.0
        %1240 = vmatmul.mubr.f32.gmra.mxu0 %v1161
        %v1241 = vpop.f32.mrf.mxu0
        %v1242 = vadd.f32 0.0, %v1241
        %v1243 = vpop.f32.mrf.mxu0
        %v1244 = vadd.f32 0.0, %v1243
        %1245 = vmatprep.mubr.f32.mxu0 0.0
        %1246 = vmatmul.mubr.f32.gmra.mxu0 %v1164
        %v1247 = vpop.f32.mrf.mxu0
        %v1248 = vadd.f32 0.0, %v1247
        %v1249 = vpop.f32.mrf.mxu0
        %v1250 = vadd.f32 0.0, %v1249
        %1251 = vmatprep.mubr.f32.mxu0 0.0
        %1252 = vmatmul.mubr.f32.gmra.mxu0 %v1167
        %v1253 = vpop.f32.mrf.mxu0
        %v1254 = vadd.f32 0.0, %v1253
        %v1255 = vpop.f32.mrf.mxu0
        %v1256 = vadd.f32 0.0, %v1255
        %1257 = vdwg.mxu0
        %v1258 = vadd.f32 %v1135, %v1236
        %v1259 = vadd.f32 %v1137, %v1238
        %v1260 = vadd.f32 %v1141, %v1242
        %v1261 = vadd.f32 %v1143, %v1244
        %v1262 = vadd.f32 %v1147, %v1248
        %v1263 = vadd.f32 %v1149, %v1250
        %v1264 = vadd.f32 %v1153, %v1254
        %v1265 = vadd.f32 %v1155, %v1256
        %1267 = vset.pattern.permute.xlu0 0
        %1268 = vperm.xlu0 %1267, %v567
        %v1269 = vpop.permute.xlu0 %1268
        %1272 = vset.pattern.permute.xlu0 0
        %1273 = vperm.xlu0 %1272, %v568
        %v1274 = vpop.permute.xlu0 %1273
        %1277 = vset.pattern.permute.xlu0 0
        %1278 = vperm.xlu0 %1277, %v569
        %v1279 = vpop.permute.xlu0 %1278
        %1282 = vset.pattern.permute.xlu0 0
        %1283 = vperm.xlu0 %1282, %v570
        %v1284 = vpop.permute.xlu0 %1283
        %v1286 = vadd.f32 %v1258, %v1269
        %v1287 = vadd.f32 %v1259, %v1269
        %v1288 = vadd.f32 %v1260, %v1274
        %v1289 = vadd.f32 %v1261, %v1274
        %v1290 = vadd.f32 %v1262, %v1279
        %v1291 = vadd.f32 %v1263, %v1279
        %v1292 = vadd.f32 %v1264, %v1284
        %v1293 = vadd.f32 %v1265, %v1284
        %v1294 = vmax.f32 %v1286, 0.0
        %v1295 = vmax.f32 %v1287, 0.0
        %v1296 = vmax.f32 %v1288, 0.0
        %v1297 = vmax.f32 %v1289, 0.0
        %v1298 = vmax.f32 %v1290, 0.0
        %v1299 = vmax.f32 %v1291, 0.0
        %v1300 = vmax.f32 %v1292, 0.0
        %v1301 = vmax.f32 %v1293, 0.0
        %1302 = vst [vmem:[#allocation2] sm:$0xff] %v1294
        %s1303 = scalar_lea.vmem [#allocation2], 32
        %1304 = vst [vmem:[%s1303] sm:$0xff] %v1296
        %s1305 = scalar_lea.vmem [#allocation2], 64
        %1306 = vst [vmem:[%s1305] sm:$0xff] %v1298
        %s1307 = scalar_lea.vmem [#allocation2], 96
        %1308 = vst [vmem:[%s1307] sm:$0xff] %v1300
        %s1309 = scalar_lea.vmem [#allocation2], 8
        %1310 = vst [vmem:[%s1309] sm:$0xff] %v1295
        %s1311 = scalar_lea.vmem [#allocation2], 40
        %1312 = vst [vmem:[%s1311] sm:$0xff] %v1297
        %s1313 = scalar_lea.vmem [#allocation2], 72
        %1314 = vst [vmem:[%s1313] sm:$0xff] %v1299
        %s1315 = scalar_lea.vmem [#allocation2], 104
        %1316 = vst [vmem:[%s1315] sm:$0xff] %v1301
        %v1317 = vld [vmem:[%s0 + $0x10] sm:$0xff]
        %v1318 = vld [vmem:[%s0 + $0x18] sm:$0xff]
        %v1319 = vld [vmem:[%s0 + $0x30] sm:$0xff]
        %v1320 = vld [vmem:[%s0 + $0x38] sm:$0xff]
        %1321 = vmatprep.subr.mxu0 0.0
        %1322 = vmatpush1.msra.mxu0 0.0
        %1323 = vmatprep.subr.mxu0 0.0
        %1324 = vmatpush1.msra.mxu0 0.0
        %1325 = vmatprep.subr.mxu0 0.0
        %1326 = vmatpush1.msra.mxu0 0.0
        %1327 = vmatprep.subr.mxu0 0.0
        %1328 = vmatpush1.msra.mxu0 0.0
        %1329 = vmatprep.subr.mxu0 0.0
        %1330 = vmatpush1.msra.mxu0 0.0
        %1331 = vmatprep.subr.mxu0 0.0
        %1332 = vmatpush1.msra.mxu0 0.0
        %1333 = vmatprep.subr.mxu0 0.0
        %1334 = vmatpush1.msra.mxu0 0.0
        %1335 = vmatprep.subr.mxu0 0.0
        %1336 = vmatpush1.msra.mxu0 0.0
        %1337 = vmatprep.subr.mxu0 0.0
        %1338 = vmatpush1.msra.mxu0 0.0
        %1339 = vmatprep.subr.mxu0 0.0
        %1340 = vmatpush1.msra.mxu0 0.0
        %1341 = vmatprep.subr.mxu0 0.0
        %1342 = vmatpush1.msra.mxu0 0.0
        %1343 = vmatprep.subr.mxu0 0.0
        %1344 = vmatpush1.msra.mxu0 0.0
        %1345 = vmatprep.subr.mxu0 0.0
        %1346 = vmatpush1.msra.mxu0 0.0
        %1347 = vmatprep.subr.mxu0 0.0
        %1348 = vmatpush1.msra.mxu0 0.0
        %1349 = vmatprep.subr.mxu0 %v1320
        %1350 = vmatpush1.msra.mxu0 %v1319
        %1351 = vmatprep.subr.mxu0 %v1318
        %1352 = vmatpush1.msra.mxu0 %v1317
        %1353 = vmatprep.subr.mxu0 0.0
        %1354 = vmatpush2.msra.mxu0 0.0
        %1355 = vmatprep.subr.mxu0 0.0
        %1356 = vmatpush2.msra.mxu0 0.0
        %1357 = vmatprep.subr.mxu0 0.0
        %1358 = vmatpush2.msra.mxu0 0.0
        %1359 = vmatprep.subr.mxu0 0.0
        %1360 = vmatpush2.msra.mxu0 0.0
        %1361 = vmatprep.subr.mxu0 0.0
        %1362 = vmatpush2.msra.mxu0 0.0
        %1363 = vmatprep.subr.mxu0 0.0
        %1364 = vmatpush2.msra.mxu0 0.0
        %1365 = vmatprep.subr.mxu0 0.0
        %1366 = vmatpush2.msra.mxu0 0.0
        %1367 = vmatprep.subr.mxu0 0.0
        %1368 = vmatpush2.msra.mxu0 0.0
        %1369 = vmatprep.subr.mxu0 0.0
        %1370 = vmatpush2.msra.mxu0 0.0
        %1371 = vmatprep.subr.mxu0 0.0
        %1372 = vmatpush2.msra.mxu0 0.0
        %1373 = vmatprep.subr.mxu0 0.0
        %1374 = vmatpush2.msra.mxu0 0.0
        %1375 = vmatprep.subr.mxu0 0.0
        %1376 = vmatpush2.msra.mxu0 0.0
        %1377 = vmatprep.subr.mxu0 0.0
        %1378 = vmatpush2.msra.mxu0 0.0
        %1379 = vmatprep.subr.mxu0 0.0
        %1380 = vmatpush2.msra.mxu0 0.0
        %1381 = vmatprep.subr.mxu0 0.0
        %1382 = vmatpush2.msra.mxu0 0.0
        %1383 = vmatprep.subr.mxu0 0.0
        %1384 = vmatpush2.msra.mxu0 0.0
        %1385 = vmatprep.mubr.f32.mxu0 0.0
        %1386 = vmatmul.mubr.f32.gmra.mxu0 %v628
        %v1387 = vpop.f32.mrf.mxu0
        %v1388 = vadd.f32 %v609, %v1387
        %v1389 = vpop.f32.mrf.mxu0
        %v1390 = vadd.f32 %v609, %v1389
        %1391 = vmatprep.mubr.f32.mxu0 0.0
        %1392 = vmatmul.mubr.f32.gmra.mxu0 %v631
        %v1393 = vpop.f32.mrf.mxu0
        %v1394 = vadd.f32 %v614, %v1393
        %v1395 = vpop.f32.mrf.mxu0
        %v1396 = vadd.f32 %v614, %v1395
        %1397 = vmatprep.mubr.f32.mxu0 0.0
        %1398 = vmatmul.mubr.f32.gmra.mxu0 %v634
        %v1399 = vpop.f32.mrf.mxu0
        %v1400 = vadd.f32 %v619, %v1399
        %v1401 = vpop.f32.mrf.mxu0
        %v1402 = vadd.f32 %v619, %v1401
        %1403 = vmatprep.mubr.f32.mxu0 0.0
        %1404 = vmatmul.mubr.f32.gmra.mxu0 %v637
        %v1405 = vpop.f32.mrf.mxu0
        %v1406 = vadd.f32 %v624, %v1405
        %v1407 = vpop.f32.mrf.mxu0
        %v1408 = vadd.f32 %v624, %v1407
        %1409 = vdwg.mxu0
        %v1410 = vmax.f32 %v1388, 0.0
        %v1411 = vmax.f32 %v1390, 0.0
        %v1412 = vmax.f32 %v1394, 0.0
        %v1413 = vmax.f32 %v1396, 0.0
        %v1414 = vmax.f32 %v1400, 0.0
        %v1415 = vmax.f32 %v1402, 0.0
        %v1416 = vmax.f32 %v1406, 0.0
        %v1417 = vmax.f32 %v1408, 0.0
        %v1418 = vsel %vm598, %v1410, 0.0
        %v1419 = vsel %vm599, %v1411, 0.0
        %v1420 = vsel %vm598, %v1412, 0.0
        %v1421 = vsel %vm599, %v1413, 0.0
        %v1422 = vsel %vm598, %v1414, 0.0
        %v1423 = vsel %vm599, %v1415, 0.0
        %v1424 = vsel %vm598, %v1416, 0.0
        %v1425 = vsel %vm599, %v1417, 0.0
        %v1426 = vld [vmem:[%s1 + $0x10] sm:$0xff]
        %v1427 = vld [vmem:[%s1 + $0x18] sm:$0xff]
        %v1428 = vld [vmem:[%s1 + $0x30] sm:$0xff]
        %v1429 = vld [vmem:[%s1 + $0x38] sm:$0xff]
        %1430 = vmatprep.subr.mxu0 0.0
        %1431 = vmatpush1.msra.mxu0 0.0
        %1432 = vmatprep.subr.mxu0 0.0
        %1433 = vmatpush1.msra.mxu0 0.0
        %1434 = vmatprep.subr.mxu0 0.0
        %1435 = vmatpush1.msra.mxu0 0.0
        %1436 = vmatprep.subr.mxu0 0.0
        %1437 = vmatpush1.msra.mxu0 0.0
        %1438 = vmatprep.subr.mxu0 0.0
        %1439 = vmatpush1.msra.mxu0 0.0
        %1440 = vmatprep.subr.mxu0 0.0
        %1441 = vmatpush1.msra.mxu0 0.0
        %1442 = vmatprep.subr.mxu0 0.0
        %1443 = vmatpush1.msra.mxu0 0.0
        %1444 = vmatprep.subr.mxu0 0.0
        %1445 = vmatpush1.msra.mxu0 0.0
        %1446 = vmatprep.subr.mxu0 0.0
        %1447 = vmatpush1.msra.mxu0 0.0
        %1448 = vmatprep.subr.mxu0 0.0
        %1449 = vmatpush1.msra.mxu0 0.0
        %1450 = vmatprep.subr.mxu0 0.0
        %1451 = vmatpush1.msra.mxu0 0.0
        %1452 = vmatprep.subr.mxu0 0.0
        %1453 = vmatpush1.msra.mxu0 0.0
        %1454 = vmatprep.subr.mxu0 0.0
        %1455 = vmatpush1.msra.mxu0 0.0
        %1456 = vmatprep.subr.mxu0 0.0
        %1457 = vmatpush1.msra.mxu0 0.0
        %1458 = vmatprep.subr.mxu0 %v1429
        %1459 = vmatpush1.msra.mxu0 %v1428
        %1460 = vmatprep.subr.mxu0 %v1427
        %1461 = vmatpush1.msra.mxu0 %v1426
        %1462 = vmatprep.subr.mxu0 0.0
        %1463 = vmatpush2.msra.mxu0 0.0
        %1464 = vmatprep.subr.mxu0 0.0
        %1465 = vmatpush2.msra.mxu0 0.0
        %1466 = vmatprep.subr.mxu0 0.0
        %1467 = vmatpush2.msra.mxu0 0.0
        %1468 = vmatprep.subr.mxu0 0.0
        %1469 = vmatpush2.msra.mxu0 0.0
        %1470 = vmatprep.subr.mxu0 0.0
        %1471 = vmatpush2.msra.mxu0 0.0
        %1472 = vmatprep.subr.mxu0 0.0
        %1473 = vmatpush2.msra.mxu0 0.0
        %1474 = vmatprep.subr.mxu0 0.0
        %1475 = vmatpush2.msra.mxu0 0.0
        %1476 = vmatprep.subr.mxu0 0.0
        %1477 = vmatpush2.msra.mxu0 0.0
        %1478 = vmatprep.subr.mxu0 0.0
        %1479 = vmatpush2.msra.mxu0 0.0
        %1480 = vmatprep.subr.mxu0 0.0
        %1481 = vmatpush2.msra.mxu0 0.0
        %1482 = vmatprep.subr.mxu0 0.0
        %1483 = vmatpush2.msra.mxu0 0.0
        %1484 = vmatprep.subr.mxu0 0.0
        %1485 = vmatpush2.msra.mxu0 0.0
        %1486 = vmatprep.subr.mxu0 0.0
        %1487 = vmatpush2.msra.mxu0 0.0
        %1488 = vmatprep.subr.mxu0 0.0
        %1489 = vmatpush2.msra.mxu0 0.0
        %1490 = vmatprep.subr.mxu0 0.0
        %1491 = vmatpush2.msra.mxu0 0.0
        %1492 = vmatprep.subr.mxu0 0.0
        %1493 = vmatpush2.msra.mxu0 0.0
        %1494 = vmatprep.mubr.f32.mxu0 0.0
        %1495 = vmatmul.mubr.f32.gmra.mxu0 %v628
        %v1496 = vpop.f32.mrf.mxu0
        %v1497 = vadd.f32 %v609, %v1496
        %v1498 = vpop.f32.mrf.mxu0
        %v1499 = vadd.f32 %v609, %v1498
        %1500 = vmatprep.mubr.f32.mxu0 0.0
        %1501 = vmatmul.mubr.f32.gmra.mxu0 %v631
        %v1502 = vpop.f32.mrf.mxu0
        %v1503 = vadd.f32 %v614, %v1502
        %v1504 = vpop.f32.mrf.mxu0
        %v1505 = vadd.f32 %v614, %v1504
        %1506 = vmatprep.mubr.f32.mxu0 0.0
        %1507 = vmatmul.mubr.f32.gmra.mxu0 %v634
        %v1508 = vpop.f32.mrf.mxu0
        %v1509 = vadd.f32 %v619, %v1508
        %v1510 = vpop.f32.mrf.mxu0
        %v1511 = vadd.f32 %v619, %v1510
        %1512 = vmatprep.mubr.f32.mxu0 0.0
        %1513 = vmatmul.mubr.f32.gmra.mxu0 %v637
        %v1514 = vpop.f32.mrf.mxu0
        %v1515 = vadd.f32 %v624, %v1514
        %v1516 = vpop.f32.mrf.mxu0
        %v1517 = vadd.f32 %v624, %v1516
        %1518 = vdwg.mxu0
        %v1519 = vmax.f32 %v1497, 0.0
        %v1520 = vmax.f32 %v1499, 0.0
        %v1521 = vmax.f32 %v1503, 0.0
        %v1522 = vmax.f32 %v1505, 0.0
        %v1523 = vmax.f32 %v1509, 0.0
        %v1524 = vmax.f32 %v1511, 0.0
        %v1525 = vmax.f32 %v1515, 0.0
        %v1526 = vmax.f32 %v1517, 0.0
        %v1527 = vld [vmem:[%s2 + $0x10] sm:$0xff]
        %v1528 = vld [vmem:[%s2 + $0x18] sm:$0xff]
        %v1529 = vld [vmem:[%s2 + $0x30] sm:$0xff]
        %v1530 = vld [vmem:[%s2 + $0x38] sm:$0xff]
        %1531 = vmatprep.subr.mxu0 0.0
        %1532 = vmatpush1.msra.mxu0 0.0
        %1533 = vmatprep.subr.mxu0 0.0
        %1534 = vmatpush1.msra.mxu0 0.0
        %1535 = vmatprep.subr.mxu0 0.0
        %1536 = vmatpush1.msra.mxu0 0.0
        %1537 = vmatprep.subr.mxu0 0.0
        %1538 = vmatpush1.msra.mxu0 0.0
        %1539 = vmatprep.subr.mxu0 0.0
        %1540 = vmatpush1.msra.mxu0 0.0
        %1541 = vmatprep.subr.mxu0 0.0
        %1542 = vmatpush1.msra.mxu0 0.0
        %1543 = vmatprep.subr.mxu0 0.0
        %1544 = vmatpush1.msra.mxu0 0.0
        %1545 = vmatprep.subr.mxu0 0.0
        %1546 = vmatpush1.msra.mxu0 0.0
        %1547 = vmatprep.subr.mxu0 0.0
        %1548 = vmatpush1.msra.mxu0 0.0
        %1549 = vmatprep.subr.mxu0 0.0
        %1550 = vmatpush1.msra.mxu0 0.0
        %1551 = vmatprep.subr.mxu0 0.0
        %1552 = vmatpush1.msra.mxu0 0.0
        %1553 = vmatprep.subr.mxu0 0.0
        %1554 = vmatpush1.msra.mxu0 0.0
        %1555 = vmatprep.subr.mxu0 0.0
        %1556 = vmatpush1.msra.mxu0 0.0
        %1557 = vmatprep.subr.mxu0 0.0
        %1558 = vmatpush1.msra.mxu0 0.0
        %1559 = vmatprep.subr.mxu0 %v1530
        %1560 = vmatpush1.msra.mxu0 %v1529
        %1561 = vmatprep.subr.mxu0 %v1528
        %1562 = vmatpush1.msra.mxu0 %v1527
        %1563 = vmatprep.subr.mxu0 0.0
        %1564 = vmatpush2.msra.mxu0 0.0
        %1565 = vmatprep.subr.mxu0 0.0
        %1566 = vmatpush2.msra.mxu0 0.0
        %1567 = vmatprep.subr.mxu0 0.0
        %1568 = vmatpush2.msra.mxu0 0.0
        %1569 = vmatprep.subr.mxu0 0.0
        %1570 = vmatpush2.msra.mxu0 0.0
        %1571 = vmatprep.subr.mxu0 0.0
        %1572 = vmatpush2.msra.mxu0 0.0
        %1573 = vmatprep.subr.mxu0 0.0
        %1574 = vmatpush2.msra.mxu0 0.0
        %1575 = vmatprep.subr.mxu0 0.0
        %1576 = vmatpush2.msra.mxu0 0.0
        %1577 = vmatprep.subr.mxu0 0.0
        %1578 = vmatpush2.msra.mxu0 0.0
        %1579 = vmatprep.subr.mxu0 0.0
        %1580 = vmatpush2.msra.mxu0 0.0
        %1581 = vmatprep.subr.mxu0 0.0
        %1582 = vmatpush2.msra.mxu0 0.0
        %1583 = vmatprep.subr.mxu0 0.0
        %1584 = vmatpush2.msra.mxu0 0.0
        %1585 = vmatprep.subr.mxu0 0.0
        %1586 = vmatpush2.msra.mxu0 0.0
        %1587 = vmatprep.subr.mxu0 0.0
        %1588 = vmatpush2.msra.mxu0 0.0
        %1589 = vmatprep.subr.mxu0 0.0
        %1590 = vmatpush2.msra.mxu0 0.0
        %1591 = vmatprep.subr.mxu0 0.0
        %1592 = vmatpush2.msra.mxu0 0.0
        %1593 = vmatprep.subr.mxu0 0.0
        %1594 = vmatpush2.msra.mxu0 0.0
        %1595 = vmatprep.mubr.f32.mxu0 0.0
        %1596 = vmatmul.mubr.f32.gmra.mxu0 %v628
        %v1597 = vpop.f32.mrf.mxu0
        %v1598 = vadd.f32 %v609, %v1597
        %v1599 = vpop.f32.mrf.mxu0
        %v1600 = vadd.f32 %v609, %v1599
        %1601 = vmatprep.mubr.f32.mxu0 0.0
        %1602 = vmatmul.mubr.f32.gmra.mxu0 %v631
        %v1603 = vpop.f32.mrf.mxu0
        %v1604 = vadd.f32 %v614, %v1603
        %v1605 = vpop.f32.mrf.mxu0
        %v1606 = vadd.f32 %v614, %v1605
        %1607 = vmatprep.mubr.f32.mxu0 0.0
        %1608 = vmatmul.mubr.f32.gmra.mxu0 %v634
        %v1609 = vpop.f32.mrf.mxu0
        %v1610 = vadd.f32 %v619, %v1609
        %v1611 = vpop.f32.mrf.mxu0
        %v1612 = vadd.f32 %v619, %v1611
        %1613 = vmatprep.mubr.f32.mxu0 0.0
        %1614 = vmatmul.mubr.f32.gmra.mxu0 %v637
        %v1615 = vpop.f32.mrf.mxu0
        %v1616 = vadd.f32 %v624, %v1615
        %v1617 = vpop.f32.mrf.mxu0
        %v1618 = vadd.f32 %v624, %v1617
        %1619 = vdwg.mxu0
        %v1620 = vmax.f32 %v1598, 0.0
        %v1621 = vmax.f32 %v1600, 0.0
        %v1622 = vmax.f32 %v1604, 0.0
        %v1623 = vmax.f32 %v1606, 0.0
        %v1624 = vmax.f32 %v1610, 0.0
        %v1625 = vmax.f32 %v1612, 0.0
        %v1626 = vmax.f32 %v1616, 0.0
        %v1627 = vmax.f32 %v1618, 0.0
        %v1628 = vsel %vm600, %v1620, 0.0
        %v1629 = vsel %vm601, %v1621, 0.0
        %v1630 = vsel %vm600, %v1622, 0.0
        %v1631 = vsel %vm601, %v1623, 0.0
        %v1632 = vsel %vm600, %v1624, 0.0
        %v1633 = vsel %vm601, %v1625, 0.0
        %v1634 = vsel %vm600, %v1626, 0.0
        %v1635 = vsel %vm601, %v1627, 0.0
        %1636 = vmatprep.subr.mxu0 0.0
        %1637 = vmatpush1.msra.mxu0 0.0
        %1638 = vmatprep.subr.mxu0 0.0
        %1639 = vmatpush1.msra.mxu0 0.0
        %1640 = vmatprep.subr.mxu0 0.0
        %1641 = vmatpush1.msra.mxu0 0.0
        %1642 = vmatprep.subr.mxu0 0.0
        %1643 = vmatpush1.msra.mxu0 0.0
        %1644 = vmatprep.subr.mxu0 0.0
        %1645 = vmatpush1.msra.mxu0 0.0
        %1646 = vmatprep.subr.mxu0 0.0
        %1647 = vmatpush1.msra.mxu0 0.0
        %1648 = vmatprep.subr.mxu0 0.0
        %1649 = vmatpush1.msra.mxu0 0.0
        %1650 = vmatprep.subr.mxu0 0.0
        %1651 = vmatpush1.msra.mxu0 0.0
        %1652 = vmatprep.subr.mxu0 0.0
        %1653 = vmatpush1.msra.mxu0 0.0
        %1654 = vmatprep.subr.mxu0 0.0
        %1655 = vmatpush1.msra.mxu0 0.0
        %1656 = vmatprep.subr.mxu0 0.0
        %1657 = vmatpush1.msra.mxu0 0.0
        %1658 = vmatprep.subr.mxu0 0.0
        %1659 = vmatpush1.msra.mxu0 0.0
        %1660 = vmatprep.subr.mxu0 %v1526
        %1661 = vmatpush1.msra.mxu0 %v1525
        %1662 = vmatprep.subr.mxu0 %v1524
        %1663 = vmatpush1.msra.mxu0 %v1523
        %1664 = vmatprep.subr.mxu0 %v1522
        %1665 = vmatpush1.msra.mxu0 %v1521
        %1666 = vmatprep.subr.mxu0 %v1520
        %1667 = vmatpush1.msra.mxu0 %v1519
        %1668 = vmatprep.subr.mxu0 0.0
        %1669 = vmatpush2.msra.mxu0 0.0
        %1670 = vmatprep.subr.mxu0 0.0
        %1671 = vmatpush2.msra.mxu0 0.0
        %1672 = vmatprep.subr.mxu0 0.0
        %1673 = vmatpush2.msra.mxu0 0.0
        %1674 = vmatprep.subr.mxu0 0.0
        %1675 = vmatpush2.msra.mxu0 0.0
        %1676 = vmatprep.subr.mxu0 0.0
        %1677 = vmatpush2.msra.mxu0 0.0
        %1678 = vmatprep.subr.mxu0 0.0
        %1679 = vmatpush2.msra.mxu0 0.0
        %1680 = vmatprep.subr.mxu0 0.0
        %1681 = vmatpush2.msra.mxu0 0.0
        %1682 = vmatprep.subr.mxu0 0.0
        %1683 = vmatpush2.msra.mxu0 0.0
        %1684 = vmatprep.subr.mxu0 0.0
        %1685 = vmatpush2.msra.mxu0 0.0
        %1686 = vmatprep.subr.mxu0 0.0
        %1687 = vmatpush2.msra.mxu0 0.0
        %1688 = vmatprep.subr.mxu0 0.0
        %1689 = vmatpush2.msra.mxu0 0.0
        %1690 = vmatprep.subr.mxu0 0.0
        %1691 = vmatpush2.msra.mxu0 0.0
        %1692 = vmatprep.subr.mxu0 0.0
        %1693 = vmatpush2.msra.mxu0 0.0
        %1694 = vmatprep.subr.mxu0 0.0
        %1695 = vmatpush2.msra.mxu0 0.0
        %1696 = vmatprep.subr.mxu0 0.0
        %1697 = vmatpush2.msra.mxu0 0.0
        %1698 = vmatprep.subr.mxu0 0.0
        %1699 = vmatpush2.msra.mxu0 0.0
        %1700 = vmatprep.mubr.f32.mxu0 0.0
        %1701 = vmatmul.mubr.f32.gmra.mxu0 %v956
        %v1702 = vpop.f32.mrf.mxu0
        %v1703 = vadd.f32 0.0, %v1702
        %v1704 = vpop.f32.mrf.mxu0
        %v1705 = vadd.f32 0.0, %v1704
        %1706 = vmatprep.mubr.f32.mxu0 0.0
        %1707 = vmatmul.mubr.f32.gmra.mxu0 %v959
        %v1708 = vpop.f32.mrf.mxu0
        %v1709 = vadd.f32 0.0, %v1708
        %v1710 = vpop.f32.mrf.mxu0
        %v1711 = vadd.f32 0.0, %v1710
        %1712 = vmatprep.mubr.f32.mxu0 0.0
        %1713 = vmatmul.mubr.f32.gmra.mxu0 %v962
        %v1714 = vpop.f32.mrf.mxu0
        %v1715 = vadd.f32 0.0, %v1714
        %v1716 = vpop.f32.mrf.mxu0
        %v1717 = vadd.f32 0.0, %v1716
        %1718 = vmatprep.mubr.f32.mxu0 0.0
        %1719 = vmatmul.mubr.f32.gmra.mxu0 %v965
        %v1720 = vpop.f32.mrf.mxu0
        %v1721 = vadd.f32 0.0, %v1720
        %v1722 = vpop.f32.mrf.mxu0
        %v1723 = vadd.f32 0.0, %v1722
        %1724 = vdwg.mxu0
        %1725 = vmatprep.subr.mxu0 0.0
        %1726 = vmatpush1.msra.mxu0 0.0
        %1727 = vmatprep.subr.mxu0 0.0
        %1728 = vmatpush1.msra.mxu0 0.0
        %1729 = vmatprep.subr.mxu0 0.0
        %1730 = vmatpush1.msra.mxu0 0.0
        %1731 = vmatprep.subr.mxu0 0.0
        %1732 = vmatpush1.msra.mxu0 0.0
        %1733 = vmatprep.subr.mxu0 0.0
        %1734 = vmatpush1.msra.mxu0 0.0
        %1735 = vmatprep.subr.mxu0 0.0
        %1736 = vmatpush1.msra.mxu0 0.0
        %1737 = vmatprep.subr.mxu0 0.0
        %1738 = vmatpush1.msra.mxu0 0.0
        %1739 = vmatprep.subr.mxu0 0.0
        %1740 = vmatpush1.msra.mxu0 0.0
        %1741 = vmatprep.subr.mxu0 0.0
        %1742 = vmatpush1.msra.mxu0 0.0
        %1743 = vmatprep.subr.mxu0 0.0
        %1744 = vmatpush1.msra.mxu0 0.0
        %1745 = vmatprep.subr.mxu0 0.0
        %1746 = vmatpush1.msra.mxu0 0.0
        %1747 = vmatprep.subr.mxu0 0.0
        %1748 = vmatpush1.msra.mxu0 0.0
        %1749 = vmatprep.subr.mxu0 %v1425
        %1750 = vmatpush1.msra.mxu0 %v1424
        %1751 = vmatprep.subr.mxu0 %v1423
        %1752 = vmatpush1.msra.mxu0 %v1422
        %1753 = vmatprep.subr.mxu0 %v1421
        %1754 = vmatpush1.msra.mxu0 %v1420
        %1755 = vmatprep.subr.mxu0 %v1419
        %1756 = vmatpush1.msra.mxu0 %v1418
        %1757 = vmatprep.subr.mxu0 0.0
        %1758 = vmatpush2.msra.mxu0 0.0
        %1759 = vmatprep.subr.mxu0 0.0
        %1760 = vmatpush2.msra.mxu0 0.0
        %1761 = vmatprep.subr.mxu0 0.0
        %1762 = vmatpush2.msra.mxu0 0.0
        %1763 = vmatprep.subr.mxu0 0.0
        %1764 = vmatpush2.msra.mxu0 0.0
        %1765 = vmatprep.subr.mxu0 0.0
        %1766 = vmatpush2.msra.mxu0 0.0
        %1767 = vmatprep.subr.mxu0 0.0
        %1768 = vmatpush2.msra.mxu0 0.0
        %1769 = vmatprep.subr.mxu0 0.0
        %1770 = vmatpush2.msra.mxu0 0.0
        %1771 = vmatprep.subr.mxu0 0.0
        %1772 = vmatpush2.msra.mxu0 0.0
        %1773 = vmatprep.subr.mxu0 0.0
        %1774 = vmatpush2.msra.mxu0 0.0
        %1775 = vmatprep.subr.mxu0 0.0
        %1776 = vmatpush2.msra.mxu0 0.0
        %1777 = vmatprep.subr.mxu0 0.0
        %1778 = vmatpush2.msra.mxu0 0.0
        %1779 = vmatprep.subr.mxu0 0.0
        %1780 = vmatpush2.msra.mxu0 0.0
        %1781 = vmatprep.subr.mxu0 0.0
        %1782 = vmatpush2.msra.mxu0 0.0
        %1783 = vmatprep.subr.mxu0 0.0
        %1784 = vmatpush2.msra.mxu0 0.0
        %1785 = vmatprep.subr.mxu0 0.0
        %1786 = vmatpush2.msra.mxu0 0.0
        %1787 = vmatprep.subr.mxu0 0.0
        %1788 = vmatpush2.msra.mxu0 0.0
        %1789 = vmatprep.mubr.f32.mxu0 0.0
        %1790 = vmatmul.mubr.f32.gmra.mxu0 %v1057
        %v1791 = vpop.f32.mrf.mxu0
        %v1792 = vadd.f32 %v1703, %v1791
        %v1793 = vpop.f32.mrf.mxu0
        %v1794 = vadd.f32 %v1705, %v1793
        %1795 = vmatprep.mubr.f32.mxu0 0.0
        %1796 = vmatmul.mubr.f32.gmra.mxu0 %v1060
        %v1797 = vpop.f32.mrf.mxu0
        %v1798 = vadd.f32 %v1709, %v1797
        %v1799 = vpop.f32.mrf.mxu0
        %v1800 = vadd.f32 %v1711, %v1799
        %1801 = vmatprep.mubr.f32.mxu0 0.0
        %1802 = vmatmul.mubr.f32.gmra.mxu0 %v1063
        %v1803 = vpop.f32.mrf.mxu0
        %v1804 = vadd.f32 %v1715, %v1803
        %v1805 = vpop.f32.mrf.mxu0
        %v1806 = vadd.f32 %v1717, %v1805
        %1807 = vmatprep.mubr.f32.mxu0 0.0
        %1808 = vmatmul.mubr.f32.gmra.mxu0 %v1066
        %v1809 = vpop.f32.mrf.mxu0
        %v1810 = vadd.f32 %v1721, %v1809
        %v1811 = vpop.f32.mrf.mxu0
        %v1812 = vadd.f32 %v1723, %v1811
        %1813 = vdwg.mxu0
        %1814 = vmatprep.subr.mxu0 0.0
        %1815 = vmatpush1.msra.mxu0 0.0
        %1816 = vmatprep.subr.mxu0 0.0
        %1817 = vmatpush1.msra.mxu0 0.0
        %1818 = vmatprep.subr.mxu0 0.0
        %1819 = vmatpush1.msra.mxu0 0.0
        %1820 = vmatprep.subr.mxu0 0.0
        %1821 = vmatpush1.msra.mxu0 0.0
        %1822 = vmatprep.subr.mxu0 0.0
        %1823 = vmatpush1.msra.mxu0 0.0
        %1824 = vmatprep.subr.mxu0 0.0
        %1825 = vmatpush1.msra.mxu0 0.0
        %1826 = vmatprep.subr.mxu0 0.0
        %1827 = vmatpush1.msra.mxu0 0.0
        %1828 = vmatprep.subr.mxu0 0.0
        %1829 = vmatpush1.msra.mxu0 0.0
        %1830 = vmatprep.subr.mxu0 0.0
        %1831 = vmatpush1.msra.mxu0 0.0
        %1832 = vmatprep.subr.mxu0 0.0
        %1833 = vmatpush1.msra.mxu0 0.0
        %1834 = vmatprep.subr.mxu0 0.0
        %1835 = vmatpush1.msra.mxu0 0.0
        %1836 = vmatprep.subr.mxu0 0.0
        %1837 = vmatpush1.msra.mxu0 0.0
        %1838 = vmatprep.subr.mxu0 %v1635
        %1839 = vmatpush1.msra.mxu0 %v1634
        %1840 = vmatprep.subr.mxu0 %v1633
        %1841 = vmatpush1.msra.mxu0 %v1632
        %1842 = vmatprep.subr.mxu0 %v1631
        %1843 = vmatpush1.msra.mxu0 %v1630
        %1844 = vmatprep.subr.mxu0 %v1629
        %1845 = vmatpush1.msra.mxu0 %v1628
        %1846 = vmatprep.subr.mxu0 0.0
        %1847 = vmatpush2.msra.mxu0 0.0
        %1848 = vmatprep.subr.mxu0 0.0
        %1849 = vmatpush2.msra.mxu0 0.0
        %1850 = vmatprep.subr.mxu0 0.0
        %1851 = vmatpush2.msra.mxu0 0.0
        %1852 = vmatprep.subr.mxu0 0.0
        %1853 = vmatpush2.msra.mxu0 0.0
        %1854 = vmatprep.subr.mxu0 0.0
        %1855 = vmatpush2.msra.mxu0 0.0
        %1856 = vmatprep.subr.mxu0 0.0
        %1857 = vmatpush2.msra.mxu0 0.0
        %1858 = vmatprep.subr.mxu0 0.0
        %1859 = vmatpush2.msra.mxu0 0.0
        %1860 = vmatprep.subr.mxu0 0.0
        %1861 = vmatpush2.msra.mxu0 0.0
        %1862 = vmatprep.subr.mxu0 0.0
        %1863 = vmatpush2.msra.mxu0 0.0
        %1864 = vmatprep.subr.mxu0 0.0
        %1865 = vmatpush2.msra.mxu0 0.0
        %1866 = vmatprep.subr.mxu0 0.0
        %1867 = vmatpush2.msra.mxu0 0.0
        %1868 = vmatprep.subr.mxu0 0.0
        %1869 = vmatpush2.msra.mxu0 0.0
        %1870 = vmatprep.subr.mxu0 0.0
        %1871 = vmatpush2.msra.mxu0 0.0
        %1872 = vmatprep.subr.mxu0 0.0
        %1873 = vmatpush2.msra.mxu0 0.0
        %1874 = vmatprep.subr.mxu0 0.0
        %1875 = vmatpush2.msra.mxu0 0.0
        %1876 = vmatprep.subr.mxu0 0.0
        %1877 = vmatpush2.msra.mxu0 0.0
        %1878 = vmatprep.mubr.f32.mxu0 0.0
        %1879 = vmatmul.mubr.f32.gmra.mxu0 %v1158
        %v1880 = vpop.f32.mrf.mxu0
        %v1881 = vadd.f32 0.0, %v1880
        %v1882 = vpop.f32.mrf.mxu0
        %v1883 = vadd.f32 0.0, %v1882
        %1884 = vmatprep.mubr.f32.mxu0 0.0
        %1885 = vmatmul.mubr.f32.gmra.mxu0 %v1161
        %v1886 = vpop.f32.mrf.mxu0
        %v1887 = vadd.f32 0.0, %v1886
        %v1888 = vpop.f32.mrf.mxu0
        %v1889 = vadd.f32 0.0, %v1888
        %1890 = vmatprep.mubr.f32.mxu0 0.0
        %1891 = vmatmul.mubr.f32.gmra.mxu0 %v1164
        %v1892 = vpop.f32.mrf.mxu0
        %v1893 = vadd.f32 0.0, %v1892
        %v1894 = vpop.f32.mrf.mxu0
        %v1895 = vadd.f32 0.0, %v1894
        %1896 = vmatprep.mubr.f32.mxu0 0.0
        %1897 = vmatmul.mubr.f32.gmra.mxu0 %v1167
        %v1898 = vpop.f32.mrf.mxu0
        %v1899 = vadd.f32 0.0, %v1898
        %v1900 = vpop.f32.mrf.mxu0
        %v1901 = vadd.f32 0.0, %v1900
        %1902 = vdwg.mxu0
        %v1903 = vadd.f32 %v1792, %v1881
        %v1904 = vadd.f32 %v1794, %v1883
        %v1905 = vadd.f32 %v1798, %v1887
        %v1906 = vadd.f32 %v1800, %v1889
        %v1907 = vadd.f32 %v1804, %v1893
        %v1908 = vadd.f32 %v1806, %v1895
        %v1909 = vadd.f32 %v1810, %v1899
        %v1910 = vadd.f32 %v1812, %v1901
        %v1911 = vadd.f32 %v1903, %v1269
        %v1912 = vadd.f32 %v1904, %v1269
        %v1913 = vadd.f32 %v1905, %v1274
        %v1914 = vadd.f32 %v1906, %v1274
        %v1915 = vadd.f32 %v1907, %v1279
        %v1916 = vadd.f32 %v1908, %v1279
        %v1917 = vadd.f32 %v1909, %v1284
        %v1918 = vadd.f32 %v1910, %v1284
        %v1919 = vmax.f32 %v1911, 0.0
        %v1920 = vmax.f32 %v1912, 0.0
        %v1921 = vmax.f32 %v1913, 0.0
        %v1922 = vmax.f32 %v1914, 0.0
        %v1923 = vmax.f32 %v1915, 0.0
        %v1924 = vmax.f32 %v1916, 0.0
        %v1925 = vmax.f32 %v1917, 0.0
        %v1926 = vmax.f32 %v1918, 0.0
        %s1927 = scalar_lea.vmem [#allocation2], 16
        %1928 = vst [vmem:[%s1927] sm:$0xff] %v1919
        %s1929 = scalar_lea.vmem [#allocation2], 48
        %1930 = vst [vmem:[%s1929] sm:$0xff] %v1921
        %s1931 = scalar_lea.vmem [#allocation2], 80
        %1932 = vst [vmem:[%s1931] sm:$0xff] %v1923
        %s1933 = scalar_lea.vmem [#allocation2], 112
        %1934 = vst [vmem:[%s1933] sm:$0xff] %v1925
        %s1935 = scalar_lea.vmem [#allocation2], 24
        %1936 = vst [vmem:[%s1935] sm:$0xff] %v1920
        %s1937 = scalar_lea.vmem [#allocation2], 56
        %1938 = vst [vmem:[%s1937] sm:$0xff] %v1922
        %s1939 = scalar_lea.vmem [#allocation2], 88
        %1940 = vst [vmem:[%s1939] sm:$0xff] %v1924
        %s1941 = scalar_lea.vmem [#allocation2], 120
        %1942 = vst [vmem:[%s1941] sm:$0xff] %v1926
      $region92: #{high_level_conv_qf_forward.1} parent=87 // pred_fallthru
        _
      %s1943 = smul.u32 %s30, 32
      %s1944 = scalar_lea.vmem [#allocation2], %s1943
      %v1945 = vld [vmem:[%s1944] sm:$0xff]
      %v1946 = vld [vmem:[%s1944 + $0x8] sm:$0xff]
      %v1947 = vld [vmem:[%s1944 + $0x10] sm:$0xff]
      %v1948 = vld [vmem:[%s1944 + $0x18] sm:$0xff]
      %v1949 = vpack.c.bf16 %v1945, %v1945
      %v1950 = vpack.c.bf16 %v1946, %v1946
      %v1951 = vpack.c.bf16 %v1947, %v1947
      %v1952 = vpack.c.bf16 %v1948, %v1948
      %v1953 = vld [vmem:[%s539] sm:$0xff]
      %v1954 = vld [vmem:[%s539 + $0x8] sm:$0xff]
      %v1955 = vld [vmem:[%s539 + $0x10] sm:$0xff]
      %v1956 = vld [vmem:[%s539 + $0x18] sm:$0xff]
      %v1957 = vld [vmem:[%s539 + $0x20] sm:$0xff]
      %v1958 = vld [vmem:[%s539 + $0x28] sm:$0xff]
      %v1959 = vld [vmem:[%s539 + $0x30] sm:$0xff]
      %v1960 = vld [vmem:[%s539 + $0x38] sm:$0xff]
      %v1961 = vld [vmem:[%s539 + $0x40] sm:$0xff]
      %v1962 = vld [vmem:[%s539 + $0x48] sm:$0xff]
      %v1963 = vld [vmem:[%s539 + $0x50] sm:$0xff]
      %v1964 = vld [vmem:[%s539 + $0x58] sm:$0xff]
      %v1965 = vld [vmem:[%s539 + $0x60] sm:$0xff]
      %v1966 = vld [vmem:[%s539 + $0x68] sm:$0xff]
      %v1967 = vld [vmem:[%s539 + $0x70] sm:$0xff]
      %v1968 = vld [vmem:[%s539 + $0x78] sm:$0xff]
      %s1969 = scalar_lea.vmem %s539, 128
      %v1970 = vld [vmem:[%s1969] sm:$0xff]
      %v1971 = vld [vmem:[%s1969 + $0x8] sm:$0xff]
      %v1972 = vld [vmem:[%s1969 + $0x10] sm:$0xff]
      %v1973 = vld [vmem:[%s1969 + $0x18] sm:$0xff]
      %v1974 = vld [vmem:[%s1969 + $0x20] sm:$0xff]
      %v1975 = vld [vmem:[%s1969 + $0x28] sm:$0xff]
      %v1976 = vld [vmem:[%s1969 + $0x30] sm:$0xff]
      %v1977 = vld [vmem:[%s1969 + $0x38] sm:$0xff]
      %v1978 = vld [vmem:[%s1969 + $0x40] sm:$0xff]
      %v1979 = vld [vmem:[%s1969 + $0x48] sm:$0xff]
      %v1980 = vld [vmem:[%s1969 + $0x50] sm:$0xff]
      %v1981 = vld [vmem:[%s1969 + $0x58] sm:$0xff]
      %v1982 = vld [vmem:[%s1969 + $0x60] sm:$0xff]
      %v1983 = vld [vmem:[%s1969 + $0x68] sm:$0xff]
      %v1984 = vld [vmem:[%s1969 + $0x70] sm:$0xff]
      %v1985 = vld [vmem:[%s1969 + $0x78] sm:$0xff]
      %v1990 = vunpack.c.l.b16 %v1949
      %v1991 = vunpack.c.l.b16 %v1950
      %v1992 = vunpack.c.l.b16 %v1951
      %v1993 = vunpack.c.l.b16 %v1952
      %v1994 = vrot.slane %v1990, 1
      %vm1995 = vcmask 1041409
      %v1996 = vsel %vm1995, %v1991, %v1994
      %v1997 = vrot.slane %v1992, 7
      %vm1998 = vcmask 1042434
      %v1999 = vsel %vm1998, %v1997, %v1996
      %v2000 = vrot.slane %v1993, 6
      %vm2001 = vcmask 1043459
      %v2002 = vsel %vm2001, %v2000, %v1999
      %v2003 = vpack.c.b16 %v2002, %v2002
      %v2021 = vunpack.c.l.b16 %v1970
      %v2022 = vunpack.c.h.b16 %v1970
      %v2023 = vunpack.c.l.b16 %v1971
      %v2024 = vunpack.c.h.b16 %v1971
      %v2025 = vunpack.c.l.b16 %v1972
      %v2026 = vunpack.c.h.b16 %v1972
      %v2027 = vunpack.c.l.b16 %v1973
      %v2028 = vunpack.c.h.b16 %v1973
      %v2029 = vunpack.c.l.b16 %v1974
      %v2030 = vunpack.c.h.b16 %v1974
      %v2031 = vunpack.c.l.b16 %v1975
      %v2032 = vunpack.c.h.b16 %v1975
      %v2033 = vunpack.c.l.b16 %v1976
      %v2034 = vunpack.c.h.b16 %v1976
      %v2035 = vunpack.c.l.b16 %v1977
      %v2036 = vunpack.c.h.b16 %v1977
      %v2037 = vunpack.c.l.b16 %v1978
      %v2038 = vunpack.c.h.b16 %v1978
      %v2039 = vunpack.c.l.b16 %v1979
      %v2040 = vunpack.c.h.b16 %v1979
      %v2041 = vunpack.c.l.b16 %v1980
      %v2042 = vunpack.c.h.b16 %v1980
      %v2043 = vunpack.c.l.b16 %v1981
      %v2044 = vunpack.c.h.b16 %v1981
      %v2045 = vunpack.c.l.b16 %v1982
      %v2046 = vunpack.c.h.b16 %v1982
      %v2047 = vunpack.c.l.b16 %v1983
      %v2048 = vunpack.c.h.b16 %v1983
      %v2049 = vunpack.c.l.b16 %v1984
      %v2050 = vunpack.c.h.b16 %v1984
      %v2051 = vunpack.c.l.b16 %v1985
      %v2052 = vunpack.c.h.b16 %v1985
      %v2053 = vpack.c.b16 %v2023, %v2021
      %v2054 = vpack.c.b16 %v2024, %v2022
      %v2055 = vpack.c.b16 %v2027, %v2025
      %v2056 = vpack.c.b16 %v2028, %v2026
      %v2057 = vpack.c.b16 %v2031, %v2029
      %v2058 = vpack.c.b16 %v2032, %v2030
      %v2059 = vpack.c.b16 %v2035, %v2033
      %v2060 = vpack.c.b16 %v2036, %v2034
      %v2061 = vpack.c.b16 %v2039, %v2037
      %v2062 = vpack.c.b16 %v2040, %v2038
      %v2063 = vpack.c.b16 %v2043, %v2041
      %v2064 = vpack.c.b16 %v2044, %v2042
      %v2065 = vpack.c.b16 %v2047, %v2045
      %v2066 = vpack.c.b16 %v2048, %v2046
      %v2067 = vpack.c.b16 %v2051, %v2049
      %v2068 = vpack.c.b16 %v2052, %v2050
      %2085 = vmatprep.subr.bf16.mxu0 %v2068
      %2086 = vmatpush1.bf16.msra.mxu0 %v2067
      %2087 = vmatprep.subr.bf16.mxu0 %v2066
      %2088 = vmatpush1.bf16.msra.mxu0 %v2065
      %2089 = vmatprep.subr.bf16.mxu0 %v2064
      %2090 = vmatpush1.bf16.msra.mxu0 %v2063
      %2091 = vmatprep.subr.bf16.mxu0 %v2062
      %2092 = vmatpush1.bf16.msra.mxu0 %v2061
      %2093 = vmatprep.subr.bf16.mxu0 %v2060
      %2094 = vmatpush1.bf16.msra.mxu0 %v2059
      %2095 = vmatprep.subr.bf16.mxu0 %v2058
      %2096 = vmatpush1.bf16.msra.mxu0 %v2057
      %2097 = vmatprep.subr.bf16.mxu0 %v2056
      %2098 = vmatpush1.bf16.msra.mxu0 %v2055
      %2099 = vmatprep.subr.bf16.mxu0 %v2054
      %2100 = vmatpush1.bf16.msra.mxu0 %v2053
      %2101 = vmatprep.subr.bf16.mxu0 0
      %2102 = vmatpush2.bf16.msra.mxu0 0
      %2103 = vmatprep.subr.bf16.mxu0 0
      %2104 = vmatpush2.bf16.msra.mxu0 0
      %2105 = vmatprep.subr.bf16.mxu0 0
      %2106 = vmatpush2.bf16.msra.mxu0 0
      %2107 = vmatprep.subr.bf16.mxu0 0
      %2108 = vmatpush2.bf16.msra.mxu0 0
      %2109 = vmatprep.subr.bf16.mxu0 0
      %2110 = vmatpush2.bf16.msra.mxu0 0
      %2111 = vmatprep.subr.bf16.mxu0 0
      %2112 = vmatpush2.bf16.msra.mxu0 0
      %2113 = vmatprep.subr.bf16.mxu0 0
      %2114 = vmatpush2.bf16.msra.mxu0 0
      %2115 = vmatprep.subr.bf16.mxu0 0
      %2116 = vmatpush2.bf16.msra.mxu0 0
      %2117 = vmatprep.mubr.bf16.mxu0 0
      %2118 = vmatmul.mubr.bf16.gmra.mxu0 %v2003
      %v2119 = vpop.f32.mrf.mxu0
      %v2120 = vadd.f32 0.0, %v2119
      %v2121 = vpop.f32.mrf.mxu0
      %v2122 = vadd.f32 0.0, %v2121
      %v2123 = vpop.f32.mrf.mxu0
      %v2124 = vpop.f32.mrf.mxu0
      %2125 = vdwg.mxu0
      %v2126 = vrot.slane %v1991, 7
      %v2127 = vsel %vm1995, %v2126, %v1990
      %v2128 = vrot.slane %v1992, 6
      %v2129 = vsel %vm1998, %v2128, %v2127
      %v2130 = vrot.slane %v1993, 5
      %v2131 = vsel %vm2001, %v2130, %v2129
      %v2132 = vpack.c.b16 %v2131, %v2131
      %v2150 = vunpack.c.l.b16 %v1953
      %v2151 = vunpack.c.h.b16 %v1953
      %v2152 = vunpack.c.l.b16 %v1954
      %v2153 = vunpack.c.h.b16 %v1954
      %v2154 = vunpack.c.l.b16 %v1955
      %v2155 = vunpack.c.h.b16 %v1955
      %v2156 = vunpack.c.l.b16 %v1956
      %v2157 = vunpack.c.h.b16 %v1956
      %v2158 = vunpack.c.l.b16 %v1957
      %v2159 = vunpack.c.h.b16 %v1957
      %v2160 = vunpack.c.l.b16 %v1958
      %v2161 = vunpack.c.h.b16 %v1958
      %v2162 = vunpack.c.l.b16 %v1959
      %v2163 = vunpack.c.h.b16 %v1959
      %v2164 = vunpack.c.l.b16 %v1960
      %v2165 = vunpack.c.h.b16 %v1960
      %v2166 = vunpack.c.l.b16 %v1961
      %v2167 = vunpack.c.h.b16 %v1961
      %v2168 = vunpack.c.l.b16 %v1962
      %v2169 = vunpack.c.h.b16 %v1962
      %v2170 = vunpack.c.l.b16 %v1963
      %v2171 = vunpack.c.h.b16 %v1963
      %v2172 = vunpack.c.l.b16 %v1964
      %v2173 = vunpack.c.h.b16 %v1964
      %v2174 = vunpack.c.l.b16 %v1965
      %v2175 = vunpack.c.h.b16 %v1965
      %v2176 = vunpack.c.l.b16 %v1966
      %v2177 = vunpack.c.h.b16 %v1966
      %v2178 = vunpack.c.l.b16 %v1967
      %v2179 = vunpack.c.h.b16 %v1967
      %v2180 = vunpack.c.l.b16 %v1968
      %v2181 = vunpack.c.h.b16 %v1968
      %v2182 = vpack.c.b16 %v2152, %v2150
      %v2183 = vpack.c.b16 %v2153, %v2151
      %v2184 = vpack.c.b16 %v2156, %v2154
      %v2185 = vpack.c.b16 %v2157, %v2155
      %v2186 = vpack.c.b16 %v2160, %v2158
      %v2187 = vpack.c.b16 %v2161, %v2159
      %v2188 = vpack.c.b16 %v2164, %v2162
      %v2189 = vpack.c.b16 %v2165, %v2163
      %v2190 = vpack.c.b16 %v2168, %v2166
      %v2191 = vpack.c.b16 %v2169, %v2167
      %v2192 = vpack.c.b16 %v2172, %v2170
      %v2193 = vpack.c.b16 %v2173, %v2171
      %v2194 = vpack.c.b16 %v2176, %v2174
      %v2195 = vpack.c.b16 %v2177, %v2175
      %v2196 = vpack.c.b16 %v2180, %v2178
      %v2197 = vpack.c.b16 %v2181, %v2179
      %2214 = vmatprep.subr.bf16.mxu0 %v2197
      %2215 = vmatpush1.bf16.msra.mxu0 %v2196
      %2216 = vmatprep.subr.bf16.mxu0 %v2195
      %2217 = vmatpush1.bf16.msra.mxu0 %v2194
      %2218 = vmatprep.subr.bf16.mxu0 %v2193
      %2219 = vmatpush1.bf16.msra.mxu0 %v2192
      %2220 = vmatprep.subr.bf16.mxu0 %v2191
      %2221 = vmatpush1.bf16.msra.mxu0 %v2190
      %2222 = vmatprep.subr.bf16.mxu0 %v2189
      %2223 = vmatpush1.bf16.msra.mxu0 %v2188
      %2224 = vmatprep.subr.bf16.mxu0 %v2187
      %2225 = vmatpush1.bf16.msra.mxu0 %v2186
      %2226 = vmatprep.subr.bf16.mxu0 %v2185
      %2227 = vmatpush1.bf16.msra.mxu0 %v2184
      %2228 = vmatprep.subr.bf16.mxu0 %v2183
      %2229 = vmatpush1.bf16.msra.mxu0 %v2182
      %2230 = vmatprep.subr.bf16.mxu0 0
      %2231 = vmatpush2.bf16.msra.mxu0 0
      %2232 = vmatprep.subr.bf16.mxu0 0
      %2233 = vmatpush2.bf16.msra.mxu0 0
      %2234 = vmatprep.subr.bf16.mxu0 0
      %2235 = vmatpush2.bf16.msra.mxu0 0
      %2236 = vmatprep.subr.bf16.mxu0 0
      %2237 = vmatpush2.bf16.msra.mxu0 0
      %2238 = vmatprep.subr.bf16.mxu0 0
      %2239 = vmatpush2.bf16.msra.mxu0 0
      %2240 = vmatprep.subr.bf16.mxu0 0
      %2241 = vmatpush2.bf16.msra.mxu0 0
      %2242 = vmatprep.subr.bf16.mxu0 0
      %2243 = vmatpush2.bf16.msra.mxu0 0
      %2244 = vmatprep.subr.bf16.mxu0 0
      %2245 = vmatpush2.bf16.msra.mxu0 0
      %2246 = vmatprep.mubr.bf16.mxu0 0
      %2247 = vmatmul.mubr.bf16.gmra.mxu0 %v2132
      %v2248 = vpop.f32.mrf.mxu0
      %v2249 = vadd.f32 %v2120, %v2248
      %v2250 = vpop.f32.mrf.mxu0
      %v2251 = vadd.f32 %v2122, %v2250
      %v2252 = vpop.f32.mrf.mxu0
      %v2253 = vpop.f32.mrf.mxu0
      %2254 = vdwg.mxu0
      %s2255 = scalar_lea.vmem %s539, 256
      %v2256 = vld [vmem:[%s2255] sm:$0xff]
      %v2257 = vld [vmem:[%s2255 + $0x8] sm:$0xff]
      %v2258 = vld [vmem:[%s2255 + $0x10] sm:$0xff]
      %v2259 = vld [vmem:[%s2255 + $0x18] sm:$0xff]
      %v2260 = vld [vmem:[%s2255 + $0x20] sm:$0xff]
      %v2261 = vld [vmem:[%s2255 + $0x28] sm:$0xff]
      %v2262 = vld [vmem:[%s2255 + $0x30] sm:$0xff]
      %v2263 = vld [vmem:[%s2255 + $0x38] sm:$0xff]
      %v2264 = vld [vmem:[%s2255 + $0x40] sm:$0xff]
      %v2265 = vld [vmem:[%s2255 + $0x48] sm:$0xff]
      %v2266 = vld [vmem:[%s2255 + $0x50] sm:$0xff]
      %v2267 = vld [vmem:[%s2255 + $0x58] sm:$0xff]
      %v2268 = vld [vmem:[%s2255 + $0x60] sm:$0xff]
      %v2269 = vld [vmem:[%s2255 + $0x68] sm:$0xff]
      %v2270 = vld [vmem:[%s2255 + $0x70] sm:$0xff]
      %v2271 = vld [vmem:[%s2255 + $0x78] sm:$0xff]
      %v2272 = vrot.slane %v1990, 2
      %v2273 = vrot.slane %v1991, 1
      %v2274 = vsel %vm1995, %v2273, %v2272
      %v2275 = vsel %vm1998, %v1992, %v2274
      %v2276 = vrot.slane %v1993, 7
      %v2277 = vsel %vm2001, %v2276, %v2275
      %v2278 = vpack.c.b16 %v2277, %v2277
      %v2296 = vunpack.c.l.b16 %v2256
      %v2297 = vunpack.c.h.b16 %v2256
      %v2298 = vunpack.c.l.b16 %v2257
      %v2299 = vunpack.c.h.b16 %v2257
      %v2300 = vunpack.c.l.b16 %v2258
      %v2301 = vunpack.c.h.b16 %v2258
      %v2302 = vunpack.c.l.b16 %v2259
      %v2303 = vunpack.c.h.b16 %v2259
      %v2304 = vunpack.c.l.b16 %v2260
      %v2305 = vunpack.c.h.b16 %v2260
      %v2306 = vunpack.c.l.b16 %v2261
      %v2307 = vunpack.c.h.b16 %v2261
      %v2308 = vunpack.c.l.b16 %v2262
      %v2309 = vunpack.c.h.b16 %v2262
      %v2310 = vunpack.c.l.b16 %v2263
      %v2311 = vunpack.c.h.b16 %v2263
      %v2312 = vunpack.c.l.b16 %v2264
      %v2313 = vunpack.c.h.b16 %v2264
      %v2314 = vunpack.c.l.b16 %v2265
      %v2315 = vunpack.c.h.b16 %v2265
      %v2316 = vunpack.c.l.b16 %v2266
      %v2317 = vunpack.c.h.b16 %v2266
      %v2318 = vunpack.c.l.b16 %v2267
      %v2319 = vunpack.c.h.b16 %v2267
      %v2320 = vunpack.c.l.b16 %v2268
      %v2321 = vunpack.c.h.b16 %v2268
      %v2322 = vunpack.c.l.b16 %v2269
      %v2323 = vunpack.c.h.b16 %v2269
      %v2324 = vunpack.c.l.b16 %v2270
      %v2325 = vunpack.c.h.b16 %v2270
      %v2326 = vunpack.c.l.b16 %v2271
      %v2327 = vunpack.c.h.b16 %v2271
      %v2328 = vpack.c.b16 %v2298, %v2296
      %v2329 = vpack.c.b16 %v2299, %v2297
      %v2330 = vpack.c.b16 %v2302, %v2300
      %v2331 = vpack.c.b16 %v2303, %v2301
      %v2332 = vpack.c.b16 %v2306, %v2304
      %v2333 = vpack.c.b16 %v2307, %v2305
      %v2334 = vpack.c.b16 %v2310, %v2308
      %v2335 = vpack.c.b16 %v2311, %v2309
      %v2336 = vpack.c.b16 %v2314, %v2312
      %v2337 = vpack.c.b16 %v2315, %v2313
      %v2338 = vpack.c.b16 %v2318, %v2316
      %v2339 = vpack.c.b16 %v2319, %v2317
      %v2340 = vpack.c.b16 %v2322, %v2320
      %v2341 = vpack.c.b16 %v2323, %v2321
      %v2342 = vpack.c.b16 %v2326, %v2324
      %v2343 = vpack.c.b16 %v2327, %v2325
      %2360 = vmatprep.subr.bf16.mxu0 %v2343
      %2361 = vmatpush1.bf16.msra.mxu0 %v2342
      %2362 = vmatprep.subr.bf16.mxu0 %v2341
      %2363 = vmatpush1.bf16.msra.mxu0 %v2340
      %2364 = vmatprep.subr.bf16.mxu0 %v2339
      %2365 = vmatpush1.bf16.msra.mxu0 %v2338
      %2366 = vmatprep.subr.bf16.mxu0 %v2337
      %2367 = vmatpush1.bf16.msra.mxu0 %v2336
      %2368 = vmatprep.subr.bf16.mxu0 %v2335
      %2369 = vmatpush1.bf16.msra.mxu0 %v2334
      %2370 = vmatprep.subr.bf16.mxu0 %v2333
      %2371 = vmatpush1.bf16.msra.mxu0 %v2332
      %2372 = vmatprep.subr.bf16.mxu0 %v2331
      %2373 = vmatpush1.bf16.msra.mxu0 %v2330
      %2374 = vmatprep.subr.bf16.mxu0 %v2329
      %2375 = vmatpush1.bf16.msra.mxu0 %v2328
      %2376 = vmatprep.subr.bf16.mxu0 0
      %2377 = vmatpush2.bf16.msra.mxu0 0
      %2378 = vmatprep.subr.bf16.mxu0 0
      %2379 = vmatpush2.bf16.msra.mxu0 0
      %2380 = vmatprep.subr.bf16.mxu0 0
      %2381 = vmatpush2.bf16.msra.mxu0 0
      %2382 = vmatprep.subr.bf16.mxu0 0
      %2383 = vmatpush2.bf16.msra.mxu0 0
      %2384 = vmatprep.subr.bf16.mxu0 0
      %2385 = vmatpush2.bf16.msra.mxu0 0
      %2386 = vmatprep.subr.bf16.mxu0 0
      %2387 = vmatpush2.bf16.msra.mxu0 0
      %2388 = vmatprep.subr.bf16.mxu0 0
      %2389 = vmatpush2.bf16.msra.mxu0 0
      %2390 = vmatprep.subr.bf16.mxu0 0
      %2391 = vmatpush2.bf16.msra.mxu0 0
      %2392 = vmatprep.mubr.bf16.mxu0 0
      %2393 = vmatmul.mubr.bf16.gmra.mxu0 %v2278
      %v2394 = vpop.f32.mrf.mxu0
      %v2395 = vadd.f32 0.0, %v2394
      %v2396 = vpop.f32.mrf.mxu0
      %v2397 = vadd.f32 0.0, %v2396
      %v2398 = vpop.f32.mrf.mxu0
      %v2399 = vpop.f32.mrf.mxu0
      %2400 = vdwg.mxu0
      %v2401 = vadd.f32 %v2249, %v2395
      %v2402 = vadd.f32 %v2251, %v2397
      %s2403 = scalar_lea.vmem %s539, 384
      %v2404 = vld [vmem:[%s2403] sm:$0xff]
      %v2405 = vld [vmem:[%s2403 + $0x8] sm:$0xff]
      %v2406 = vld [vmem:[%s2403 + $0x10] sm:$0xff]
      %v2407 = vld [vmem:[%s2403 + $0x18] sm:$0xff]
      %v2408 = vld [vmem:[%s2403 + $0x20] sm:$0xff]
      %v2409 = vld [vmem:[%s2403 + $0x28] sm:$0xff]
      %v2410 = vld [vmem:[%s2403 + $0x30] sm:$0xff]
      %v2411 = vld [vmem:[%s2403 + $0x38] sm:$0xff]
      %v2412 = vld [vmem:[%s2403 + $0x40] sm:$0xff]
      %v2413 = vld [vmem:[%s2403 + $0x48] sm:$0xff]
      %v2414 = vld [vmem:[%s2403 + $0x50] sm:$0xff]
      %v2415 = vld [vmem:[%s2403 + $0x58] sm:$0xff]
      %v2416 = vld [vmem:[%s2403 + $0x60] sm:$0xff]
      %v2417 = vld [vmem:[%s2403 + $0x68] sm:$0xff]
      %v2418 = vld [vmem:[%s2403 + $0x70] sm:$0xff]
      %v2419 = vld [vmem:[%s2403 + $0x78] sm:$0xff]
      %v2420 = vrot.slane %v1990, 3
      %v2421 = vrot.slane %v1991, 2
      %v2422 = vsel %vm1995, %v2421, %v2420
      %v2423 = vrot.slane %v1992, 1
      %v2424 = vsel %vm1998, %v2423, %v2422
      %v2425 = vsel %vm2001, %v1993, %v2424
      %v2426 = vpack.c.b16 %v2425, %v2425
      %v2444 = vunpack.c.l.b16 %v2404
      %v2445 = vunpack.c.h.b16 %v2404
      %v2446 = vunpack.c.l.b16 %v2405
      %v2447 = vunpack.c.h.b16 %v2405
      %v2448 = vunpack.c.l.b16 %v2406
      %v2449 = vunpack.c.h.b16 %v2406
      %v2450 = vunpack.c.l.b16 %v2407
      %v2451 = vunpack.c.h.b16 %v2407
      %v2452 = vunpack.c.l.b16 %v2408
      %v2453 = vunpack.c.h.b16 %v2408
      %v2454 = vunpack.c.l.b16 %v2409
      %v2455 = vunpack.c.h.b16 %v2409
      %v2456 = vunpack.c.l.b16 %v2410
      %v2457 = vunpack.c.h.b16 %v2410
      %v2458 = vunpack.c.l.b16 %v2411
      %v2459 = vunpack.c.h.b16 %v2411
      %v2460 = vunpack.c.l.b16 %v2412
      %v2461 = vunpack.c.h.b16 %v2412
      %v2462 = vunpack.c.l.b16 %v2413
      %v2463 = vunpack.c.h.b16 %v2413
      %v2464 = vunpack.c.l.b16 %v2414
      %v2465 = vunpack.c.h.b16 %v2414
      %v2466 = vunpack.c.l.b16 %v2415
      %v2467 = vunpack.c.h.b16 %v2415
      %v2468 = vunpack.c.l.b16 %v2416
      %v2469 = vunpack.c.h.b16 %v2416
      %v2470 = vunpack.c.l.b16 %v2417
      %v2471 = vunpack.c.h.b16 %v2417
      %v2472 = vunpack.c.l.b16 %v2418
      %v2473 = vunpack.c.h.b16 %v2418
      %v2474 = vunpack.c.l.b16 %v2419
      %v2475 = vunpack.c.h.b16 %v2419
      %v2476 = vpack.c.b16 %v2446, %v2444
      %v2477 = vpack.c.b16 %v2447, %v2445
      %v2478 = vpack.c.b16 %v2450, %v2448
      %v2479 = vpack.c.b16 %v2451, %v2449
      %v2480 = vpack.c.b16 %v2454, %v2452
      %v2481 = vpack.c.b16 %v2455, %v2453
      %v2482 = vpack.c.b16 %v2458, %v2456
      %v2483 = vpack.c.b16 %v2459, %v2457
      %v2484 = vpack.c.b16 %v2462, %v2460
      %v2485 = vpack.c.b16 %v2463, %v2461
      %v2486 = vpack.c.b16 %v2466, %v2464
      %v2487 = vpack.c.b16 %v2467, %v2465
      %v2488 = vpack.c.b16 %v2470, %v2468
      %v2489 = vpack.c.b16 %v2471, %v2469
      %v2490 = vpack.c.b16 %v2474, %v2472
      %v2491 = vpack.c.b16 %v2475, %v2473
      %2508 = vmatprep.subr.bf16.mxu0 %v2491
      %2509 = vmatpush1.bf16.msra.mxu0 %v2490
      %2510 = vmatprep.subr.bf16.mxu0 %v2489
      %2511 = vmatpush1.bf16.msra.mxu0 %v2488
      %2512 = vmatprep.subr.bf16.mxu0 %v2487
      %2513 = vmatpush1.bf16.msra.mxu0 %v2486
      %2514 = vmatprep.subr.bf16.mxu0 %v2485
      %2515 = vmatpush1.bf16.msra.mxu0 %v2484
      %2516 = vmatprep.subr.bf16.mxu0 %v2483
      %2517 = vmatpush1.bf16.msra.mxu0 %v2482
      %2518 = vmatprep.subr.bf16.mxu0 %v2481
      %2519 = vmatpush1.bf16.msra.mxu0 %v2480
      %2520 = vmatprep.subr.bf16.mxu0 %v2479
      %2521 = vmatpush1.bf16.msra.mxu0 %v2478
      %2522 = vmatprep.subr.bf16.mxu0 %v2477
      %2523 = vmatpush1.bf16.msra.mxu0 %v2476
      %2524 = vmatprep.subr.bf16.mxu0 0
      %2525 = vmatpush2.bf16.msra.mxu0 0
      %2526 = vmatprep.subr.bf16.mxu0 0
      %2527 = vmatpush2.bf16.msra.mxu0 0
      %2528 = vmatprep.subr.bf16.mxu0 0
      %2529 = vmatpush2.bf16.msra.mxu0 0
      %2530 = vmatprep.subr.bf16.mxu0 0
      %2531 = vmatpush2.bf16.msra.mxu0 0
      %2532 = vmatprep.subr.bf16.mxu0 0
      %2533 = vmatpush2.bf16.msra.mxu0 0
      %2534 = vmatprep.subr.bf16.mxu0 0
      %2535 = vmatpush2.bf16.msra.mxu0 0
      %2536 = vmatprep.subr.bf16.mxu0 0
      %2537 = vmatpush2.bf16.msra.mxu0 0
      %2538 = vmatprep.subr.bf16.mxu0 0
      %2539 = vmatpush2.bf16.msra.mxu0 0
      %2540 = vmatprep.mubr.bf16.mxu0 0
      %2541 = vmatmul.mubr.bf16.gmra.mxu0 %v2426
      %v2542 = vpop.f32.mrf.mxu0
      %v2543 = vadd.f32 0.0, %v2542
      %v2544 = vpop.f32.mrf.mxu0
      %v2545 = vadd.f32 0.0, %v2544
      %v2546 = vpop.f32.mrf.mxu0
      %v2547 = vpop.f32.mrf.mxu0
      %2548 = vdwg.mxu0
      %v2549 = vadd.f32 %v2401, %v2543
      %v2550 = vadd.f32 %v2402, %v2545
      %s2551 = scalar_lea.vmem %s539, 512
      %v2552 = vld [vmem:[%s2551] sm:$0xff]
      %v2553 = vld [vmem:[%s2551 + $0x8] sm:$0xff]
      %v2554 = vld [vmem:[%s2551 + $0x10] sm:$0xff]
      %v2555 = vld [vmem:[%s2551 + $0x18] sm:$0xff]
      %v2556 = vld [vmem:[%s2551 + $0x20] sm:$0xff]
      %v2557 = vld [vmem:[%s2551 + $0x28] sm:$0xff]
      %v2558 = vld [vmem:[%s2551 + $0x30] sm:$0xff]
      %v2559 = vld [vmem:[%s2551 + $0x38] sm:$0xff]
      %v2560 = vld [vmem:[%s2551 + $0x40] sm:$0xff]
      %v2561 = vld [vmem:[%s2551 + $0x48] sm:$0xff]
      %v2562 = vld [vmem:[%s2551 + $0x50] sm:$0xff]
      %v2563 = vld [vmem:[%s2551 + $0x58] sm:$0xff]
      %v2564 = vld [vmem:[%s2551 + $0x60] sm:$0xff]
      %v2565 = vld [vmem:[%s2551 + $0x68] sm:$0xff]
      %v2566 = vld [vmem:[%s2551 + $0x70] sm:$0xff]
      %v2567 = vld [vmem:[%s2551 + $0x78] sm:$0xff]
      %v2568 = vrot.slane %v1990, 4
      %v2569 = vrot.slane %v1991, 3
      %v2570 = vsel %vm1995, %v2569, %v2568
      %v2571 = vrot.slane %v1992, 2
      %v2572 = vsel %vm1998, %v2571, %v2570
      %v2573 = vrot.slane %v1993, 1
      %v2574 = vsel %vm2001, %v2573, %v2572
      %v2575 = vpack.c.b16 %v2574, %v2574
      %v2593 = vunpack.c.l.b16 %v2552
      %v2594 = vunpack.c.h.b16 %v2552
      %v2595 = vunpack.c.l.b16 %v2553
      %v2596 = vunpack.c.h.b16 %v2553
      %v2597 = vunpack.c.l.b16 %v2554
      %v2598 = vunpack.c.h.b16 %v2554
      %v2599 = vunpack.c.l.b16 %v2555
      %v2600 = vunpack.c.h.b16 %v2555
      %v2601 = vunpack.c.l.b16 %v2556
      %v2602 = vunpack.c.h.b16 %v2556
      %v2603 = vunpack.c.l.b16 %v2557
      %v2604 = vunpack.c.h.b16 %v2557
      %v2605 = vunpack.c.l.b16 %v2558
      %v2606 = vunpack.c.h.b16 %v2558
      %v2607 = vunpack.c.l.b16 %v2559
      %v2608 = vunpack.c.h.b16 %v2559
      %v2609 = vunpack.c.l.b16 %v2560
      %v2610 = vunpack.c.h.b16 %v2560
      %v2611 = vunpack.c.l.b16 %v2561
      %v2612 = vunpack.c.h.b16 %v2561
      %v2613 = vunpack.c.l.b16 %v2562
      %v2614 = vunpack.c.h.b16 %v2562
      %v2615 = vunpack.c.l.b16 %v2563
      %v2616 = vunpack.c.h.b16 %v2563
      %v2617 = vunpack.c.l.b16 %v2564
      %v2618 = vunpack.c.h.b16 %v2564
      %v2619 = vunpack.c.l.b16 %v2565
      %v2620 = vunpack.c.h.b16 %v2565
      %v2621 = vunpack.c.l.b16 %v2566
      %v2622 = vunpack.c.h.b16 %v2566
      %v2623 = vunpack.c.l.b16 %v2567
      %v2624 = vunpack.c.h.b16 %v2567
      %v2625 = vpack.c.b16 %v2595, %v2593
      %v2626 = vpack.c.b16 %v2596, %v2594
      %v2627 = vpack.c.b16 %v2599, %v2597
      %v2628 = vpack.c.b16 %v2600, %v2598
      %v2629 = vpack.c.b16 %v2603, %v2601
      %v2630 = vpack.c.b16 %v2604, %v2602
      %v2631 = vpack.c.b16 %v2607, %v2605
      %v2632 = vpack.c.b16 %v2608, %v2606
      %v2633 = vpack.c.b16 %v2611, %v2609
      %v2634 = vpack.c.b16 %v2612, %v2610
      %v2635 = vpack.c.b16 %v2615, %v2613
      %v2636 = vpack.c.b16 %v2616, %v2614
      %v2637 = vpack.c.b16 %v2619, %v2617
      %v2638 = vpack.c.b16 %v2620, %v2618
      %v2639 = vpack.c.b16 %v2623, %v2621
      %v2640 = vpack.c.b16 %v2624, %v2622
      %2657 = vmatprep.subr.bf16.mxu0 %v2640
      %2658 = vmatpush1.bf16.msra.mxu0 %v2639
      %2659 = vmatprep.subr.bf16.mxu0 %v2638
      %2660 = vmatpush1.bf16.msra.mxu0 %v2637
      %2661 = vmatprep.subr.bf16.mxu0 %v2636
      %2662 = vmatpush1.bf16.msra.mxu0 %v2635
      %2663 = vmatprep.subr.bf16.mxu0 %v2634
      %2664 = vmatpush1.bf16.msra.mxu0 %v2633
      %2665 = vmatprep.subr.bf16.mxu0 %v2632
      %2666 = vmatpush1.bf16.msra.mxu0 %v2631
      %2667 = vmatprep.subr.bf16.mxu0 %v2630
      %2668 = vmatpush1.bf16.msra.mxu0 %v2629
      %2669 = vmatprep.subr.bf16.mxu0 %v2628
      %2670 = vmatpush1.bf16.msra.mxu0 %v2627
      %2671 = vmatprep.subr.bf16.mxu0 %v2626
      %2672 = vmatpush1.bf16.msra.mxu0 %v2625
      %2673 = vmatprep.subr.bf16.mxu0 0
      %2674 = vmatpush2.bf16.msra.mxu0 0
      %2675 = vmatprep.subr.bf16.mxu0 0
      %2676 = vmatpush2.bf16.msra.mxu0 0
      %2677 = vmatprep.subr.bf16.mxu0 0
      %2678 = vmatpush2.bf16.msra.mxu0 0
      %2679 = vmatprep.subr.bf16.mxu0 0
      %2680 = vmatpush2.bf16.msra.mxu0 0
      %2681 = vmatprep.subr.bf16.mxu0 0
      %2682 = vmatpush2.bf16.msra.mxu0 0
      %2683 = vmatprep.subr.bf16.mxu0 0
      %2684 = vmatpush2.bf16.msra.mxu0 0
      %2685 = vmatprep.subr.bf16.mxu0 0
      %2686 = vmatpush2.bf16.msra.mxu0 0
      %2687 = vmatprep.subr.bf16.mxu0 0
      %2688 = vmatpush2.bf16.msra.mxu0 0
      %2689 = vmatprep.mubr.bf16.mxu0 0
      %2690 = vmatmul.mubr.bf16.gmra.mxu0 %v2575
      %v2691 = vpop.f32.mrf.mxu0
      %v2692 = vadd.f32 0.0, %v2691
      %v2693 = vpop.f32.mrf.mxu0
      %v2694 = vadd.f32 0.0, %v2693
      %v2695 = vpop.f32.mrf.mxu0
      %v2696 = vpop.f32.mrf.mxu0
      %2697 = vdwg.mxu0
      %v2698 = vadd.f32 %v2549, %v2692
      %v2699 = vadd.f32 %v2550, %v2694
      %s2700 = scalar_lea.vmem %s539, 640
      %v2701 = vld [vmem:[%s2700] sm:$0xff]
      %v2702 = vld [vmem:[%s2700 + $0x8] sm:$0xff]
      %v2703 = vld [vmem:[%s2700 + $0x10] sm:$0xff]
      %v2704 = vld [vmem:[%s2700 + $0x18] sm:$0xff]
      %v2705 = vld [vmem:[%s2700 + $0x20] sm:$0xff]
      %v2706 = vld [vmem:[%s2700 + $0x28] sm:$0xff]
      %v2707 = vld [vmem:[%s2700 + $0x30] sm:$0xff]
      %v2708 = vld [vmem:[%s2700 + $0x38] sm:$0xff]
      %v2709 = vld [vmem:[%s2700 + $0x40] sm:$0xff]
      %v2710 = vld [vmem:[%s2700 + $0x48] sm:$0xff]
      %v2711 = vld [vmem:[%s2700 + $0x50] sm:$0xff]
      %v2712 = vld [vmem:[%s2700 + $0x58] sm:$0xff]
      %v2713 = vld [vmem:[%s2700 + $0x60] sm:$0xff]
      %v2714 = vld [vmem:[%s2700 + $0x68] sm:$0xff]
      %v2715 = vld [vmem:[%s2700 + $0x70] sm:$0xff]
      %v2716 = vld [vmem:[%s2700 + $0x78] sm:$0xff]
      %v2717 = vrot.slane %v1990, 5
      %v2718 = vrot.slane %v1991, 4
      %v2719 = vsel %vm1995, %v2718, %v2717
      %v2720 = vrot.slane %v1992, 3
      %v2721 = vsel %vm1998, %v2720, %v2719
      %v2722 = vrot.slane %v1993, 2
      %v2723 = vsel %vm2001, %v2722, %v2721
      %v2724 = vpack.c.b16 %v2723, %v2723
      %v2742 = vunpack.c.l.b16 %v2701
      %v2743 = vunpack.c.h.b16 %v2701
      %v2744 = vunpack.c.l.b16 %v2702
      %v2745 = vunpack.c.h.b16 %v2702
      %v2746 = vunpack.c.l.b16 %v2703
      %v2747 = vunpack.c.h.b16 %v2703
      %v2748 = vunpack.c.l.b16 %v2704
      %v2749 = vunpack.c.h.b16 %v2704
      %v2750 = vunpack.c.l.b16 %v2705
      %v2751 = vunpack.c.h.b16 %v2705
      %v2752 = vunpack.c.l.b16 %v2706
      %v2753 = vunpack.c.h.b16 %v2706
      %v2754 = vunpack.c.l.b16 %v2707
      %v2755 = vunpack.c.h.b16 %v2707
      %v2756 = vunpack.c.l.b16 %v2708
      %v2757 = vunpack.c.h.b16 %v2708
      %v2758 = vunpack.c.l.b16 %v2709
      %v2759 = vunpack.c.h.b16 %v2709
      %v2760 = vunpack.c.l.b16 %v2710
      %v2761 = vunpack.c.h.b16 %v2710
      %v2762 = vunpack.c.l.b16 %v2711
      %v2763 = vunpack.c.h.b16 %v2711
      %v2764 = vunpack.c.l.b16 %v2712
      %v2765 = vunpack.c.h.b16 %v2712
      %v2766 = vunpack.c.l.b16 %v2713
      %v2767 = vunpack.c.h.b16 %v2713
      %v2768 = vunpack.c.l.b16 %v2714
      %v2769 = vunpack.c.h.b16 %v2714
      %v2770 = vunpack.c.l.b16 %v2715
      %v2771 = vunpack.c.h.b16 %v2715
      %v2772 = vunpack.c.l.b16 %v2716
      %v2773 = vunpack.c.h.b16 %v2716
      %v2774 = vpack.c.b16 %v2744, %v2742
      %v2775 = vpack.c.b16 %v2745, %v2743
      %v2776 = vpack.c.b16 %v2748, %v2746
      %v2777 = vpack.c.b16 %v2749, %v2747
      %v2778 = vpack.c.b16 %v2752, %v2750
      %v2779 = vpack.c.b16 %v2753, %v2751
      %v2780 = vpack.c.b16 %v2756, %v2754
      %v2781 = vpack.c.b16 %v2757, %v2755
      %v2782 = vpack.c.b16 %v2760, %v2758
      %v2783 = vpack.c.b16 %v2761, %v2759
      %v2784 = vpack.c.b16 %v2764, %v2762
      %v2785 = vpack.c.b16 %v2765, %v2763
      %v2786 = vpack.c.b16 %v2768, %v2766
      %v2787 = vpack.c.b16 %v2769, %v2767
      %v2788 = vpack.c.b16 %v2772, %v2770
      %v2789 = vpack.c.b16 %v2773, %v2771
      %2806 = vmatprep.subr.bf16.mxu0 %v2789
      %2807 = vmatpush1.bf16.msra.mxu0 %v2788
      %2808 = vmatprep.subr.bf16.mxu0 %v2787
      %2809 = vmatpush1.bf16.msra.mxu0 %v2786
      %2810 = vmatprep.subr.bf16.mxu0 %v2785
      %2811 = vmatpush1.bf16.msra.mxu0 %v2784
      %2812 = vmatprep.subr.bf16.mxu0 %v2783
      %2813 = vmatpush1.bf16.msra.mxu0 %v2782
      %2814 = vmatprep.subr.bf16.mxu0 %v2781
      %2815 = vmatpush1.bf16.msra.mxu0 %v2780
      %2816 = vmatprep.subr.bf16.mxu0 %v2779
      %2817 = vmatpush1.bf16.msra.mxu0 %v2778
      %2818 = vmatprep.subr.bf16.mxu0 %v2777
      %2819 = vmatpush1.bf16.msra.mxu0 %v2776
      %2820 = vmatprep.subr.bf16.mxu0 %v2775
      %2821 = vmatpush1.bf16.msra.mxu0 %v2774
      %2822 = vmatprep.subr.bf16.mxu0 0
      %2823 = vmatpush2.bf16.msra.mxu0 0
      %2824 = vmatprep.subr.bf16.mxu0 0
      %2825 = vmatpush2.bf16.msra.mxu0 0
      %2826 = vmatprep.subr.bf16.mxu0 0
      %2827 = vmatpush2.bf16.msra.mxu0 0
      %2828 = vmatprep.subr.bf16.mxu0 0
      %2829 = vmatpush2.bf16.msra.mxu0 0
      %2830 = vmatprep.subr.bf16.mxu0 0
      %2831 = vmatpush2.bf16.msra.mxu0 0
      %2832 = vmatprep.subr.bf16.mxu0 0
      %2833 = vmatpush2.bf16.msra.mxu0 0
      %2834 = vmatprep.subr.bf16.mxu0 0
      %2835 = vmatpush2.bf16.msra.mxu0 0
      %2836 = vmatprep.subr.bf16.mxu0 0
      %2837 = vmatpush2.bf16.msra.mxu0 0
      %2838 = vmatprep.mubr.bf16.mxu0 0
      %2839 = vmatmul.mubr.bf16.gmra.mxu0 %v2724
      %v2840 = vpop.f32.mrf.mxu0
      %v2841 = vadd.f32 0.0, %v2840
      %v2842 = vpop.f32.mrf.mxu0
      %v2843 = vadd.f32 0.0, %v2842
      %v2844 = vpop.f32.mrf.mxu0
      %v2845 = vpop.f32.mrf.mxu0
      %2846 = vdwg.mxu0
      %v2847 = vadd.f32 %v2698, %v2841
      %v2848 = vadd.f32 %v2699, %v2843
      %s2849 = scalar_lea.vmem %s539, 768
      %v2850 = vld [vmem:[%s2849] sm:$0xff]
      %v2851 = vld [vmem:[%s2849 + $0x8] sm:$0xff]
      %v2852 = vld [vmem:[%s2849 + $0x10] sm:$0xff]
      %v2853 = vld [vmem:[%s2849 + $0x18] sm:$0xff]
      %v2854 = vld [vmem:[%s2849 + $0x20] sm:$0xff]
      %v2855 = vld [vmem:[%s2849 + $0x28] sm:$0xff]
      %v2856 = vld [vmem:[%s2849 + $0x30] sm:$0xff]
      %v2857 = vld [vmem:[%s2849 + $0x38] sm:$0xff]
      %v2858 = vld [vmem:[%s2849 + $0x40] sm:$0xff]
      %v2859 = vld [vmem:[%s2849 + $0x48] sm:$0xff]
      %v2860 = vld [vmem:[%s2849 + $0x50] sm:$0xff]
      %v2861 = vld [vmem:[%s2849 + $0x58] sm:$0xff]
      %v2862 = vld [vmem:[%s2849 + $0x60] sm:$0xff]
      %v2863 = vld [vmem:[%s2849 + $0x68] sm:$0xff]
      %v2864 = vld [vmem:[%s2849 + $0x70] sm:$0xff]
      %v2865 = vld [vmem:[%s2849 + $0x78] sm:$0xff]
      %v2866 = vrot.slane %v1990, 6
      %v2867 = vrot.slane %v1991, 5
      %v2868 = vsel %vm1995, %v2867, %v2866
      %v2869 = vrot.slane %v1992, 4
      %v2870 = vsel %vm1998, %v2869, %v2868
      %v2871 = vrot.slane %v1993, 3
      %v2872 = vsel %vm2001, %v2871, %v2870
      %v2873 = vpack.c.b16 %v2872, %v2872
      %v2891 = vunpack.c.l.b16 %v2850
      %v2892 = vunpack.c.h.b16 %v2850
      %v2893 = vunpack.c.l.b16 %v2851
      %v2894 = vunpack.c.h.b16 %v2851
      %v2895 = vunpack.c.l.b16 %v2852
      %v2896 = vunpack.c.h.b16 %v2852
      %v2897 = vunpack.c.l.b16 %v2853
      %v2898 = vunpack.c.h.b16 %v2853
      %v2899 = vunpack.c.l.b16 %v2854
      %v2900 = vunpack.c.h.b16 %v2854
      %v2901 = vunpack.c.l.b16 %v2855
      %v2902 = vunpack.c.h.b16 %v2855
      %v2903 = vunpack.c.l.b16 %v2856
      %v2904 = vunpack.c.h.b16 %v2856
      %v2905 = vunpack.c.l.b16 %v2857
      %v2906 = vunpack.c.h.b16 %v2857
      %v2907 = vunpack.c.l.b16 %v2858
      %v2908 = vunpack.c.h.b16 %v2858
      %v2909 = vunpack.c.l.b16 %v2859
      %v2910 = vunpack.c.h.b16 %v2859
      %v2911 = vunpack.c.l.b16 %v2860
      %v2912 = vunpack.c.h.b16 %v2860
      %v2913 = vunpack.c.l.b16 %v2861
      %v2914 = vunpack.c.h.b16 %v2861
      %v2915 = vunpack.c.l.b16 %v2862
      %v2916 = vunpack.c.h.b16 %v2862
      %v2917 = vunpack.c.l.b16 %v2863
      %v2918 = vunpack.c.h.b16 %v2863
      %v2919 = vunpack.c.l.b16 %v2864
      %v2920 = vunpack.c.h.b16 %v2864
      %v2921 = vunpack.c.l.b16 %v2865
      %v2922 = vunpack.c.h.b16 %v2865
      %v2923 = vpack.c.b16 %v2893, %v2891
      %v2924 = vpack.c.b16 %v2894, %v2892
      %v2925 = vpack.c.b16 %v2897, %v2895
      %v2926 = vpack.c.b16 %v2898, %v2896
      %v2927 = vpack.c.b16 %v2901, %v2899
      %v2928 = vpack.c.b16 %v2902, %v2900
      %v2929 = vpack.c.b16 %v2905, %v2903
      %v2930 = vpack.c.b16 %v2906, %v2904
      %v2931 = vpack.c.b16 %v2909, %v2907
      %v2932 = vpack.c.b16 %v2910, %v2908
      %v2933 = vpack.c.b16 %v2913, %v2911
      %v2934 = vpack.c.b16 %v2914, %v2912
      %v2935 = vpack.c.b16 %v2917, %v2915
      %v2936 = vpack.c.b16 %v2918, %v2916
      %v2937 = vpack.c.b16 %v2921, %v2919
      %v2938 = vpack.c.b16 %v2922, %v2920
      %2955 = vmatprep.subr.bf16.mxu0 %v2938
      %2956 = vmatpush1.bf16.msra.mxu0 %v2937
      %2957 = vmatprep.subr.bf16.mxu0 %v2936
      %2958 = vmatpush1.bf16.msra.mxu0 %v2935
      %2959 = vmatprep.subr.bf16.mxu0 %v2934
      %2960 = vmatpush1.bf16.msra.mxu0 %v2933
      %2961 = vmatprep.subr.bf16.mxu0 %v2932
      %2962 = vmatpush1.bf16.msra.mxu0 %v2931
      %2963 = vmatprep.subr.bf16.mxu0 %v2930
      %2964 = vmatpush1.bf16.msra.mxu0 %v2929
      %2965 = vmatprep.subr.bf16.mxu0 %v2928
      %2966 = vmatpush1.bf16.msra.mxu0 %v2927
      %2967 = vmatprep.subr.bf16.mxu0 %v2926
      %2968 = vmatpush1.bf16.msra.mxu0 %v2925
      %2969 = vmatprep.subr.bf16.mxu0 %v2924
      %2970 = vmatpush1.bf16.msra.mxu0 %v2923
      %2971 = vmatprep.subr.bf16.mxu0 0
      %2972 = vmatpush2.bf16.msra.mxu0 0
      %2973 = vmatprep.subr.bf16.mxu0 0
      %2974 = vmatpush2.bf16.msra.mxu0 0
      %2975 = vmatprep.subr.bf16.mxu0 0
      %2976 = vmatpush2.bf16.msra.mxu0 0
      %2977 = vmatprep.subr.bf16.mxu0 0
      %2978 = vmatpush2.bf16.msra.mxu0 0
      %2979 = vmatprep.subr.bf16.mxu0 0
      %2980 = vmatpush2.bf16.msra.mxu0 0
      %2981 = vmatprep.subr.bf16.mxu0 0
      %2982 = vmatpush2.bf16.msra.mxu0 0
      %2983 = vmatprep.subr.bf16.mxu0 0
      %2984 = vmatpush2.bf16.msra.mxu0 0
      %2985 = vmatprep.subr.bf16.mxu0 0
      %2986 = vmatpush2.bf16.msra.mxu0 0
      %2987 = vmatprep.mubr.bf16.mxu0 0
      %2988 = vmatmul.mubr.bf16.gmra.mxu0 %v2873
      %v2989 = vpop.f32.mrf.mxu0
      %v2990 = vadd.f32 0.0, %v2989
      %v2991 = vpop.f32.mrf.mxu0
      %v2992 = vadd.f32 0.0, %v2991
      %v2993 = vpop.f32.mrf.mxu0
      %v2994 = vpop.f32.mrf.mxu0
      %2995 = vdwg.mxu0
      %v2996 = vadd.f32 %v2847, %v2990
      %v2997 = vadd.f32 %v2848, %v2992
      %s2998 = scalar_lea.vmem %s539, 896
      %v2999 = vld [vmem:[%s2998] sm:$0xff]
      %v3000 = vld [vmem:[%s2998 + $0x8] sm:$0xff]
      %v3001 = vld [vmem:[%s2998 + $0x10] sm:$0xff]
      %v3002 = vld [vmem:[%s2998 + $0x18] sm:$0xff]
      %v3003 = vld [vmem:[%s2998 + $0x20] sm:$0xff]
      %v3004 = vld [vmem:[%s2998 + $0x28] sm:$0xff]
      %v3005 = vld [vmem:[%s2998 + $0x30] sm:$0xff]
      %v3006 = vld [vmem:[%s2998 + $0x38] sm:$0xff]
      %v3007 = vld [vmem:[%s2998 + $0x40] sm:$0xff]
      %v3008 = vld [vmem:[%s2998 + $0x48] sm:$0xff]
      %v3009 = vld [vmem:[%s2998 + $0x50] sm:$0xff]
      %v3010 = vld [vmem:[%s2998 + $0x58] sm:$0xff]
      %v3011 = vld [vmem:[%s2998 + $0x60] sm:$0xff]
      %v3012 = vld [vmem:[%s2998 + $0x68] sm:$0xff]
      %v3013 = vld [vmem:[%s2998 + $0x70] sm:$0xff]
      %v3014 = vld [vmem:[%s2998 + $0x78] sm:$0xff]
      %v3015 = vrot.slane %v1990, 7
      %v3016 = vrot.slane %v1991, 6
      %v3017 = vsel %vm1995, %v3016, %v3015
      %v3018 = vrot.slane %v1992, 5
      %v3019 = vsel %vm1998, %v3018, %v3017
      %v3020 = vrot.slane %v1993, 4
      %v3021 = vsel %vm2001, %v3020, %v3019
      %v3022 = vpack.c.b16 %v3021, %v3021
      %v3040 = vunpack.c.l.b16 %v2999
      %v3041 = vunpack.c.h.b16 %v2999
      %v3042 = vunpack.c.l.b16 %v3000
      %v3043 = vunpack.c.h.b16 %v3000
      %v3044 = vunpack.c.l.b16 %v3001
      %v3045 = vunpack.c.h.b16 %v3001
      %v3046 = vunpack.c.l.b16 %v3002
      %v3047 = vunpack.c.h.b16 %v3002
      %v3048 = vunpack.c.l.b16 %v3003
      %v3049 = vunpack.c.h.b16 %v3003
      %v3050 = vunpack.c.l.b16 %v3004
      %v3051 = vunpack.c.h.b16 %v3004
      %v3052 = vunpack.c.l.b16 %v3005
      %v3053 = vunpack.c.h.b16 %v3005
      %v3054 = vunpack.c.l.b16 %v3006
      %v3055 = vunpack.c.h.b16 %v3006
      %v3056 = vunpack.c.l.b16 %v3007
      %v3057 = vunpack.c.h.b16 %v3007
      %v3058 = vunpack.c.l.b16 %v3008
      %v3059 = vunpack.c.h.b16 %v3008
      %v3060 = vunpack.c.l.b16 %v3009
      %v3061 = vunpack.c.h.b16 %v3009
      %v3062 = vunpack.c.l.b16 %v3010
      %v3063 = vunpack.c.h.b16 %v3010
      %v3064 = vunpack.c.l.b16 %v3011
      %v3065 = vunpack.c.h.b16 %v3011
      %v3066 = vunpack.c.l.b16 %v3012
      %v3067 = vunpack.c.h.b16 %v3012
      %v3068 = vunpack.c.l.b16 %v3013
      %v3069 = vunpack.c.h.b16 %v3013
      %v3070 = vunpack.c.l.b16 %v3014
      %v3071 = vunpack.c.h.b16 %v3014
      %v3072 = vpack.c.b16 %v3042, %v3040
      %v3073 = vpack.c.b16 %v3043, %v3041
      %v3074 = vpack.c.b16 %v3046, %v3044
      %v3075 = vpack.c.b16 %v3047, %v3045
      %v3076 = vpack.c.b16 %v3050, %v3048
      %v3077 = vpack.c.b16 %v3051, %v3049
      %v3078 = vpack.c.b16 %v3054, %v3052
      %v3079 = vpack.c.b16 %v3055, %v3053
      %v3080 = vpack.c.b16 %v3058, %v3056
      %v3081 = vpack.c.b16 %v3059, %v3057
      %v3082 = vpack.c.b16 %v3062, %v3060
      %v3083 = vpack.c.b16 %v3063, %v3061
      %v3084 = vpack.c.b16 %v3066, %v3064
      %v3085 = vpack.c.b16 %v3067, %v3065
      %v3086 = vpack.c.b16 %v3070, %v3068
      %v3087 = vpack.c.b16 %v3071, %v3069
      %3104 = vmatprep.subr.bf16.mxu0 %v3087
      %3105 = vmatpush1.bf16.msra.mxu0 %v3086
      %3106 = vmatprep.subr.bf16.mxu0 %v3085
      %3107 = vmatpush1.bf16.msra.mxu0 %v3084
      %3108 = vmatprep.subr.bf16.mxu0 %v3083
      %3109 = vmatpush1.bf16.msra.mxu0 %v3082
      %3110 = vmatprep.subr.bf16.mxu0 %v3081
      %3111 = vmatpush1.bf16.msra.mxu0 %v3080
      %3112 = vmatprep.subr.bf16.mxu0 %v3079
      %3113 = vmatpush1.bf16.msra.mxu0 %v3078
      %3114 = vmatprep.subr.bf16.mxu0 %v3077
      %3115 = vmatpush1.bf16.msra.mxu0 %v3076
      %3116 = vmatprep.subr.bf16.mxu0 %v3075
      %3117 = vmatpush1.bf16.msra.mxu0 %v3074
      %3118 = vmatprep.subr.bf16.mxu0 %v3073
      %3119 = vmatpush1.bf16.msra.mxu0 %v3072
      %3120 = vmatprep.subr.bf16.mxu0 0
      %3121 = vmatpush2.bf16.msra.mxu0 0
      %3122 = vmatprep.subr.bf16.mxu0 0
      %3123 = vmatpush2.bf16.msra.mxu0 0
      %3124 = vmatprep.subr.bf16.mxu0 0
      %3125 = vmatpush2.bf16.msra.mxu0 0
      %3126 = vmatprep.subr.bf16.mxu0 0
      %3127 = vmatpush2.bf16.msra.mxu0 0
      %3128 = vmatprep.subr.bf16.mxu0 0
      %3129 = vmatpush2.bf16.msra.mxu0 0
      %3130 = vmatprep.subr.bf16.mxu0 0
      %3131 = vmatpush2.bf16.msra.mxu0 0
      %3132 = vmatprep.subr.bf16.mxu0 0
      %3133 = vmatpush2.bf16.msra.mxu0 0
      %3134 = vmatprep.subr.bf16.mxu0 0
      %3135 = vmatpush2.bf16.msra.mxu0 0
      %3136 = vmatprep.mubr.bf16.mxu0 0
      %3137 = vmatmul.mubr.bf16.gmra.mxu0 %v3022
      %v3138 = vpop.f32.mrf.mxu0
      %v3139 = vadd.f32 0.0, %v3138
      %v3140 = vpop.f32.mrf.mxu0
      %v3141 = vadd.f32 0.0, %v3140
      %v3142 = vpop.f32.mrf.mxu0
      %v3143 = vpop.f32.mrf.mxu0
      %3144 = vdwg.mxu0
      %v3145 = vadd.f32 %v2996, %v3139
      %v3146 = vadd.f32 %v2997, %v3141
      %v3147 = vld [vmem:[#allocation3] sm:$0xff]
      %v3150 = vcombine.low %v3145, %v3146
      %v3152 = vadd.f32 %v3147, %v3150
      %3153 = vst [vmem:[#allocation3] sm:$0xff] %v3152
      %p3154 = scmp.eq.s32.totalorder %s30, 3
      // Predicated region
      $region93: #{high_level_conv_qf_forward.1} parent=87 // pred_check
        %p3155 = pneg %p3154
      $region94: #{high_level_conv_qf_forward.1} parent=87 // pred_check_branch
        %3157 = sbr.rel (%p3155) target = $region96
      $region95: #{high_level_conv_qf_forward.1} parent=87 // pred_region
        %v3158 = vld [vmem:[#allocation3] sm:$0xff]
        %v3159 = vld [vmem:[%s11] sm:$0x3]
        %v3161 = vlaneseq
        %v3162 = vshrl.u32 %v3161, 7
        %v3163 = vsub.s32 0, %v3162
        %v3164 = vrot.slane %v3159, %v3163
        %v3165 = vlaneseq
        %v3166 = vshrl.u32 %v3165, 7
        %v3167 = vsub.s32 1, %v3166
        %v3168 = vrot.slane %v3159, %v3167
        %v3169 = vcombine.low %v3164, %v3168
        %v3171 = vadd.f32 %v3158, %v3169
        %v3172 = vmax.f32 %v3171, 0.0
        %v3173 = vld [vmem:[%s12] sm:$0xff]
        %v3174 = vld [vmem:[%s12 + $0x8] sm:$0xff]
        %v3175 = vld [vmem:[%s12 + $0x10] sm:$0xff]
        %v3176 = vld [vmem:[%s12 + $0x18] sm:$0xff]
        %v3177 = vld [vmem:[%s12 + $0x20] sm:$0xff]
        %v3178 = vld [vmem:[%s12 + $0x28] sm:$0xff]
        %v3179 = vld [vmem:[%s12 + $0x30] sm:$0xff]
        %v3180 = vld [vmem:[%s12 + $0x38] sm:$0xff]
        %v3181 = vld [vmem:[%s12 + $0x40] sm:$0xff]
        %v3182 = vld [vmem:[%s12 + $0x48] sm:$0xff]
        %v3183 = vld [vmem:[%s12 + $0x50] sm:$0xff]
        %v3184 = vld [vmem:[%s12 + $0x58] sm:$0xff]
        %v3185 = vld [vmem:[%s12 + $0x60] sm:$0xff]
        %v3186 = vld [vmem:[%s12 + $0x68] sm:$0xff]
        %v3187 = vld [vmem:[%s12 + $0x70] sm:$0xff]
        %v3188 = vld [vmem:[%s12 + $0x78] sm:$0xff]
        %v3189 = vld [vmem:[%s12 + $0x80] sm:$0xff]
        %v3190 = vld [vmem:[%s12 + $0x88] sm:$0xff]
        %v3191 = vld [vmem:[%s12 + $0x90] sm:$0xff]
        %v3192 = vld [vmem:[%s12 + $0x98] sm:$0xff]
        %v3193 = vld [vmem:[%s12 + $0xa0] sm:$0xff]
        %v3194 = vld [vmem:[%s12 + $0xa8] sm:$0xff]
        %v3195 = vld [vmem:[%s12 + $0xb0] sm:$0xff]
        %v3196 = vld [vmem:[%s12 + $0xb8] sm:$0xff]
        %v3197 = vld [vmem:[%s12 + $0xc0] sm:$0xff]
        %v3198 = vld [vmem:[%s12 + $0xc8] sm:$0xff]
        %v3199 = vld [vmem:[%s12 + $0xd0] sm:$0xff]
        %v3200 = vld [vmem:[%s12 + $0xd8] sm:$0xff]
        %v3201 = vld [vmem:[%s12 + $0xe0] sm:$0xff]
        %v3202 = vld [vmem:[%s12 + $0xe8] sm:$0xff]
        %v3203 = vld [vmem:[%s12 + $0xf0] sm:$0xff]
        %v3204 = vld [vmem:[%s12 + $0xf8] sm:$0xff]
        %v3205 = vld [vmem:[%s3] sm:$0xf]
        %v3206 = vld [vmem:[%s13] sm:$0xff]
        %v3207 = vld [vmem:[%s13 + $0x8] sm:$0xff]
        %vm3208 = vcmask 130048
        %v3210 = vsel %vm3208, %v3205, 0
        %3212 = vmatprep.subr.mxu0 0.0
        %3213 = vmatpush1.msra.mxu0 0.0
        %3214 = vmatprep.subr.mxu0 0.0
        %3215 = vmatpush1.msra.mxu0 0.0
        %3216 = vmatprep.subr.mxu0 0.0
        %3217 = vmatpush1.msra.mxu0 0.0
        %3218 = vmatprep.subr.mxu0 0.0
        %3219 = vmatpush1.msra.mxu0 0.0
        %3220 = vmatprep.subr.mxu0 0.0
        %3221 = vmatpush1.msra.mxu0 0.0
        %3222 = vmatprep.subr.mxu0 0.0
        %3223 = vmatpush1.msra.mxu0 0.0
        %3224 = vmatprep.subr.mxu0 0.0
        %3225 = vmatpush1.msra.mxu0 0.0
        %3226 = vmatprep.subr.mxu0 0.0
        %3227 = vmatpush1.msra.mxu0 0.0
        %3228 = vmatprep.subr.mxu0 0.0
        %3229 = vmatpush1.msra.mxu0 0.0
        %3230 = vmatprep.subr.mxu0 0.0
        %3231 = vmatpush1.msra.mxu0 0.0
        %3232 = vmatprep.subr.mxu0 0.0
        %3233 = vmatpush1.msra.mxu0 0.0
        %3234 = vmatprep.subr.mxu0 0.0
        %3235 = vmatpush1.msra.mxu0 0.0
        %3236 = vmatprep.subr.mxu0 0.0
        %3237 = vmatpush1.msra.mxu0 0.0
        %3238 = vmatprep.subr.mxu0 0.0
        %3239 = vmatpush1.msra.mxu0 0.0
        %3240 = vmatprep.subr.mxu0 0.0
        %3241 = vmatpush1.msra.mxu0 %v3207
        %3242 = vmatprep.subr.mxu0 0.0
        %3243 = vmatpush1.msra.mxu0 %v3206
        %3244 = vmatprep.subr.mxu0 0.0
        %3245 = vmatpush2.msra.mxu0 0.0
        %3246 = vmatprep.subr.mxu0 0.0
        %3247 = vmatpush2.msra.mxu0 0.0
        %3248 = vmatprep.subr.mxu0 0.0
        %3249 = vmatpush2.msra.mxu0 0.0
        %3250 = vmatprep.subr.mxu0 0.0
        %3251 = vmatpush2.msra.mxu0 0.0
        %3252 = vmatprep.subr.mxu0 0.0
        %3253 = vmatpush2.msra.mxu0 0.0
        %3254 = vmatprep.subr.mxu0 0.0
        %3255 = vmatpush2.msra.mxu0 0.0
        %3256 = vmatprep.subr.mxu0 0.0
        %3257 = vmatpush2.msra.mxu0 0.0
        %3258 = vmatprep.subr.mxu0 0.0
        %3259 = vmatpush2.msra.mxu0 0.0
        %3260 = vmatprep.subr.mxu0 0.0
        %3261 = vmatpush2.msra.mxu0 0.0
        %3262 = vmatprep.subr.mxu0 0.0
        %3263 = vmatpush2.msra.mxu0 0.0
        %3264 = vmatprep.subr.mxu0 0.0
        %3265 = vmatpush2.msra.mxu0 0.0
        %3266 = vmatprep.subr.mxu0 0.0
        %3267 = vmatpush2.msra.mxu0 0.0
        %3268 = vmatprep.subr.mxu0 0.0
        %3269 = vmatpush2.msra.mxu0 0.0
        %3270 = vmatprep.subr.mxu0 0.0
        %3271 = vmatpush2.msra.mxu0 0.0
        %3272 = vmatprep.subr.mxu0 0.0
        %3273 = vmatpush2.msra.mxu0 0.0
        %3274 = vmatprep.subr.mxu0 0.0
        %3275 = vmatpush2.msra.mxu0 0.0
        %3276 = vmatprep.mubr.f32.mxu0 0.0
        %3277 = vmatmul.mubr.f32.gmra.mxu0 %v3210
        %v3278 = vpop.f32.mrf.mxu0
        %v3279 = vadd.f32 0.0, %v3278
        %v3280 = vpop.f32.mrf.mxu0
        %3281 = vdwg.mxu0
        %v3283 = vcombine.high %v3172, %v3172
        %3285 = vmatprep.subr.mxu0 0.0
        %3286 = vmatpush1.msra.mxu0 %v3188
        %3287 = vmatprep.subr.mxu0 0.0
        %3288 = vmatpush1.msra.mxu0 %v3187
        %3289 = vmatprep.subr.mxu0 0.0
        %3290 = vmatpush1.msra.mxu0 %v3186
        %3291 = vmatprep.subr.mxu0 0.0
        %3292 = vmatpush1.msra.mxu0 %v3185
        %3293 = vmatprep.subr.mxu0 0.0
        %3294 = vmatpush1.msra.mxu0 %v3184
        %3295 = vmatprep.subr.mxu0 0.0
        %3296 = vmatpush1.msra.mxu0 %v3183
        %3297 = vmatprep.subr.mxu0 0.0
        %3298 = vmatpush1.msra.mxu0 %v3182
        %3299 = vmatprep.subr.mxu0 0.0
        %3300 = vmatpush1.msra.mxu0 %v3181
        %3301 = vmatprep.subr.mxu0 0.0
        %3302 = vmatpush1.msra.mxu0 %v3180
        %3303 = vmatprep.subr.mxu0 0.0
        %3304 = vmatpush1.msra.mxu0 %v3179
        %3305 = vmatprep.subr.mxu0 0.0
        %3306 = vmatpush1.msra.mxu0 %v3178
        %3307 = vmatprep.subr.mxu0 0.0
        %3308 = vmatpush1.msra.mxu0 %v3177
        %3309 = vmatprep.subr.mxu0 0.0
        %3310 = vmatpush1.msra.mxu0 %v3176
        %3311 = vmatprep.subr.mxu0 0.0
        %3312 = vmatpush1.msra.mxu0 %v3175
        %3313 = vmatprep.subr.mxu0 0.0
        %3314 = vmatpush1.msra.mxu0 %v3174
        %3315 = vmatprep.subr.mxu0 0.0
        %3316 = vmatpush1.msra.mxu0 %v3173
        %3317 = vmatprep.subr.mxu0 0.0
        %3318 = vmatpush2.msra.mxu0 %v3204
        %3319 = vmatprep.subr.mxu0 0.0
        %3320 = vmatpush2.msra.mxu0 %v3203
        %3321 = vmatprep.subr.mxu0 0.0
        %3322 = vmatpush2.msra.mxu0 %v3202
        %3323 = vmatprep.subr.mxu0 0.0
        %3324 = vmatpush2.msra.mxu0 %v3201
        %3325 = vmatprep.subr.mxu0 0.0
        %3326 = vmatpush2.msra.mxu0 %v3200
        %3327 = vmatprep.subr.mxu0 0.0
        %3328 = vmatpush2.msra.mxu0 %v3199
        %3329 = vmatprep.subr.mxu0 0.0
        %3330 = vmatpush2.msra.mxu0 %v3198
        %3331 = vmatprep.subr.mxu0 0.0
        %3332 = vmatpush2.msra.mxu0 %v3197
        %3333 = vmatprep.subr.mxu0 0.0
        %3334 = vmatpush2.msra.mxu0 %v3196
        %3335 = vmatprep.subr.mxu0 0.0
        %3336 = vmatpush2.msra.mxu0 %v3195
        %3337 = vmatprep.subr.mxu0 0.0
        %3338 = vmatpush2.msra.mxu0 %v3194
        %3339 = vmatprep.subr.mxu0 0.0
        %3340 = vmatpush2.msra.mxu0 %v3193
        %3341 = vmatprep.subr.mxu0 0.0
        %3342 = vmatpush2.msra.mxu0 %v3192
        %3343 = vmatprep.subr.mxu0 0.0
        %3344 = vmatpush2.msra.mxu0 %v3191
        %3345 = vmatprep.subr.mxu0 0.0
        %3346 = vmatpush2.msra.mxu0 %v3190
        %3347 = vmatprep.subr.mxu0 0.0
        %3348 = vmatpush2.msra.mxu0 %v3189
        %3349 = vmatprep.mubr.f32.mxu0 %v3283
        %3350 = vmatmul.mubr.f32.gmra.mxu0 %v3172
        %v3351 = vpop.f32.mrf.mxu0
        %v3352 = vadd.f32 %v3279, %v3351
        %v3353 = vpop.f32.mrf.mxu0
        %3354 = vdwg.mxu0
        %v3355 = vld [vmem:[%s14] sm:$0x1]
        %v3357 = vlaneseq
        %v3358 = vshrl.u32 %v3357, 7
        %v3359 = vsub.s32 0, %v3358
        %v3360 = vrot.slane %v3355, %v3359
        %v3362 = vadd.f32 %v3352, %v3360
        %v3363 = vmax.f32 %v3362, 0.0
        %v3364 = vld [vmem:[%s15] sm:$0xff]
        %v3365 = vld [vmem:[%s15 + $0x8] sm:$0xff]
        %v3366 = vld [vmem:[%s15 + $0x10] sm:$0xff]
        %v3367 = vld [vmem:[%s15 + $0x18] sm:$0xff]
        %v3368 = vld [vmem:[%s15 + $0x20] sm:$0xff]
        %v3369 = vld [vmem:[%s15 + $0x28] sm:$0xff]
        %v3370 = vld [vmem:[%s15 + $0x30] sm:$0xff]
        %v3371 = vld [vmem:[%s15 + $0x38] sm:$0xff]
        %v3372 = vld [vmem:[%s15 + $0x40] sm:$0xff]
        %v3373 = vld [vmem:[%s15 + $0x48] sm:$0xff]
        %v3374 = vld [vmem:[%s15 + $0x50] sm:$0xff]
        %v3375 = vld [vmem:[%s15 + $0x58] sm:$0xff]
        %v3376 = vld [vmem:[%s15 + $0x60] sm:$0xff]
        %v3377 = vld [vmem:[%s15 + $0x68] sm:$0xff]
        %v3378 = vld [vmem:[%s15 + $0x70] sm:$0xff]
        %v3379 = vld [vmem:[%s15 + $0x78] sm:$0xff]
        %v3380 = vld [vmem:[#allocation4] sm:$0x1]
        %v3382 = vlaneseq
        %v3383 = vshrl.u32 %v3382, 7
        %v3384 = vsub.s32 0, %v3383
        %v3385 = vrot.slane %v3380, %v3384
        %3387 = vmatprep.subr.mxu0 0.0
        %3388 = vmatpush1.msra.mxu0 %v3379
        %3389 = vmatprep.subr.mxu0 0.0
        %3390 = vmatpush1.msra.mxu0 %v3378
        %3391 = vmatprep.subr.mxu0 0.0
        %3392 = vmatpush1.msra.mxu0 %v3377
        %3393 = vmatprep.subr.mxu0 0.0
        %3394 = vmatpush1.msra.mxu0 %v3376
        %3395 = vmatprep.subr.mxu0 0.0
        %3396 = vmatpush1.msra.mxu0 %v3375
        %3397 = vmatprep.subr.mxu0 0.0
        %3398 = vmatpush1.msra.mxu0 %v3374
        %3399 = vmatprep.subr.mxu0 0.0
        %3400 = vmatpush1.msra.mxu0 %v3373
        %3401 = vmatprep.subr.mxu0 0.0
        %3402 = vmatpush1.msra.mxu0 %v3372
        %3403 = vmatprep.subr.mxu0 0.0
        %3404 = vmatpush1.msra.mxu0 %v3371
        %3405 = vmatprep.subr.mxu0 0.0
        %3406 = vmatpush1.msra.mxu0 %v3370
        %3407 = vmatprep.subr.mxu0 0.0
        %3408 = vmatpush1.msra.mxu0 %v3369
        %3409 = vmatprep.subr.mxu0 0.0
        %3410 = vmatpush1.msra.mxu0 %v3368
        %3411 = vmatprep.subr.mxu0 0.0
        %3412 = vmatpush1.msra.mxu0 %v3367
        %3413 = vmatprep.subr.mxu0 0.0
        %3414 = vmatpush1.msra.mxu0 %v3366
        %3415 = vmatprep.subr.mxu0 0.0
        %3416 = vmatpush1.msra.mxu0 %v3365
        %3417 = vmatprep.subr.mxu0 0.0
        %3418 = vmatpush1.msra.mxu0 %v3364
        %3419 = vmatprep.subr.mxu0 0.0
        %3420 = vmatpush2.msra.mxu0 0.0
        %3421 = vmatprep.subr.mxu0 0.0
        %3422 = vmatpush2.msra.mxu0 0.0
        %3423 = vmatprep.subr.mxu0 0.0
        %3424 = vmatpush2.msra.mxu0 0.0
        %3425 = vmatprep.subr.mxu0 0.0
        %3426 = vmatpush2.msra.mxu0 0.0
        %3427 = vmatprep.subr.mxu0 0.0
        %3428 = vmatpush2.msra.mxu0 0.0
        %3429 = vmatprep.subr.mxu0 0.0
        %3430 = vmatpush2.msra.mxu0 0.0
        %3431 = vmatprep.subr.mxu0 0.0
        %3432 = vmatpush2.msra.mxu0 0.0
        %3433 = vmatprep.subr.mxu0 0.0
        %3434 = vmatpush2.msra.mxu0 0.0
        %3435 = vmatprep.subr.mxu0 0.0
        %3436 = vmatpush2.msra.mxu0 0.0
        %3437 = vmatprep.subr.mxu0 0.0
        %3438 = vmatpush2.msra.mxu0 0.0
        %3439 = vmatprep.subr.mxu0 0.0
        %3440 = vmatpush2.msra.mxu0 0.0
        %3441 = vmatprep.subr.mxu0 0.0
        %3442 = vmatpush2.msra.mxu0 0.0
        %3443 = vmatprep.subr.mxu0 0.0
        %3444 = vmatpush2.msra.mxu0 0.0
        %3445 = vmatprep.subr.mxu0 0.0
        %3446 = vmatpush2.msra.mxu0 0.0
        %3447 = vmatprep.subr.mxu0 0.0
        %3448 = vmatpush2.msra.mxu0 0.0
        %3449 = vmatprep.subr.mxu0 0.0
        %3450 = vmatpush2.msra.mxu0 0.0
        %3451 = vmatprep.mubr.f32.mxu0 0.0
        %3452 = vmatmul.mubr.f32.gmra.mxu0 %v3363
        %v3453 = vpop.f32.mrf.mxu0
        %v3454 = vadd.f32 %v3385, %v3453
        %v3455 = vpop.f32.mrf.mxu0
        %3456 = vdwg.mxu0
        %vm3457 = vcmask 3072
        %3458 = vst.msk [vmem:[%s17] sm:$0xf] %vm3457, %v3454
      $region96: #{high_level_conv_qf_forward.1} parent=87 // pred_fallthru
        _
      // Predicated region
      $region97: #{high_level_conv_qf_forward.1} parent=87 // pred_check
        %p3459 = pneg %p405
      $region98: #{high_level_conv_qf_forward.1} parent=87 // pred_check_branch
        %3461 = sbr.rel (%p3459) target = $region100
      $region99: #{high_level_conv_qf_forward.1} parent=87 // pred_region
        _
      $region100: #{high_level_conv_qf_forward.1} parent=87 // pred_fallthru
        _
      // Predicated region
      $region101: #{high_level_conv_qf_forward.1} parent=87 // pred_check
        %p3462 = pneg %p405
      $region102: #{high_level_conv_qf_forward.1} parent=87 // pred_check_branch
        %3464 = sbr.rel (%p3462) target = $region104
      $region103: #{high_level_conv_qf_forward.1} parent=87 // pred_region
        _
      $region104: #{high_level_conv_qf_forward.1} parent=87 // pred_fallthru
        _
    $region88: #{high_level_conv_qf_forward.1} parent=5 // pred_fallthru
      _
    %p3465 = scmp.le.s32.totalorder 2, %s25
    // Predicated region
    $region105: #{high_level_conv_qf_forward.1} parent=5 // pred_check
      %p3466 = pneg %p3465
    $region106: #{high_level_conv_qf_forward.1} parent=5 // pred_check_branch
      %3468 = sbr.rel (%p3466) target = $region108
    $region107: #{high_level_conv_qf_forward.1} parent=5 // pred_region
      %s3469 = ssub.s32 %s25, 2
    $region108: #{high_level_conv_qf_forward.1} parent=5 // pred_fallthru
      _
  $region6: #{high_level_conv_qf_forward.1} parent=0 // loop_footer
    %s29 = sadd.s32 1, %s25
  $region7: #{high_level_conv_qf_forward.1} parent=0 // loop_footer_branch
    %24 = sbr.rel target = $region3
  $region8: #{high_level_conv_qf_forward.1} parent=0 // loop_exit
    _

</llo_original>
